<compile_context>
chip_gen: v7x
topology: tpu7x:2x2x1
jax: 0.10.0
libtpu: 0.0.40
codegen_flags: <defaults>
</compile_context>

<pallas_src>
import numpy as np
import jax
import jax.numpy as jnp
from jax.experimental import pallas as pl
from jax.experimental.pallas import tpu as pltpu

K = 3                                   # conv kernel size
STRIDE = 2
LAYER_PADS = ((1, 1), (0, 1), (1, 1), (0, 1))   # per-layer (pad_h, pad_w)


def _out_hw(h, w, pad):
    ph, pw = pad
    return (h + 2 * ph - K) // STRIDE + 1, (w + 2 * pw - K) // STRIDE + 1


def _spatial_chain(h, w):
    hw = [(h, w)]
    for pad in LAYER_PADS:
        hw.append(_out_hw(hw[-1][0], hw[-1][1], pad))
    return hw


# --------------------------------------------------------------------------
# The fused kernel: layer1 matmul + 3x (9-tap gather/accumulate) + ReLUs.
# --------------------------------------------------------------------------
def _encoder_fused_kernel(a1_ref, w1_ref, b1_ref,
                          g2_ref, w2_ref, b2_ref,
                          g3_ref, w3_ref, b3_ref,
                          g4_ref, w4_ref, b4_ref,
                          out_ref):
    # Layer 1: pre-gathered patch matrix @ batch-block-diagonal weight.
    x = jnp.dot(a1_ref[...], w1_ref[...], preferred_element_type=jnp.float32)
    x = jnp.maximum(x + b1_ref[...], 0.0)            # (M1, N*C1), stays in VMEM

    # Layers 2..4: 9 taps each.  G_tap gathers the (stride-2, zero-padded)
    # input rows; Wblk_tap contracts channels per batch element.  Everything
    # is a 2-D f32 MXU matmul; intermediates never touch HBM.
    for g_ref, w_ref, b_ref in ((g2_ref, w2_ref, b2_ref),
                                (g3_ref, w3_ref, b3_ref),
                                (g4_ref, w4_ref, b4_ref)):
        n_taps, m_out, _ = g_ref.shape
        nc_out = w_ref.shape[2]
        acc = jnp.zeros((m_out, nc_out), jnp.float32)
        for t in range(n_taps):                       # unrolled: 9 taps
            tap = jnp.dot(g_ref[t], x, preferred_element_type=jnp.float32)
            acc = acc + jnp.dot(tap, w_ref[t],
                                preferred_element_type=jnp.float32)
        x = jnp.maximum(acc + b_ref[...], 0.0)
    out_ref[...] = x                                  # (OH4*OW4, N*C4)


# --------------------------------------------------------------------------
# One-time packing: block-diagonal weights, tiled biases, gather matrices.
# --------------------------------------------------------------------------
def _gather_matrix(h_in, w_in, h_out, w_out, pad):
    """Per-tap one-hot matrices mapping flattened prev-layer rows to the rows
    needed by tap (kh, kw) of a stride-2 3x3 conv.  Positions that fall into
    the zero padding get an all-zero row (== reading a zero)."""
    ph, pw = pad
    g = np.zeros((K * K, h_out * w_out, h_in * w_in), np.float32)
    for kh in range(K):
        for kw in range(K):
            t = kh * K + kw
            for oh in range(h_out):
                ih = STRIDE * oh + kh - ph
                if ih < 0 or ih >= h_in:
                    continue
                for ow in range(w_out):
                    iw = STRIDE * ow + kw - pw
                    if iw < 0 or iw >= w_in:
                        continue
                    g[t, oh * w_out + ow, ih * w_in + iw] = 1.0
    return jnp.asarray(g)


def _block_diag_weight(w, n_batch):
    """(KH,KW,Cin,Cout) -> (KH*KW, N*Cin, N*Cout), block-diagonal over batch,
    so activations laid out as (spatial, N*C) need a single 2-D matmul per tap."""
    kh, kw, ci, co = w.shape
    wt = w.reshape(kh * kw, ci, co)
    eye = jnp.eye(n_batch, dtype=w.dtype)
    blk = jnp.einsum('nm,tio->tnimo', eye, wt)
    return blk.reshape(kh * kw, n_batch * ci, n_batch * co)


def pack_params(params, n_batch, in_hw):
    """Hoists every reshape/tiling out of the forward path (done once)."""
    hw = _spatial_chain(*in_hw)
    packed = {}
    # Layer 1: fold the 9 taps + batch into one (9*N*Cin, N*Cout) weight.
    w1blk = _block_diag_weight(params["w1"], n_batch)        # (9, N*Ci, N*Co)
    packed["w1"] = w1blk.reshape(-1, w1blk.shape[-1])
    packed["b1"] = jnp.tile(params["b1"], n_batch).reshape(1, -1)
    for idx in (2, 3, 4):
        packed[f"w{idx}"] = _block_diag_weight(params[f"w{idx}"], n_batch)
        packed[f"b{idx}"] = jnp.tile(params[f"b{idx}"], n_batch).reshape(1, -1)
        (hi, wi), (ho, wo) = hw[idx - 1], hw[idx]
        packed[f"g{idx}"] = _gather_matrix(hi, wi, ho, wo, LAYER_PADS[idx - 1])
    return packed


# --------------------------------------------------------------------------
# Forward pass (single pallas_call; layer-1 im2col + final flatten are glue).
# --------------------------------------------------------------------------
def _layer1_patches(x_nchw):
    """im2col for the first conv (cheap XLA glue on the HBM-resident input).
    Returns A1 of shape (OH1*OW1, 9*N*Cin), column order (tap, n, cin)."""
    n, ci, h, w = x_nchw.shape
    ph, pw = LAYER_PADS[0]
    oh, ow = _out_hw(h, w, LAYER_PADS[0])
    x_nhwc = jnp.transpose(x_nchw, (0, 2, 3, 1))
    xp = jnp.pad(x_nhwc, ((0, 0), (ph, ph), (pw, pw), (0, 0)))
    taps = []
    for kh in range(K):
        for kw in range(K):
            taps.append(jax.lax.slice(
                xp,
                (0, kh, kw, 0),
                (n, kh + STRIDE * (oh - 1) + 1, kw + STRIDE * (ow - 1) + 1, ci),
                (1, STRIDE, STRIDE, 1)))              # (N, OH, OW, Cin)
    a1 = jnp.stack(taps, axis=0)                      # (9, N, OH, OW, Cin)
    a1 = jnp.transpose(a1, (2, 3, 0, 1, 4))           # (OH, OW, 9, N, Cin)
    return a1.reshape(oh * ow, K * K * n * ci)


@jax.jit
def encoder_forward(x_nchw, packed):
    """Equivalent of Encoder.forward: 4x (Conv2d 3x3 s2 + ReLU) + Flatten."""
    n = x_nchw.shape[0]
    hw = _spatial_chain(x_nchw.shape[2], x_nchw.shape[3])
    m4 = hw[4][0] * hw[4][1]
    nc4 = packed["b4"].shape[1]
    c4 = nc4 // n

    a1 = _layer1_patches(x_nchw)

    vmem_spec = pl.BlockSpec(memory_space=pltpu.MemorySpace.VMEM)
    out = pl.pallas_call(
        _encoder_fused_kernel,
        out_shape=jax.ShapeDtypeStruct((m4, nc4), jnp.float32),
        in_specs=[vmem_spec] * 12,
        out_specs=vmem_spec,
    )(a1, packed["w1"], packed["b1"],
      packed["g2"], packed["w2"], packed["b2"],
      packed["g3"], packed["w3"], packed["b3"],
      packed["g4"], packed["w4"], packed["b4"])

    # out[(oh,ow), (n,c)] -> PyTorch Flatten order (n, c*OH4*OW4).
    out = out.reshape(m4, n, c4)
    return jnp.transpose(out, (1, 2, 0)).reshape(n, c4 * m4)


# --------------------------------------------------------------------------
# Params / reference
# --------------------------------------------------------------------------
def init_params(key):
    """Synthetic init matching PyTorch Conv2d defaults:
    weights & biases ~ U(+-1/sqrt(fan_in)); weight layout (KH, KW, Cin, Cout)."""
    chans = [2, 32, 32, 32, 1]
    keys = jax.random.split(key, 8)
    params = {}
    for layer in range(4):
        ci, co = chans[layer], chans[layer + 1]
        bound = 1.0 / np.sqrt(K * K * ci)
        params[f"w{layer + 1}"] = jax.random.uniform(
            keys[2 * layer], (K, K, ci, co), jnp.float32, -bound, bound)
        params[f"b{layer + 1}"] = jax.random.uniform(
            keys[2 * layer + 1], (co,), jnp.float32, -bound, bound)
    return params


def encoder_reference(x_nchw, params):
    """Pure-JAX reference (XLA convs) for correctness checking."""
    x = x_nchw
    for idx, pad in enumerate(LAYER_PADS, start=1):
        w = params[f"w{idx}"]
        b = params[f"b{idx}"]
        x = jax.lax.conv_general_dilated(
            x, w, window_strides=(STRIDE, STRIDE),
            padding=((pad[0], pad[0]), (pad[1], pad[1])),
            dimension_numbers=("NCHW", "HWIO", "NCHW"),
            precision=jax.lax.Precision.HIGHEST)
        x = jnp.maximum(x + b[None, :, None, None], 0.0)
    return x.reshape(x.shape[0], -1)


if __name__ == "__main__":
    key = jax.random.PRNGKey(0)
    pkey, xkey = jax.random.split(key)
    params = init_params(pkey)

    # Small Atari-like input: batch=2, 2 channels, 32x32 spatial (NCHW).
    x = jax.random.normal(xkey, (2, 2, 32, 32), dtype=jnp.float32)

    packed = pack_params(params, n_batch=x.shape[0],
                         in_hw=(x.shape[2], x.shape[3]))

    out = encoder_forward(x, packed)
    out = jax.block_until_ready(out)

    # Conv stack: 32x32 -> 16x16 -> 7x8 -> 4x4 -> 1x2; Cout=1 -> (2, 2).
    assert out.shape == (2, 2), out.shape

    # Correctness vs XLA conv reference (loose tol: MXU f32 matmul may use
    # bf16 passes internally).
    ref = encoder_reference(x, params)
    np.testing.assert_allclose(np.asarray(out), np.asarray(ref),
                               rtol=2e-2, atol=2e-2)

    print("KERNEL_OK")
</pallas_src>

<mosaic_0001>
module attributes {stable_mosaic.version = 11 : i64} {
  func.func @_encoder_fused_kernel(%arg0: memref<256x36xf32, #tpu.memory_space<vmem>>, %arg1: memref<36x64xf32, #tpu.memory_space<vmem>>, %arg2: memref<1x64xf32, #tpu.memory_space<vmem>>, %arg3: memref<9x56x256xf32, #tpu.memory_space<vmem>>, %arg4: memref<9x64x64xf32, #tpu.memory_space<vmem>>, %arg5: memref<1x64xf32, #tpu.memory_space<vmem>>, %arg6: memref<9x16x56xf32, #tpu.memory_space<vmem>>, %arg7: memref<9x64x64xf32, #tpu.memory_space<vmem>>, %arg8: memref<1x64xf32, #tpu.memory_space<vmem>>, %arg9: memref<9x2x16xf32, #tpu.memory_space<vmem>>, %arg10: memref<9x64x2xf32, #tpu.memory_space<vmem>>, %arg11: memref<1x2xf32, #tpu.memory_space<vmem>>, %arg12: memref<2x2xf32, #tpu.memory_space<vmem>>) attributes {dimension_semantics = [], scalar_prefetch = 0 : i64, scratch_operands = 0 : i64, tpu.core_type = #tpu.core_type<tc>} {
    %c0 = arith.constant 0 : index
    %c0_0 = arith.constant 0 : index
    %0 = vector.load %arg0[%c0, %c0_0] : memref<256x36xf32, #tpu.memory_space<vmem>>, vector<256x36xf32>
    %c0_1 = arith.constant 0 : index
    %c0_2 = arith.constant 0 : index
    %1 = vector.load %arg1[%c0_1, %c0_2] : memref<36x64xf32, #tpu.memory_space<vmem>>, vector<36x64xf32>
    %cst = arith.constant dense<0.000000e+00> : vector<256x64xf32>
    %2 = tpu.matmul %0, %1, %cst {dimension_numbers = #tpu.dot_dimension_numbers<[1], [0], [0], [1], [0, 0, 1, 1], [], []>} : vector<256x36xf32>, vector<36x64xf32>, vector<256x64xf32> -> vector<256x64xf32>
    %c0_3 = arith.constant 0 : index
    %c0_4 = arith.constant 0 : index
    %3 = vector.load %arg2[%c0_3, %c0_4] : memref<1x64xf32, #tpu.memory_space<vmem>>, vector<1x64xf32>
    %4 = vector.broadcast %3 : vector<1x64xf32> to vector<256x64xf32>
    %5 = arith.addf %2, %4 : vector<256x64xf32>
    %cst_5 = arith.constant 0.000000e+00 : f32
    %6 = vector.broadcast %cst_5 : f32 to vector<256x64xf32>
    %7 = arith.maximumf %5, %6 : vector<256x64xf32>
    %cst_6 = arith.constant 0.000000e+00 : f32
    %8 = vector.broadcast %cst_6 : f32 to vector<56x64xf32>
    %c0_7 = arith.constant 0 : index
    %c0_8 = arith.constant 0 : index
    %c0_9 = arith.constant 0 : index
    %9 = vector.load %arg3[%c0_7, %c0_8, %c0_9] : memref<9x56x256xf32, #tpu.memory_space<vmem>>, vector<1x56x256xf32>
    %10 = vector.shape_cast %9 : vector<1x56x256xf32> to vector<56x256xf32>
    %cst_10 = arith.constant dense<0.000000e+00> : vector<56x64xf32>
    %11 = tpu.matmul %10, %7, %cst_10 {dimension_numbers = #tpu.dot_dimension_numbers<[1], [0], [0], [1], [0, 0, 1, 1], [], []>} : vector<56x256xf32>, vector<256x64xf32>, vector<56x64xf32> -> vector<56x64xf32>
    %c0_11 = arith.constant 0 : index
    %c0_12 = arith.constant 0 : index
    %c0_13 = arith.constant 0 : index
    %12 = vector.load %arg4[%c0_11, %c0_12, %c0_13] : memref<9x64x64xf32, #tpu.memory_space<vmem>>, vector<1x64x64xf32>
    %13 = vector.shape_cast %12 : vector<1x64x64xf32> to vector<64x64xf32>
    %cst_14 = arith.constant dense<0.000000e+00> : vector<56x64xf32>
    %14 = tpu.matmul %11, %13, %cst_14 {dimension_numbers = #tpu.dot_dimension_numbers<[1], [0], [0], [1], [0, 0, 1, 1], [], []>} : vector<56x64xf32>, vector<64x64xf32>, vector<56x64xf32> -> vector<56x64xf32>
    %15 = arith.addf %8, %14 : vector<56x64xf32>
    %c1 = arith.constant 1 : index
    %c0_15 = arith.constant 0 : index
    %c0_16 = arith.constant 0 : index
    %16 = vector.load %arg3[%c1, %c0_15, %c0_16] : memref<9x56x256xf32, #tpu.memory_space<vmem>>, vector<1x56x256xf32>
    %17 = vector.shape_cast %16 : vector<1x56x256xf32> to vector<56x256xf32>
    %cst_17 = arith.constant dense<0.000000e+00> : vector<56x64xf32>
    %18 = tpu.matmul %17, %7, %cst_17 {dimension_numbers = #tpu.dot_dimension_numbers<[1], [0], [0], [1], [0, 0, 1, 1], [], []>} : vector<56x256xf32>, vector<256x64xf32>, vector<56x64xf32> -> vector<56x64xf32>
    %c1_18 = arith.constant 1 : index
    %c0_19 = arith.constant 0 : index
    %c0_20 = arith.constant 0 : index
    %19 = vector.load %arg4[%c1_18, %c0_19, %c0_20] : memref<9x64x64xf32, #tpu.memory_space<vmem>>, vector<1x64x64xf32>
    %20 = vector.shape_cast %19 : vector<1x64x64xf32> to vector<64x64xf32>
    %cst_21 = arith.constant dense<0.000000e+00> : vector<56x64xf32>
    %21 = tpu.matmul %18, %20, %cst_21 {dimension_numbers = #tpu.dot_dimension_numbers<[1], [0], [0], [1], [0, 0, 1, 1], [], []>} : vector<56x64xf32>, vector<64x64xf32>, vector<56x64xf32> -> vector<56x64xf32>
    %22 = arith.addf %15, %21 : vector<56x64xf32>
    %c2 = arith.constant 2 : index
    %c0_22 = arith.constant 0 : index
    %c0_23 = arith.constant 0 : index
    %23 = vector.load %arg3[%c2, %c0_22, %c0_23] : memref<9x56x256xf32, #tpu.memory_space<vmem>>, vector<1x56x256xf32>
    %24 = vector.shape_cast %23 : vector<1x56x256xf32> to vector<56x256xf32>
    %cst_24 = arith.constant dense<0.000000e+00> : vector<56x64xf32>
    %25 = tpu.matmul %24, %7, %cst_24 {dimension_numbers = #tpu.dot_dimension_numbers<[1], [0], [0], [1], [0, 0, 1, 1], [], []>} : vector<56x256xf32>, vector<256x64xf32>, vector<56x64xf32> -> vector<56x64xf32>
    %c2_25 = arith.constant 2 : index
    %c0_26 = arith.constant 0 : index
    %c0_27 = arith.constant 0 : index
    %26 = vector.load %arg4[%c2_25, %c0_26, %c0_27] : memref<9x64x64xf32, #tpu.memory_space<vmem>>, vector<1x64x64xf32>
    %27 = vector.shape_cast %26 : vector<1x64x64xf32> to vector<64x64xf32>
    %cst_28 = arith.constant dense<0.000000e+00> : vector<56x64xf32>
    %28 = tpu.matmul %25, %27, %cst_28 {dimension_numbers = #tpu.dot_dimension_numbers<[1], [0], [0], [1], [0, 0, 1, 1], [], []>} : vector<56x64xf32>, vector<64x64xf32>, vector<56x64xf32> -> vector<56x64xf32>
    %29 = arith.addf %22, %28 : vector<56x64xf32>
    %c3 = arith.constant 3 : index
    %c0_29 = arith.constant 0 : index
    %c0_30 = arith.constant 0 : index
    %30 = vector.load %arg3[%c3, %c0_29, %c0_30] : memref<9x56x256xf32, #tpu.memory_space<vmem>>, vector<1x56x256xf32>
    %31 = vector.shape_cast %30 : vector<1x56x256xf32> to vector<56x256xf32>
    %cst_31 = arith.constant dense<0.000000e+00> : vector<56x64xf32>
    %32 = tpu.matmul %31, %7, %cst_31 {dimension_numbers = #tpu.dot_dimension_numbers<[1], [0], [0], [1], [0, 0, 1, 1], [], []>} : vector<56x256xf32>, vector<256x64xf32>, vector<56x64xf32> -> vector<56x64xf32>
    %c3_32 = arith.constant 3 : index
    %c0_33 = arith.constant 0 : index
    %c0_34 = arith.constant 0 : index
    %33 = vector.load %arg4[%c3_32, %c0_33, %c0_34] : memref<9x64x64xf32, #tpu.memory_space<vmem>>, vector<1x64x64xf32>
    %34 = vector.shape_cast %33 : vector<1x64x64xf32> to vector<64x64xf32>
    %cst_35 = arith.constant dense<0.000000e+00> : vector<56x64xf32>
    %35 = tpu.matmul %32, %34, %cst_35 {dimension_numbers = #tpu.dot_dimension_numbers<[1], [0], [0], [1], [0, 0, 1, 1], [], []>} : vector<56x64xf32>, vector<64x64xf32>, vector<56x64xf32> -> vector<56x64xf32>
    %36 = arith.addf %29, %35 : vector<56x64xf32>
    %c4 = arith.constant 4 : index
    %c0_36 = arith.constant 0 : index
    %c0_37 = arith.constant 0 : index
    %37 = vector.load %arg3[%c4, %c0_36, %c0_37] : memref<9x56x256xf32, #tpu.memory_space<vmem>>, vector<1x56x256xf32>
    %38 = vector.shape_cast %37 : vector<1x56x256xf32> to vector<56x256xf32>
    %cst_38 = arith.constant dense<0.000000e+00> : vector<56x64xf32>
    %39 = tpu.matmul %38, %7, %cst_38 {dimension_numbers = #tpu.dot_dimension_numbers<[1], [0], [0], [1], [0, 0, 1, 1], [], []>} : vector<56x256xf32>, vector<256x64xf32>, vector<56x64xf32> -> vector<56x64xf32>
    %c4_39 = arith.constant 4 : index
    %c0_40 = arith.constant 0 : index
    %c0_41 = arith.constant 0 : index
    %40 = vector.load %arg4[%c4_39, %c0_40, %c0_41] : memref<9x64x64xf32, #tpu.memory_space<vmem>>, vector<1x64x64xf32>
    %41 = vector.shape_cast %40 : vector<1x64x64xf32> to vector<64x64xf32>
    %cst_42 = arith.constant dense<0.000000e+00> : vector<56x64xf32>
    %42 = tpu.matmul %39, %41, %cst_42 {dimension_numbers = #tpu.dot_dimension_numbers<[1], [0], [0], [1], [0, 0, 1, 1], [], []>} : vector<56x64xf32>, vector<64x64xf32>, vector<56x64xf32> -> vector<56x64xf32>
    %43 = arith.addf %36, %42 : vector<56x64xf32>
    %c5 = arith.constant 5 : index
    %c0_43 = arith.constant 0 : index
    %c0_44 = arith.constant 0 : index
    %44 = vector.load %arg3[%c5, %c0_43, %c0_44] : memref<9x56x256xf32, #tpu.memory_space<vmem>>, vector<1x56x256xf32>
    %45 = vector.shape_cast %44 : vector<1x56x256xf32> to vector<56x256xf32>
    %cst_45 = arith.constant dense<0.000000e+00> : vector<56x64xf32>
    %46 = tpu.matmul %45, %7, %cst_45 {dimension_numbers = #tpu.dot_dimension_numbers<[1], [0], [0], [1], [0, 0, 1, 1], [], []>} : vector<56x256xf32>, vector<256x64xf32>, vector<56x64xf32> -> vector<56x64xf32>
    %c5_46 = arith.constant 5 : index
    %c0_47 = arith.constant 0 : index
    %c0_48 = arith.constant 0 : index
    %47 = vector.load %arg4[%c5_46, %c0_47, %c0_48] : memref<9x64x64xf32, #tpu.memory_space<vmem>>, vector<1x64x64xf32>
    %48 = vector.shape_cast %47 : vector<1x64x64xf32> to vector<64x64xf32>
    %cst_49 = arith.constant dense<0.000000e+00> : vector<56x64xf32>
    %49 = tpu.matmul %46, %48, %cst_49 {dimension_numbers = #tpu.dot_dimension_numbers<[1], [0], [0], [1], [0, 0, 1, 1], [], []>} : vector<56x64xf32>, vector<64x64xf32>, vector<56x64xf32> -> vector<56x64xf32>
    %50 = arith.addf %43, %49 : vector<56x64xf32>
    %c6 = arith.constant 6 : index
    %c0_50 = arith.constant 0 : index
    %c0_51 = arith.constant 0 : index
    %51 = vector.load %arg3[%c6, %c0_50, %c0_51] : memref<9x56x256xf32, #tpu.memory_space<vmem>>, vector<1x56x256xf32>
    %52 = vector.shape_cast %51 : vector<1x56x256xf32> to vector<56x256xf32>
    %cst_52 = arith.constant dense<0.000000e+00> : vector<56x64xf32>
    %53 = tpu.matmul %52, %7, %cst_52 {dimension_numbers = #tpu.dot_dimension_numbers<[1], [0], [0], [1], [0, 0, 1, 1], [], []>} : vector<56x256xf32>, vector<256x64xf32>, vector<56x64xf32> -> vector<56x64xf32>
    %c6_53 = arith.constant 6 : index
    %c0_54 = arith.constant 0 : index
    %c0_55 = arith.constant 0 : index
    %54 = vector.load %arg4[%c6_53, %c0_54, %c0_55] : memref<9x64x64xf32, #tpu.memory_space<vmem>>, vector<1x64x64xf32>
    %55 = vector.shape_cast %54 : vector<1x64x64xf32> to vector<64x64xf32>
    %cst_56 = arith.constant dense<0.000000e+00> : vector<56x64xf32>
    %56 = tpu.matmul %53, %55, %cst_56 {dimension_numbers = #tpu.dot_dimension_numbers<[1], [0], [0], [1], [0, 0, 1, 1], [], []>} : vector<56x64xf32>, vector<64x64xf32>, vector<56x64xf32> -> vector<56x64xf32>
    %57 = arith.addf %50, %56 : vector<56x64xf32>
    %c7 = arith.constant 7 : index
    %c0_57 = arith.constant 0 : index
    %c0_58 = arith.constant 0 : index
    %58 = vector.load %arg3[%c7, %c0_57, %c0_58] : memref<9x56x256xf32, #tpu.memory_space<vmem>>, vector<1x56x256xf32>
    %59 = vector.shape_cast %58 : vector<1x56x256xf32> to vector<56x256xf32>
    %cst_59 = arith.constant dense<0.000000e+00> : vector<56x64xf32>
    %60 = tpu.matmul %59, %7, %cst_59 {dimension_numbers = #tpu.dot_dimension_numbers<[1], [0], [0], [1], [0, 0, 1, 1], [], []>} : vector<56x256xf32>, vector<256x64xf32>, vector<56x64xf32> -> vector<56x64xf32>
    %c7_60 = arith.constant 7 : index
    %c0_61 = arith.constant 0 : index
    %c0_62 = arith.constant 0 : index
    %61 = vector.load %arg4[%c7_60, %c0_61, %c0_62] : memref<9x64x64xf32, #tpu.memory_space<vmem>>, vector<1x64x64xf32>
    %62 = vector.shape_cast %61 : vector<1x64x64xf32> to vector<64x64xf32>
    %cst_63 = arith.constant dense<0.000000e+00> : vector<56x64xf32>
    %63 = tpu.matmul %60, %62, %cst_63 {dimension_numbers = #tpu.dot_dimension_numbers<[1], [0], [0], [1], [0, 0, 1, 1], [], []>} : vector<56x64xf32>, vector<64x64xf32>, vector<56x64xf32> -> vector<56x64xf32>
    %64 = arith.addf %57, %63 : vector<56x64xf32>
    %c8 = arith.constant 8 : index
    %c0_64 = arith.constant 0 : index
    %c0_65 = arith.constant 0 : index
    %65 = vector.load %arg3[%c8, %c0_64, %c0_65] : memref<9x56x256xf32, #tpu.memory_space<vmem>>, vector<1x56x256xf32>
    %66 = vector.shape_cast %65 : vector<1x56x256xf32> to vector<56x256xf32>
    %cst_66 = arith.constant dense<0.000000e+00> : vector<56x64xf32>
    %67 = tpu.matmul %66, %7, %cst_66 {dimension_numbers = #tpu.dot_dimension_numbers<[1], [0], [0], [1], [0, 0, 1, 1], [], []>} : vector<56x256xf32>, vector<256x64xf32>, vector<56x64xf32> -> vector<56x64xf32>
    %c8_67 = arith.constant 8 : index
    %c0_68 = arith.constant 0 : index
    %c0_69 = arith.constant 0 : index
    %68 = vector.load %arg4[%c8_67, %c0_68, %c0_69] : memref<9x64x64xf32, #tpu.memory_space<vmem>>, vector<1x64x64xf32>
    %69 = vector.shape_cast %68 : vector<1x64x64xf32> to vector<64x64xf32>
    %cst_70 = arith.constant dense<0.000000e+00> : vector<56x64xf32>
    %70 = tpu.matmul %67, %69, %cst_70 {dimension_numbers = #tpu.dot_dimension_numbers<[1], [0], [0], [1], [0, 0, 1, 1], [], []>} : vector<56x64xf32>, vector<64x64xf32>, vector<56x64xf32> -> vector<56x64xf32>
    %71 = arith.addf %64, %70 : vector<56x64xf32>
    %c0_71 = arith.constant 0 : index
    %c0_72 = arith.constant 0 : index
    %72 = vector.load %arg5[%c0_71, %c0_72] : memref<1x64xf32, #tpu.memory_space<vmem>>, vector<1x64xf32>
    %73 = vector.broadcast %72 : vector<1x64xf32> to vector<56x64xf32>
    %74 = arith.addf %71, %73 : vector<56x64xf32>
    %cst_73 = arith.constant 0.000000e+00 : f32
    %75 = vector.broadcast %cst_73 : f32 to vector<56x64xf32>
    %76 = arith.maximumf %74, %75 : vector<56x64xf32>
    %cst_74 = arith.constant 0.000000e+00 : f32
    %77 = vector.broadcast %cst_74 : f32 to vector<16x64xf32>
    %c0_75 = arith.constant 0 : index
    %c0_76 = arith.constant 0 : index
    %c0_77 = arith.constant 0 : index
    %78 = vector.load %arg6[%c0_75, %c0_76, %c0_77] : memref<9x16x56xf32, #tpu.memory_space<vmem>>, vector<1x16x56xf32>
    %79 = vector.shape_cast %78 : vector<1x16x56xf32> to vector<16x56xf32>
    %cst_78 = arith.constant dense<0.000000e+00> : vector<16x64xf32>
    %80 = tpu.matmul %79, %76, %cst_78 {dimension_numbers = #tpu.dot_dimension_numbers<[1], [0], [0], [1], [0, 0, 1, 1], [], []>} : vector<16x56xf32>, vector<56x64xf32>, vector<16x64xf32> -> vector<16x64xf32>
    %c0_79 = arith.constant 0 : index
    %c0_80 = arith.constant 0 : index
    %c0_81 = arith.constant 0 : index
    %81 = vector.load %arg7[%c0_79, %c0_80, %c0_81] : memref<9x64x64xf32, #tpu.memory_space<vmem>>, vector<1x64x64xf32>
    %82 = vector.shape_cast %81 : vector<1x64x64xf32> to vector<64x64xf32>
    %cst_82 = arith.constant dense<0.000000e+00> : vector<16x64xf32>
    %83 = tpu.matmul %80, %82, %cst_82 {dimension_numbers = #tpu.dot_dimension_numbers<[1], [0], [0], [1], [0, 0, 1, 1], [], []>} : vector<16x64xf32>, vector<64x64xf32>, vector<16x64xf32> -> vector<16x64xf32>
    %84 = arith.addf %77, %83 : vector<16x64xf32>
    %c1_83 = arith.constant 1 : index
    %c0_84 = arith.constant 0 : index
    %c0_85 = arith.constant 0 : index
    %85 = vector.load %arg6[%c1_83, %c0_84, %c0_85] : memref<9x16x56xf32, #tpu.memory_space<vmem>>, vector<1x16x56xf32>
    %86 = vector.shape_cast %85 : vector<1x16x56xf32> to vector<16x56xf32>
    %cst_86 = arith.constant dense<0.000000e+00> : vector<16x64xf32>
    %87 = tpu.matmul %86, %76, %cst_86 {dimension_numbers = #tpu.dot_dimension_numbers<[1], [0], [0], [1], [0, 0, 1, 1], [], []>} : vector<16x56xf32>, vector<56x64xf32>, vector<16x64xf32> -> vector<16x64xf32>
    %c1_87 = arith.constant 1 : index
    %c0_88 = arith.constant 0 : index
    %c0_89 = arith.constant 0 : index
    %88 = vector.load %arg7[%c1_87, %c0_88, %c0_89] : memref<9x64x64xf32, #tpu.memory_space<vmem>>, vector<1x64x64xf32>
    %89 = vector.shape_cast %88 : vector<1x64x64xf32> to vector<64x64xf32>
    %cst_90 = arith.constant dense<0.000000e+00> : vector<16x64xf32>
    %90 = tpu.matmul %87, %89, %cst_90 {dimension_numbers = #tpu.dot_dimension_numbers<[1], [0], [0], [1], [0, 0, 1, 1], [], []>} : vector<16x64xf32>, vector<64x64xf32>, vector<16x64xf32> -> vector<16x64xf32>
    %91 = arith.addf %84, %90 : vector<16x64xf32>
    %c2_91 = arith.constant 2 : index
    %c0_92 = arith.constant 0 : index
    %c0_93 = arith.constant 0 : index
    %92 = vector.load %arg6[%c2_91, %c0_92, %c0_93] : memref<9x16x56xf32, #tpu.memory_space<vmem>>, vector<1x16x56xf32>
    %93 = vector.shape_cast %92 : vector<1x16x56xf32> to vector<16x56xf32>
    %cst_94 = arith.constant dense<0.000000e+00> : vector<16x64xf32>
    %94 = tpu.matmul %93, %76, %cst_94 {dimension_numbers = #tpu.dot_dimension_numbers<[1], [0], [0], [1], [0, 0, 1, 1], [], []>} : vector<16x56xf32>, vector<56x64xf32>, vector<16x64xf32> -> vector<16x64xf32>
    %c2_95 = arith.constant 2 : index
    %c0_96 = arith.constant 0 : index
    %c0_97 = arith.constant 0 : index
    %95 = vector.load %arg7[%c2_95, %c0_96, %c0_97] : memref<9x64x64xf32, #tpu.memory_space<vmem>>, vector<1x64x64xf32>
    %96 = vector.shape_cast %95 : vector<1x64x64xf32> to vector<64x64xf32>
    %cst_98 = arith.constant dense<0.000000e+00> : vector<16x64xf32>
    %97 = tpu.matmul %94, %96, %cst_98 {dimension_numbers = #tpu.dot_dimension_numbers<[1], [0], [0], [1], [0, 0, 1, 1], [], []>} : vector<16x64xf32>, vector<64x64xf32>, vector<16x64xf32> -> vector<16x64xf32>
    %98 = arith.addf %91, %97 : vector<16x64xf32>
    %c3_99 = arith.constant 3 : index
    %c0_100 = arith.constant 0 : index
    %c0_101 = arith.constant 0 : index
    %99 = vector.load %arg6[%c3_99, %c0_100, %c0_101] : memref<9x16x56xf32, #tpu.memory_space<vmem>>, vector<1x16x56xf32>
    %100 = vector.shape_cast %99 : vector<1x16x56xf32> to vector<16x56xf32>
    %cst_102 = arith.constant dense<0.000000e+00> : vector<16x64xf32>
    %101 = tpu.matmul %100, %76, %cst_102 {dimension_numbers = #tpu.dot_dimension_numbers<[1], [0], [0], [1], [0, 0, 1, 1], [], []>} : vector<16x56xf32>, vector<56x64xf32>, vector<16x64xf32> -> vector<16x64xf32>
    %c3_103 = arith.constant 3 : index
    %c0_104 = arith.constant 0 : index
    %c0_105 = arith.constant 0 : index
    %102 = vector.load %arg7[%c3_103, %c0_104, %c0_105] : memref<9x64x64xf32, #tpu.memory_space<vmem>>, vector<1x64x64xf32>
    %103 = vector.shape_cast %102 : vector<1x64x64xf32> to vector<64x64xf32>
    %cst_106 = arith.constant dense<0.000000e+00> : vector<16x64xf32>
    %104 = tpu.matmul %101, %103, %cst_106 {dimension_numbers = #tpu.dot_dimension_numbers<[1], [0], [0], [1], [0, 0, 1, 1], [], []>} : vector<16x64xf32>, vector<64x64xf32>, vector<16x64xf32> -> vector<16x64xf32>
    %105 = arith.addf %98, %104 : vector<16x64xf32>
    %c4_107 = arith.constant 4 : index
    %c0_108 = arith.constant 0 : index
    %c0_109 = arith.constant 0 : index
    %106 = vector.load %arg6[%c4_107, %c0_108, %c0_109] : memref<9x16x56xf32, #tpu.memory_space<vmem>>, vector<1x16x56xf32>
    %107 = vector.shape_cast %106 : vector<1x16x56xf32> to vector<16x56xf32>
    %cst_110 = arith.constant dense<0.000000e+00> : vector<16x64xf32>
    %108 = tpu.matmul %107, %76, %cst_110 {dimension_numbers = #tpu.dot_dimension_numbers<[1], [0], [0], [1], [0, 0, 1, 1], [], []>} : vector<16x56xf32>, vector<56x64xf32>, vector<16x64xf32> -> vector<16x64xf32>
    %c4_111 = arith.constant 4 : index
    %c0_112 = arith.constant 0 : index
    %c0_113 = arith.constant 0 : index
    %109 = vector.load %arg7[%c4_111, %c0_112, %c0_113] : memref<9x64x64xf32, #tpu.memory_space<vmem>>, vector<1x64x64xf32>
    %110 = vector.shape_cast %109 : vector<1x64x64xf32> to vector<64x64xf32>
    %cst_114 = arith.constant dense<0.000000e+00> : vector<16x64xf32>
    %111 = tpu.matmul %108, %110, %cst_114 {dimension_numbers = #tpu.dot_dimension_numbers<[1], [0], [0], [1], [0, 0, 1, 1], [], []>} : vector<16x64xf32>, vector<64x64xf32>, vector<16x64xf32> -> vector<16x64xf32>
    %112 = arith.addf %105, %111 : vector<16x64xf32>
    %c5_115 = arith.constant 5 : index
    %c0_116 = arith.constant 0 : index
    %c0_117 = arith.constant 0 : index
    %113 = vector.load %arg6[%c5_115, %c0_116, %c0_117] : memref<9x16x56xf32, #tpu.memory_space<vmem>>, vector<1x16x56xf32>
    %114 = vector.shape_cast %113 : vector<1x16x56xf32> to vector<16x56xf32>
    %cst_118 = arith.constant dense<0.000000e+00> : vector<16x64xf32>
    %115 = tpu.matmul %114, %76, %cst_118 {dimension_numbers = #tpu.dot_dimension_numbers<[1], [0], [0], [1], [0, 0, 1, 1], [], []>} : vector<16x56xf32>, vector<56x64xf32>, vector<16x64xf32> -> vector<16x64xf32>
    %c5_119 = arith.constant 5 : index
    %c0_120 = arith.constant 0 : index
    %c0_121 = arith.constant 0 : index
    %116 = vector.load %arg7[%c5_119, %c0_120, %c0_121] : memref<9x64x64xf32, #tpu.memory_space<vmem>>, vector<1x64x64xf32>
    %117 = vector.shape_cast %116 : vector<1x64x64xf32> to vector<64x64xf32>
    %cst_122 = arith.constant dense<0.000000e+00> : vector<16x64xf32>
    %118 = tpu.matmul %115, %117, %cst_122 {dimension_numbers = #tpu.dot_dimension_numbers<[1], [0], [0], [1], [0, 0, 1, 1], [], []>} : vector<16x64xf32>, vector<64x64xf32>, vector<16x64xf32> -> vector<16x64xf32>
    %119 = arith.addf %112, %118 : vector<16x64xf32>
    %c6_123 = arith.constant 6 : index
    %c0_124 = arith.constant 0 : index
    %c0_125 = arith.constant 0 : index
    %120 = vector.load %arg6[%c6_123, %c0_124, %c0_125] : memref<9x16x56xf32, #tpu.memory_space<vmem>>, vector<1x16x56xf32>
    %121 = vector.shape_cast %120 : vector<1x16x56xf32> to vector<16x56xf32>
    %cst_126 = arith.constant dense<0.000000e+00> : vector<16x64xf32>
    %122 = tpu.matmul %121, %76, %cst_126 {dimension_numbers = #tpu.dot_dimension_numbers<[1], [0], [0], [1], [0, 0, 1, 1], [], []>} : vector<16x56xf32>, vector<56x64xf32>, vector<16x64xf32> -> vector<16x64xf32>
    %c6_127 = arith.constant 6 : index
    %c0_128 = arith.constant 0 : index
    %c0_129 = arith.constant 0 : index
    %123 = vector.load %arg7[%c6_127, %c0_128, %c0_129] : memref<9x64x64xf32, #tpu.memory_space<vmem>>, vector<1x64x64xf32>
    %124 = vector.shape_cast %123 : vector<1x64x64xf32> to vector<64x64xf32>
    %cst_130 = arith.constant dense<0.000000e+00> : vector<16x64xf32>
    %125 = tpu.matmul %122, %124, %cst_130 {dimension_numbers = #tpu.dot_dimension_numbers<[1], [0], [0], [1], [0, 0, 1, 1], [], []>} : vector<16x64xf32>, vector<64x64xf32>, vector<16x64xf32> -> vector<16x64xf32>
    %126 = arith.addf %119, %125 : vector<16x64xf32>
    %c7_131 = arith.constant 7 : index
    %c0_132 = arith.constant 0 : index
    %c0_133 = arith.constant 0 : index
    %127 = vector.load %arg6[%c7_131, %c0_132, %c0_133] : memref<9x16x56xf32, #tpu.memory_space<vmem>>, vector<1x16x56xf32>
    %128 = vector.shape_cast %127 : vector<1x16x56xf32> to vector<16x56xf32>
    %cst_134 = arith.constant dense<0.000000e+00> : vector<16x64xf32>
    %129 = tpu.matmul %128, %76, %cst_134 {dimension_numbers = #tpu.dot_dimension_numbers<[1], [0], [0], [1], [0, 0, 1, 1], [], []>} : vector<16x56xf32>, vector<56x64xf32>, vector<16x64xf32> -> vector<16x64xf32>
    %c7_135 = arith.constant 7 : index
    %c0_136 = arith.constant 0 : index
    %c0_137 = arith.constant 0 : index
    %130 = vector.load %arg7[%c7_135, %c0_136, %c0_137] : memref<9x64x64xf32, #tpu.memory_space<vmem>>, vector<1x64x64xf32>
    %131 = vector.shape_cast %130 : vector<1x64x64xf32> to vector<64x64xf32>
    %cst_138 = arith.constant dense<0.000000e+00> : vector<16x64xf32>
    %132 = tpu.matmul %129, %131, %cst_138 {dimension_numbers = #tpu.dot_dimension_numbers<[1], [0], [0], [1], [0, 0, 1, 1], [], []>} : vector<16x64xf32>, vector<64x64xf32>, vector<16x64xf32> -> vector<16x64xf32>
    %133 = arith.addf %126, %132 : vector<16x64xf32>
    %c8_139 = arith.constant 8 : index
    %c0_140 = arith.constant 0 : index
    %c0_141 = arith.constant 0 : index
    %134 = vector.load %arg6[%c8_139, %c0_140, %c0_141] : memref<9x16x56xf32, #tpu.memory_space<vmem>>, vector<1x16x56xf32>
    %135 = vector.shape_cast %134 : vector<1x16x56xf32> to vector<16x56xf32>
    %cst_142 = arith.constant dense<0.000000e+00> : vector<16x64xf32>
    %136 = tpu.matmul %135, %76, %cst_142 {dimension_numbers = #tpu.dot_dimension_numbers<[1], [0], [0], [1], [0, 0, 1, 1], [], []>} : vector<16x56xf32>, vector<56x64xf32>, vector<16x64xf32> -> vector<16x64xf32>
    %c8_143 = arith.constant 8 : index
    %c0_144 = arith.constant 0 : index
    %c0_145 = arith.constant 0 : index
    %137 = vector.load %arg7[%c8_143, %c0_144, %c0_145] : memref<9x64x64xf32, #tpu.memory_space<vmem>>, vector<1x64x64xf32>
    %138 = vector.shape_cast %137 : vector<1x64x64xf32> to vector<64x64xf32>
    %cst_146 = arith.constant dense<0.000000e+00> : vector<16x64xf32>
    %139 = tpu.matmul %136, %138, %cst_146 {dimension_numbers = #tpu.dot_dimension_numbers<[1], [0], [0], [1], [0, 0, 1, 1], [], []>} : vector<16x64xf32>, vector<64x64xf32>, vector<16x64xf32> -> vector<16x64xf32>
    %140 = arith.addf %133, %139 : vector<16x64xf32>
    %c0_147 = arith.constant 0 : index
    %c0_148 = arith.constant 0 : index
    %141 = vector.load %arg8[%c0_147, %c0_148] : memref<1x64xf32, #tpu.memory_space<vmem>>, vector<1x64xf32>
    %142 = vector.broadcast %141 : vector<1x64xf32> to vector<16x64xf32>
    %143 = arith.addf %140, %142 : vector<16x64xf32>
    %cst_149 = arith.constant 0.000000e+00 : f32
    %144 = vector.broadcast %cst_149 : f32 to vector<16x64xf32>
    %145 = arith.maximumf %143, %144 : vector<16x64xf32>
    %cst_150 = arith.constant 0.000000e+00 : f32
    %146 = vector.broadcast %cst_150 : f32 to vector<2x2xf32>
    %c0_151 = arith.constant 0 : index
    %c0_152 = arith.constant 0 : index
    %c0_153 = arith.constant 0 : index
    %147 = vector.load %arg9[%c0_151, %c0_152, %c0_153] : memref<9x2x16xf32, #tpu.memory_space<vmem>>, vector<1x2x16xf32>
    %148 = vector.shape_cast %147 : vector<1x2x16xf32> to vector<2x16xf32>
    %cst_154 = arith.constant dense<0.000000e+00> : vector<2x64xf32>
    %149 = tpu.matmul %148, %145, %cst_154 {dimension_numbers = #tpu.dot_dimension_numbers<[1], [0], [0], [1], [0, 0, 1, 1], [], []>} : vector<2x16xf32>, vector<16x64xf32>, vector<2x64xf32> -> vector<2x64xf32>
    %c0_155 = arith.constant 0 : index
    %c0_156 = arith.constant 0 : index
    %c0_157 = arith.constant 0 : index
    %150 = vector.load %arg10[%c0_155, %c0_156, %c0_157] : memref<9x64x2xf32, #tpu.memory_space<vmem>>, vector<1x64x2xf32>
    %151 = vector.shape_cast %150 : vector<1x64x2xf32> to vector<64x2xf32>
    %cst_158 = arith.constant dense<0.000000e+00> : vector<2x2xf32>
    %152 = tpu.matmul %149, %151, %cst_158 {dimension_numbers = #tpu.dot_dimension_numbers<[1], [0], [0], [1], [0, 0, 1, 1], [], []>} : vector<2x64xf32>, vector<64x2xf32>, vector<2x2xf32> -> vector<2x2xf32>
    %153 = arith.addf %146, %152 : vector<2x2xf32>
    %c1_159 = arith.constant 1 : index
    %c0_160 = arith.constant 0 : index
    %c0_161 = arith.constant 0 : index
    %154 = vector.load %arg9[%c1_159, %c0_160, %c0_161] : memref<9x2x16xf32, #tpu.memory_space<vmem>>, vector<1x2x16xf32>
    %155 = vector.shape_cast %154 : vector<1x2x16xf32> to vector<2x16xf32>
    %cst_162 = arith.constant dense<0.000000e+00> : vector<2x64xf32>
    %156 = tpu.matmul %155, %145, %cst_162 {dimension_numbers = #tpu.dot_dimension_numbers<[1], [0], [0], [1], [0, 0, 1, 1], [], []>} : vector<2x16xf32>, vector<16x64xf32>, vector<2x64xf32> -> vector<2x64xf32>
    %c1_163 = arith.constant 1 : index
    %c0_164 = arith.constant 0 : index
    %c0_165 = arith.constant 0 : index
    %157 = vector.load %arg10[%c1_163, %c0_164, %c0_165] : memref<9x64x2xf32, #tpu.memory_space<vmem>>, vector<1x64x2xf32>
    %158 = vector.shape_cast %157 : vector<1x64x2xf32> to vector<64x2xf32>
    %cst_166 = arith.constant dense<0.000000e+00> : vector<2x2xf32>
    %159 = tpu.matmul %156, %158, %cst_166 {dimension_numbers = #tpu.dot_dimension_numbers<[1], [0], [0], [1], [0, 0, 1, 1], [], []>} : vector<2x64xf32>, vector<64x2xf32>, vector<2x2xf32> -> vector<2x2xf32>
    %160 = arith.addf %153, %159 : vector<2x2xf32>
    %c2_167 = arith.constant 2 : index
    %c0_168 = arith.constant 0 : index
    %c0_169 = arith.constant 0 : index
    %161 = vector.load %arg9[%c2_167, %c0_168, %c0_169] : memref<9x2x16xf32, #tpu.memory_space<vmem>>, vector<1x2x16xf32>
    %162 = vector.shape_cast %161 : vector<1x2x16xf32> to vector<2x16xf32>
    %cst_170 = arith.constant dense<0.000000e+00> : vector<2x64xf32>
    %163 = tpu.matmul %162, %145, %cst_170 {dimension_numbers = #tpu.dot_dimension_numbers<[1], [0], [0], [1], [0, 0, 1, 1], [], []>} : vector<2x16xf32>, vector<16x64xf32>, vector<2x64xf32> -> vector<2x64xf32>
    %c2_171 = arith.constant 2 : index
    %c0_172 = arith.constant 0 : index
    %c0_173 = arith.constant 0 : index
    %164 = vector.load %arg10[%c2_171, %c0_172, %c0_173] : memref<9x64x2xf32, #tpu.memory_space<vmem>>, vector<1x64x2xf32>
    %165 = vector.shape_cast %164 : vector<1x64x2xf32> to vector<64x2xf32>
    %cst_174 = arith.constant dense<0.000000e+00> : vector<2x2xf32>
    %166 = tpu.matmul %163, %165, %cst_174 {dimension_numbers = #tpu.dot_dimension_numbers<[1], [0], [0], [1], [0, 0, 1, 1], [], []>} : vector<2x64xf32>, vector<64x2xf32>, vector<2x2xf32> -> vector<2x2xf32>
    %167 = arith.addf %160, %166 : vector<2x2xf32>
    %c3_175 = arith.constant 3 : index
    %c0_176 = arith.constant 0 : index
    %c0_177 = arith.constant 0 : index
    %168 = vector.load %arg9[%c3_175, %c0_176, %c0_177] : memref<9x2x16xf32, #tpu.memory_space<vmem>>, vector<1x2x16xf32>
    %169 = vector.shape_cast %168 : vector<1x2x16xf32> to vector<2x16xf32>
    %cst_178 = arith.constant dense<0.000000e+00> : vector<2x64xf32>
    %170 = tpu.matmul %169, %145, %cst_178 {dimension_numbers = #tpu.dot_dimension_numbers<[1], [0], [0], [1], [0, 0, 1, 1], [], []>} : vector<2x16xf32>, vector<16x64xf32>, vector<2x64xf32> -> vector<2x64xf32>
    %c3_179 = arith.constant 3 : index
    %c0_180 = arith.constant 0 : index
    %c0_181 = arith.constant 0 : index
    %171 = vector.load %arg10[%c3_179, %c0_180, %c0_181] : memref<9x64x2xf32, #tpu.memory_space<vmem>>, vector<1x64x2xf32>
    %172 = vector.shape_cast %171 : vector<1x64x2xf32> to vector<64x2xf32>
    %cst_182 = arith.constant dense<0.000000e+00> : vector<2x2xf32>
    %173 = tpu.matmul %170, %172, %cst_182 {dimension_numbers = #tpu.dot_dimension_numbers<[1], [0], [0], [1], [0, 0, 1, 1], [], []>} : vector<2x64xf32>, vector<64x2xf32>, vector<2x2xf32> -> vector<2x2xf32>
    %174 = arith.addf %167, %173 : vector<2x2xf32>
    %c4_183 = arith.constant 4 : index
    %c0_184 = arith.constant 0 : index
    %c0_185 = arith.constant 0 : index
    %175 = vector.load %arg9[%c4_183, %c0_184, %c0_185] : memref<9x2x16xf32, #tpu.memory_space<vmem>>, vector<1x2x16xf32>
    %176 = vector.shape_cast %175 : vector<1x2x16xf32> to vector<2x16xf32>
    %cst_186 = arith.constant dense<0.000000e+00> : vector<2x64xf32>
    %177 = tpu.matmul %176, %145, %cst_186 {dimension_numbers = #tpu.dot_dimension_numbers<[1], [0], [0], [1], [0, 0, 1, 1], [], []>} : vector<2x16xf32>, vector<16x64xf32>, vector<2x64xf32> -> vector<2x64xf32>
    %c4_187 = arith.constant 4 : index
    %c0_188 = arith.constant 0 : index
    %c0_189 = arith.constant 0 : index
    %178 = vector.load %arg10[%c4_187, %c0_188, %c0_189] : memref<9x64x2xf32, #tpu.memory_space<vmem>>, vector<1x64x2xf32>
    %179 = vector.shape_cast %178 : vector<1x64x2xf32> to vector<64x2xf32>
    %cst_190 = arith.constant dense<0.000000e+00> : vector<2x2xf32>
    %180 = tpu.matmul %177, %179, %cst_190 {dimension_numbers = #tpu.dot_dimension_numbers<[1], [0], [0], [1], [0, 0, 1, 1], [], []>} : vector<2x64xf32>, vector<64x2xf32>, vector<2x2xf32> -> vector<2x2xf32>
    %181 = arith.addf %174, %180 : vector<2x2xf32>
    %c5_191 = arith.constant 5 : index
    %c0_192 = arith.constant 0 : index
    %c0_193 = arith.constant 0 : index
    %182 = vector.load %arg9[%c5_191, %c0_192, %c0_193] : memref<9x2x16xf32, #tpu.memory_space<vmem>>, vector<1x2x16xf32>
    %183 = vector.shape_cast %182 : vector<1x2x16xf32> to vector<2x16xf32>
    %cst_194 = arith.constant dense<0.000000e+00> : vector<2x64xf32>
    %184 = tpu.matmul %183, %145, %cst_194 {dimension_numbers = #tpu.dot_dimension_numbers<[1], [0], [0], [1], [0, 0, 1, 1], [], []>} : vector<2x16xf32>, vector<16x64xf32>, vector<2x64xf32> -> vector<2x64xf32>
    %c5_195 = arith.constant 5 : index
    %c0_196 = arith.constant 0 : index
    %c0_197 = arith.constant 0 : index
    %185 = vector.load %arg10[%c5_195, %c0_196, %c0_197] : memref<9x64x2xf32, #tpu.memory_space<vmem>>, vector<1x64x2xf32>
    %186 = vector.shape_cast %185 : vector<1x64x2xf32> to vector<64x2xf32>
    %cst_198 = arith.constant dense<0.000000e+00> : vector<2x2xf32>
    %187 = tpu.matmul %184, %186, %cst_198 {dimension_numbers = #tpu.dot_dimension_numbers<[1], [0], [0], [1], [0, 0, 1, 1], [], []>} : vector<2x64xf32>, vector<64x2xf32>, vector<2x2xf32> -> vector<2x2xf32>
    %188 = arith.addf %181, %187 : vector<2x2xf32>
    %c6_199 = arith.constant 6 : index
    %c0_200 = arith.constant 0 : index
    %c0_201 = arith.constant 0 : index
    %189 = vector.load %arg9[%c6_199, %c0_200, %c0_201] : memref<9x2x16xf32, #tpu.memory_space<vmem>>, vector<1x2x16xf32>
    %190 = vector.shape_cast %189 : vector<1x2x16xf32> to vector<2x16xf32>
    %cst_202 = arith.constant dense<0.000000e+00> : vector<2x64xf32>
    %191 = tpu.matmul %190, %145, %cst_202 {dimension_numbers = #tpu.dot_dimension_numbers<[1], [0], [0], [1], [0, 0, 1, 1], [], []>} : vector<2x16xf32>, vector<16x64xf32>, vector<2x64xf32> -> vector<2x64xf32>
    %c6_203 = arith.constant 6 : index
    %c0_204 = arith.constant 0 : index
    %c0_205 = arith.constant 0 : index
    %192 = vector.load %arg10[%c6_203, %c0_204, %c0_205] : memref<9x64x2xf32, #tpu.memory_space<vmem>>, vector<1x64x2xf32>
    %193 = vector.shape_cast %192 : vector<1x64x2xf32> to vector<64x2xf32>
    %cst_206 = arith.constant dense<0.000000e+00> : vector<2x2xf32>
    %194 = tpu.matmul %191, %193, %cst_206 {dimension_numbers = #tpu.dot_dimension_numbers<[1], [0], [0], [1], [0, 0, 1, 1], [], []>} : vector<2x64xf32>, vector<64x2xf32>, vector<2x2xf32> -> vector<2x2xf32>
    %195 = arith.addf %188, %194 : vector<2x2xf32>
    %c7_207 = arith.constant 7 : index
    %c0_208 = arith.constant 0 : index
    %c0_209 = arith.constant 0 : index
    %196 = vector.load %arg9[%c7_207, %c0_208, %c0_209] : memref<9x2x16xf32, #tpu.memory_space<vmem>>, vector<1x2x16xf32>
    %197 = vector.shape_cast %196 : vector<1x2x16xf32> to vector<2x16xf32>
    %cst_210 = arith.constant dense<0.000000e+00> : vector<2x64xf32>
    %198 = tpu.matmul %197, %145, %cst_210 {dimension_numbers = #tpu.dot_dimension_numbers<[1], [0], [0], [1], [0, 0, 1, 1], [], []>} : vector<2x16xf32>, vector<16x64xf32>, vector<2x64xf32> -> vector<2x64xf32>
    %c7_211 = arith.constant 7 : index
    %c0_212 = arith.constant 0 : index
    %c0_213 = arith.constant 0 : index
    %199 = vector.load %arg10[%c7_211, %c0_212, %c0_213] : memref<9x64x2xf32, #tpu.memory_space<vmem>>, vector<1x64x2xf32>
    %200 = vector.shape_cast %199 : vector<1x64x2xf32> to vector<64x2xf32>
    %cst_214 = arith.constant dense<0.000000e+00> : vector<2x2xf32>
    %201 = tpu.matmul %198, %200, %cst_214 {dimension_numbers = #tpu.dot_dimension_numbers<[1], [0], [0], [1], [0, 0, 1, 1], [], []>} : vector<2x64xf32>, vector<64x2xf32>, vector<2x2xf32> -> vector<2x2xf32>
    %202 = arith.addf %195, %201 : vector<2x2xf32>
    %c8_215 = arith.constant 8 : index
    %c0_216 = arith.constant 0 : index
    %c0_217 = arith.constant 0 : index
    %203 = vector.load %arg9[%c8_215, %c0_216, %c0_217] : memref<9x2x16xf32, #tpu.memory_space<vmem>>, vector<1x2x16xf32>
    %204 = vector.shape_cast %203 : vector<1x2x16xf32> to vector<2x16xf32>
    %cst_218 = arith.constant dense<0.000000e+00> : vector<2x64xf32>
    %205 = tpu.matmul %204, %145, %cst_218 {dimension_numbers = #tpu.dot_dimension_numbers<[1], [0], [0], [1], [0, 0, 1, 1], [], []>} : vector<2x16xf32>, vector<16x64xf32>, vector<2x64xf32> -> vector<2x64xf32>
    %c8_219 = arith.constant 8 : index
    %c0_220 = arith.constant 0 : index
    %c0_221 = arith.constant 0 : index
    %206 = vector.load %arg10[%c8_219, %c0_220, %c0_221] : memref<9x64x2xf32, #tpu.memory_space<vmem>>, vector<1x64x2xf32>
    %207 = vector.shape_cast %206 : vector<1x64x2xf32> to vector<64x2xf32>
    %cst_222 = arith.constant dense<0.000000e+00> : vector<2x2xf32>
    %208 = tpu.matmul %205, %207, %cst_222 {dimension_numbers = #tpu.dot_dimension_numbers<[1], [0], [0], [1], [0, 0, 1, 1], [], []>} : vector<2x64xf32>, vector<64x2xf32>, vector<2x2xf32> -> vector<2x2xf32>
    %209 = arith.addf %202, %208 : vector<2x2xf32>
    %c0_223 = arith.constant 0 : index
    %c0_224 = arith.constant 0 : index
    %210 = vector.load %arg11[%c0_223, %c0_224] : memref<1x2xf32, #tpu.memory_space<vmem>>, vector<1x2xf32>
    %211 = vector.broadcast %210 : vector<1x2xf32> to vector<2x2xf32>
    %212 = arith.addf %209, %211 : vector<2x2xf32>
    %cst_225 = arith.constant 0.000000e+00 : f32
    %213 = vector.broadcast %cst_225 : f32 to vector<2x2xf32>
    %214 = arith.maximumf %212, %213 : vector<2x2xf32>
    %c0_226 = arith.constant 0 : index
    %c0_227 = arith.constant 0 : index
    %215 = vector.load %arg12[%c0_226, %c0_227] : memref<2x2xf32, #tpu.memory_space<vmem>>, vector<2x2xf32>
    tpu.vector_store %arg12[%c0_226, %c0_227], %214 {strides = array<i32>} : memref<2x2xf32, #tpu.memory_space<vmem>>, vector<2x2xf32>,
    return
  }
}

</mosaic_0001>

<llo_original>
// kernel: encoder_forward.1
$region0: #{encoder_forward.1}
  #allocation0 [shape = 'u32[]', space=smem, size = 0x4, offset = 0x4, fixed_abs, tag = 'smem constant byte address 0x4 - core index']
  #allocation1 [shape = 'u32[144,128]{1,0:T(1,128)}', space=vmem, size = 0x12000, scoped, tag = 'internal scratch']
  %s0 = inlined_call_operand.vmem [shape: f32[256,36], index: 0, kind: input, shape index: {}]
  %s1 = inlined_call_operand.vmem [shape: f32[36,64], index: 1, kind: input, shape index: {}]
  %s2 = inlined_call_operand.vmem [shape: f32[1,64], index: 2, kind: input, shape index: {}]
  %s3 = inlined_call_operand.vmem [shape: f32[9,56,256], index: 3, kind: input, shape index: {}]
  %s4 = inlined_call_operand.vmem [shape: f32[9,64,64], index: 4, kind: input, shape index: {}]
  %s5 = inlined_call_operand.vmem [shape: f32[1,64], index: 5, kind: input, shape index: {}]
  %s6 = inlined_call_operand.vmem [shape: f32[9,16,56], index: 6, kind: input, shape index: {}]
  %s7 = inlined_call_operand.vmem [shape: f32[9,64,64], index: 7, kind: input, shape index: {}]
  %s8 = inlined_call_operand.vmem [shape: f32[1,64], index: 8, kind: input, shape index: {}]
  %s9 = inlined_call_operand.vmem [shape: f32[9,2,16], index: 9, kind: input, shape index: {}]
  %s10 = inlined_call_operand.vmem [shape: f32[9,64,2], index: 10, kind: input, shape index: {}]
  %s11 = inlined_call_operand.vmem [shape: f32[1,2], index: 11, kind: input, shape index: {}]
  %s12 = inlined_call_operand.vmem [shape: f32[2,2], index: 12, kind: output, shape index: {}]
  %s13 = sld [smem:[#allocation0]]
  $region58: #{encoder_forward.1} parent=0
    _
  %s15 = ssub.s32 1, %s13
  %s16 = scalar_select 0, %s15, %s13
  // Predicated region
  $region2: #{encoder_forward.1} parent=0 // pred_check
    _
  $region3: #{encoder_forward.1} parent=0 // pred_check_branch
    %18 = sbr.rel (0) target = $region5
  $region4: #{encoder_forward.1} parent=0 // pred_region
    _
  $region5: #{encoder_forward.1} parent=0 // pred_fallthru
    _
  // Predicated region
  $region6: #{encoder_forward.1} parent=0 // pred_check
    _
  $region7: #{encoder_forward.1} parent=0 // pred_check_branch
    %20 = sbr.rel (0) target = $region9
  $region8: #{encoder_forward.1} parent=0 // pred_region
    _
  $region9: #{encoder_forward.1} parent=0 // pred_fallthru
    _
  // Predicated region
  $region10: #{encoder_forward.1} parent=0 // pred_check
    _
  $region11: #{encoder_forward.1} parent=0 // pred_check_branch
    %22 = sbr.rel (0) target = $region13
  $region12: #{encoder_forward.1} parent=0 // pred_region
    _
  $region13: #{encoder_forward.1} parent=0 // pred_fallthru
    _
  // Predicated region
  $region14: #{encoder_forward.1} parent=0 // pred_check
    _
  $region15: #{encoder_forward.1} parent=0 // pred_check_branch
    %24 = sbr.rel (0) target = $region17
  $region16: #{encoder_forward.1} parent=0 // pred_region
    _
  $region17: #{encoder_forward.1} parent=0 // pred_fallthru
    _
  // Predicated region
  $region18: #{encoder_forward.1} parent=0 // pred_check
    _
  $region19: #{encoder_forward.1} parent=0 // pred_check_branch
    %26 = sbr.rel (0) target = $region21
  $region20: #{encoder_forward.1} parent=0 // pred_region
    _
  $region21: #{encoder_forward.1} parent=0 // pred_fallthru
    _
  // Predicated region
  $region22: #{encoder_forward.1} parent=0 // pred_check
    _
  $region23: #{encoder_forward.1} parent=0 // pred_check_branch
    %28 = sbr.rel (0) target = $region25
  $region24: #{encoder_forward.1} parent=0 // pred_region
    _
  $region25: #{encoder_forward.1} parent=0 // pred_fallthru
    _
  // Predicated region
  $region26: #{encoder_forward.1} parent=0 // pred_check
    _
  $region27: #{encoder_forward.1} parent=0 // pred_check_branch
    %30 = sbr.rel (0) target = $region29
  $region28: #{encoder_forward.1} parent=0 // pred_region
    _
  $region29: #{encoder_forward.1} parent=0 // pred_fallthru
    _
  // Predicated region
  $region30: #{encoder_forward.1} parent=0 // pred_check
    _
  $region31: #{encoder_forward.1} parent=0 // pred_check_branch
    %32 = sbr.rel (0) target = $region33
  $region32: #{encoder_forward.1} parent=0 // pred_region
    _
  $region33: #{encoder_forward.1} parent=0 // pred_fallthru
    _
  // Predicated region
  $region34: #{encoder_forward.1} parent=0 // pred_check
    _
  $region35: #{encoder_forward.1} parent=0 // pred_check_branch
    %34 = sbr.rel (0) target = $region37
  $region36: #{encoder_forward.1} parent=0 // pred_region
    _
  $region37: #{encoder_forward.1} parent=0 // pred_fallthru
    _
  // Predicated region
  $region38: #{encoder_forward.1} parent=0 // pred_check
    _
  $region39: #{encoder_forward.1} parent=0 // pred_check_branch
    %36 = sbr.rel (0) target = $region41
  $region40: #{encoder_forward.1} parent=0 // pred_region
    _
  $region41: #{encoder_forward.1} parent=0 // pred_fallthru
    _
  // Predicated region
  $region42: #{encoder_forward.1} parent=0 // pred_check
    _
  $region43: #{encoder_forward.1} parent=0 // pred_check_branch
    %38 = sbr.rel (0) target = $region45
  $region44: #{encoder_forward.1} parent=0 // pred_region
    _
  $region45: #{encoder_forward.1} parent=0 // pred_fallthru
    _
  // Predicated region
  $region46: #{encoder_forward.1} parent=0 // pred_check
    _
  $region47: #{encoder_forward.1} parent=0 // pred_check_branch
    %40 = sbr.rel (0) target = $region49
  $region48: #{encoder_forward.1} parent=0 // pred_region
    _
  $region49: #{encoder_forward.1} parent=0 // pred_fallthru
    _
  %v41 = vld [vmem:[%s0] sm:$0xff]
  %v42 = vld [vmem:[%s0 + $0x8] sm:$0xff]
  %v43 = vld [vmem:[%s0 + $0x10] sm:$0xff]
  %v44 = vld [vmem:[%s0 + $0x18] sm:$0xff]
  %v45 = vld [vmem:[%s0 + $0x20] sm:$0xff]
  %v46 = vld [vmem:[%s0 + $0x28] sm:$0xff]
  %v47 = vld [vmem:[%s0 + $0x30] sm:$0xff]
  %v48 = vld [vmem:[%s0 + $0x38] sm:$0xff]
  %v49 = vld [vmem:[%s0 + $0x40] sm:$0xff]
  %v50 = vld [vmem:[%s0 + $0x48] sm:$0xff]
  %v51 = vld [vmem:[%s0 + $0x50] sm:$0xff]
  %v52 = vld [vmem:[%s0 + $0x58] sm:$0xff]
  %v53 = vld [vmem:[%s0 + $0x60] sm:$0xff]
  %v54 = vld [vmem:[%s0 + $0x68] sm:$0xff]
  %v55 = vld [vmem:[%s0 + $0x70] sm:$0xff]
  %v56 = vld [vmem:[%s0 + $0x78] sm:$0xff]
  %v57 = vld [vmem:[%s0 + $0x80] sm:$0xff]
  %v58 = vld [vmem:[%s0 + $0x88] sm:$0xff]
  %v59 = vld [vmem:[%s0 + $0x90] sm:$0xff]
  %v60 = vld [vmem:[%s0 + $0x98] sm:$0xff]
  %v61 = vld [vmem:[%s0 + $0xa0] sm:$0xff]
  %v62 = vld [vmem:[%s0 + $0xa8] sm:$0xff]
  %v63 = vld [vmem:[%s0 + $0xb0] sm:$0xff]
  %v64 = vld [vmem:[%s0 + $0xb8] sm:$0xff]
  %v65 = vld [vmem:[%s0 + $0xc0] sm:$0xff]
  %v66 = vld [vmem:[%s0 + $0xc8] sm:$0xff]
  %v67 = vld [vmem:[%s0 + $0xd0] sm:$0xff]
  %v68 = vld [vmem:[%s0 + $0xd8] sm:$0xff]
  %v69 = vld [vmem:[%s0 + $0xe0] sm:$0xff]
  %v70 = vld [vmem:[%s0 + $0xe8] sm:$0xff]
  %v71 = vld [vmem:[%s0 + $0xf0] sm:$0xff]
  %v72 = vld [vmem:[%s0 + $0xf8] sm:$0xff]
  %v73 = vld [vmem:[%s1] sm:$0xff]
  %v74 = vld [vmem:[%s1 + $0x8] sm:$0xff]
  %v75 = vld [vmem:[%s1 + $0x10] sm:$0xff]
  %v76 = vld [vmem:[%s1 + $0x18] sm:$0xff]
  %v77 = vld [vmem:[%s1 + $0x20] sm:$0xf]
  %v78 = vld [vmem:[%s2] sm:$0x1]
  %v80 = vlaneseq
  %v81 = vshrl.u32 %v80, 7
  %v82 = vsub.s32 0, %v81
  %v83 = vrot.slane %v78, %v82
  %vm85 = vcmask 293888
  %v87 = vsel %vm85, %v41, 0
  %v90 = vsel %vm85, %v42, 0
  %v93 = vsel %vm85, %v43, 0
  %v96 = vsel %vm85, %v44, 0
  %v99 = vsel %vm85, %v45, 0
  %v102 = vsel %vm85, %v46, 0
  %v105 = vsel %vm85, %v47, 0
  %v108 = vsel %vm85, %v48, 0
  %v111 = vsel %vm85, %v49, 0
  %v114 = vsel %vm85, %v50, 0
  %v117 = vsel %vm85, %v51, 0
  %v120 = vsel %vm85, %v52, 0
  %v123 = vsel %vm85, %v53, 0
  %v126 = vsel %vm85, %v54, 0
  %v129 = vsel %vm85, %v55, 0
  %v132 = vsel %vm85, %v56, 0
  %v135 = vsel %vm85, %v57, 0
  %v138 = vsel %vm85, %v58, 0
  %v141 = vsel %vm85, %v59, 0
  %v144 = vsel %vm85, %v60, 0
  %v147 = vsel %vm85, %v61, 0
  %v150 = vsel %vm85, %v62, 0
  %v153 = vsel %vm85, %v63, 0
  %v156 = vsel %vm85, %v64, 0
  %v159 = vsel %vm85, %v65, 0
  %v162 = vsel %vm85, %v66, 0
  %v165 = vsel %vm85, %v67, 0
  %v168 = vsel %vm85, %v68, 0
  %v171 = vsel %vm85, %v69, 0
  %v174 = vsel %vm85, %v70, 0
  %v177 = vsel %vm85, %v71, 0
  %v180 = vsel %vm85, %v72, 0
  %vm182 = vcmask 1043456
  %v184 = vsel %vm182, %v77, 0
  %186 = vmatprep.subr.mxu0 0.0
  %187 = vmatpush1.msra.mxu0 %v73
  %188 = vmatprep.subr.mxu0 0.0
  %189 = vmatpush1.msra.mxu0 %v74
  %190 = vmatprep.subr.mxu0 0.0
  %191 = vmatpush1.msra.mxu0 %v75
  %192 = vmatprep.subr.mxu0 0.0
  %193 = vmatpush1.msra.mxu0 %v76
  %194 = vmatprep.subr.mxu0 0.0
  %195 = vmatpush1.msra.mxu0 %v184
  %196 = vmatprep.subr.mxu0 0.0
  %197 = vmatpush1.msra.mxu0 0.0
  %198 = vmatprep.subr.mxu0 0.0
  %199 = vmatpush1.msra.mxu0 0.0
  %200 = vmatprep.subr.mxu0 0.0
  %201 = vmatpush1.msra.mxu0 0.0
  %202 = vmatprep.subr.mxu0 0.0
  %203 = vmatpush1.msra.mxu0 0.0
  %204 = vmatprep.subr.mxu0 0.0
  %205 = vmatpush1.msra.mxu0 0.0
  %206 = vmatprep.subr.mxu0 0.0
  %207 = vmatpush1.msra.mxu0 0.0
  %208 = vmatprep.subr.mxu0 0.0
  %209 = vmatpush1.msra.mxu0 0.0
  %210 = vmatprep.subr.mxu0 0.0
  %211 = vmatpush1.msra.mxu0 0.0
  %212 = vmatprep.subr.mxu0 0.0
  %213 = vmatpush1.msra.mxu0 0.0
  %214 = vmatprep.subr.mxu0 0.0
  %215 = vmatpush1.msra.mxu0 0.0
  %216 = vmatprep.subr.mxu0 0.0
  %217 = vmatpush1.msra.mxu0 0.0
  %218 = vmatprep.subr.mxu0 0.0
  %219 = vmatpush1.msra.mxu0 0.0
  %220 = vmatprep.subr.mxu0 0.0
  %221 = vmatpush1.msra.mxu0 0.0
  %222 = vmatprep.subr.mxu0 0.0
  %223 = vmatpush1.msra.mxu0 0.0
  %224 = vmatprep.subr.mxu0 0.0
  %225 = vmatpush1.msra.mxu0 0.0
  %226 = vmatprep.subr.mxu0 0.0
  %227 = vmatpush1.msra.mxu0 0.0
  %228 = vmatprep.subr.mxu0 0.0
  %229 = vmatpush1.msra.mxu0 0.0
  %230 = vmatprep.subr.mxu0 0.0
  %231 = vmatpush1.msra.mxu0 0.0
  %232 = vmatprep.subr.mxu0 0.0
  %233 = vmatpush1.msra.mxu0 0.0
  %234 = vmatprep.subr.mxu0 0.0
  %235 = vmatpush1.msra.mxu0 0.0
  %236 = vmatprep.subr.mxu0 0.0
  %237 = vmatpush1.msra.mxu0 0.0
  %238 = vmatprep.subr.mxu0 0.0
  %239 = vmatpush1.msra.mxu0 0.0
  %240 = vmatprep.subr.mxu0 0.0
  %241 = vmatpush1.msra.mxu0 0.0
  %242 = vmatprep.subr.mxu0 0.0
  %243 = vmatpush1.msra.mxu0 0.0
  %244 = vmatprep.subr.mxu0 0.0
  %245 = vmatpush1.msra.mxu0 0.0
  %246 = vmatprep.subr.mxu0 0.0
  %247 = vmatpush1.msra.mxu0 0.0
  %248 = vmatprep.subr.mxu0 0.0
  %249 = vmatpush1.msra.mxu0 0.0
  %250 = vmatprep.mubr.f32.mxu0 0.0
  %251 = vmatmul.mubr.f32.gmra.mrb[0].mxu0 %v87
  %v252 = vpop.f32.mrb[0].mxu0
  %v253 = vadd.f32 %v83, %v252
  %v254 = vpop.f32.mrb[0].mxu0
  %255 = vmatprep.mubr.f32.mxu0 0.0
  %256 = vmatmul.mubr.f32.gmra.mrb[0].mxu0 %v90
  %v257 = vpop.f32.mrb[0].mxu0
  %v258 = vadd.f32 %v83, %v257
  %v259 = vpop.f32.mrb[0].mxu0
  %260 = vmatprep.mubr.f32.mxu0 0.0
  %261 = vmatmul.mubr.f32.gmra.mrb[0].mxu0 %v93
  %v262 = vpop.f32.mrb[0].mxu0
  %v263 = vadd.f32 %v83, %v262
  %v264 = vpop.f32.mrb[0].mxu0
  %265 = vmatprep.mubr.f32.mxu0 0.0
  %266 = vmatmul.mubr.f32.gmra.mrb[0].mxu0 %v96
  %v267 = vpop.f32.mrb[0].mxu0
  %v268 = vadd.f32 %v83, %v267
  %v269 = vpop.f32.mrb[0].mxu0
  %270 = vmatprep.mubr.f32.mxu0 0.0
  %271 = vmatmul.mubr.f32.gmra.mrb[0].mxu0 %v99
  %v272 = vpop.f32.mrb[0].mxu0
  %v273 = vadd.f32 %v83, %v272
  %v274 = vpop.f32.mrb[0].mxu0
  %275 = vmatprep.mubr.f32.mxu0 0.0
  %276 = vmatmul.mubr.f32.gmra.mrb[0].mxu0 %v102
  %v277 = vpop.f32.mrb[0].mxu0
  %v278 = vadd.f32 %v83, %v277
  %v279 = vpop.f32.mrb[0].mxu0
  %280 = vmatprep.mubr.f32.mxu0 0.0
  %281 = vmatmul.mubr.f32.gmra.mrb[0].mxu0 %v105
  %v282 = vpop.f32.mrb[0].mxu0
  %v283 = vadd.f32 %v83, %v282
  %v284 = vpop.f32.mrb[0].mxu0
  %285 = vmatprep.mubr.f32.mxu0 0.0
  %286 = vmatmul.mubr.f32.gmra.mrb[0].mxu0 %v108
  %v287 = vpop.f32.mrb[0].mxu0
  %v288 = vadd.f32 %v83, %v287
  %v289 = vpop.f32.mrb[0].mxu0
  %290 = vmatprep.mubr.f32.mxu0 0.0
  %291 = vmatmul.mubr.f32.gmra.mrb[0].mxu0 %v111
  %v292 = vpop.f32.mrb[0].mxu0
  %v293 = vadd.f32 %v83, %v292
  %v294 = vpop.f32.mrb[0].mxu0
  %295 = vmatprep.mubr.f32.mxu0 0.0
  %296 = vmatmul.mubr.f32.gmra.mrb[0].mxu0 %v114
  %v297 = vpop.f32.mrb[0].mxu0
  %v298 = vadd.f32 %v83, %v297
  %v299 = vpop.f32.mrb[0].mxu0
  %300 = vmatprep.mubr.f32.mxu0 0.0
  %301 = vmatmul.mubr.f32.gmra.mrb[0].mxu0 %v117
  %v302 = vpop.f32.mrb[0].mxu0
  %v303 = vadd.f32 %v83, %v302
  %v304 = vpop.f32.mrb[0].mxu0
  %305 = vmatprep.mubr.f32.mxu0 0.0
  %306 = vmatmul.mubr.f32.gmra.mrb[0].mxu0 %v120
  %v307 = vpop.f32.mrb[0].mxu0
  %v308 = vadd.f32 %v83, %v307
  %v309 = vpop.f32.mrb[0].mxu0
  %310 = vmatprep.mubr.f32.mxu0 0.0
  %311 = vmatmul.mubr.f32.gmra.mrb[0].mxu0 %v123
  %v312 = vpop.f32.mrb[0].mxu0
  %v313 = vadd.f32 %v83, %v312
  %v314 = vpop.f32.mrb[0].mxu0
  %315 = vmatprep.mubr.f32.mxu0 0.0
  %316 = vmatmul.mubr.f32.gmra.mrb[0].mxu0 %v126
  %v317 = vpop.f32.mrb[0].mxu0
  %v318 = vadd.f32 %v83, %v317
  %v319 = vpop.f32.mrb[0].mxu0
  %320 = vmatprep.mubr.f32.mxu0 0.0
  %321 = vmatmul.mubr.f32.gmra.mrb[0].mxu0 %v129
  %v322 = vpop.f32.mrb[0].mxu0
  %v323 = vadd.f32 %v83, %v322
  %v324 = vpop.f32.mrb[0].mxu0
  %325 = vmatprep.mubr.f32.mxu0 0.0
  %326 = vmatmul.mubr.f32.gmra.mrb[0].mxu0 %v132
  %v327 = vpop.f32.mrb[0].mxu0
  %v328 = vadd.f32 %v83, %v327
  %v329 = vpop.f32.mrb[0].mxu0
  %330 = vmatprep.mubr.f32.mxu0 0.0
  %331 = vmatmul.mubr.f32.gmra.mrb[0].mxu0 %v135
  %v332 = vpop.f32.mrb[0].mxu0
  %v333 = vadd.f32 %v83, %v332
  %v334 = vpop.f32.mrb[0].mxu0
  %335 = vmatprep.mubr.f32.mxu0 0.0
  %336 = vmatmul.mubr.f32.gmra.mrb[0].mxu0 %v138
  %v337 = vpop.f32.mrb[0].mxu0
  %v338 = vadd.f32 %v83, %v337
  %v339 = vpop.f32.mrb[0].mxu0
  %340 = vmatprep.mubr.f32.mxu0 0.0
  %341 = vmatmul.mubr.f32.gmra.mrb[0].mxu0 %v141
  %v342 = vpop.f32.mrb[0].mxu0
  %v343 = vadd.f32 %v83, %v342
  %v344 = vpop.f32.mrb[0].mxu0
  %345 = vmatprep.mubr.f32.mxu0 0.0
  %346 = vmatmul.mubr.f32.gmra.mrb[0].mxu0 %v144
  %v347 = vpop.f32.mrb[0].mxu0
  %v348 = vadd.f32 %v83, %v347
  %v349 = vpop.f32.mrb[0].mxu0
  %350 = vmatprep.mubr.f32.mxu0 0.0
  %351 = vmatmul.mubr.f32.gmra.mrb[0].mxu0 %v147
  %v352 = vpop.f32.mrb[0].mxu0
  %v353 = vadd.f32 %v83, %v352
  %v354 = vpop.f32.mrb[0].mxu0
  %355 = vmatprep.mubr.f32.mxu0 0.0
  %356 = vmatmul.mubr.f32.gmra.mrb[0].mxu0 %v150
  %v357 = vpop.f32.mrb[0].mxu0
  %v358 = vadd.f32 %v83, %v357
  %v359 = vpop.f32.mrb[0].mxu0
  %360 = vmatprep.mubr.f32.mxu0 0.0
  %361 = vmatmul.mubr.f32.gmra.mrb[0].mxu0 %v153
  %v362 = vpop.f32.mrb[0].mxu0
  %v363 = vadd.f32 %v83, %v362
  %v364 = vpop.f32.mrb[0].mxu0
  %365 = vmatprep.mubr.f32.mxu0 0.0
  %366 = vmatmul.mubr.f32.gmra.mrb[0].mxu0 %v156
  %v367 = vpop.f32.mrb[0].mxu0
  %v368 = vadd.f32 %v83, %v367
  %v369 = vpop.f32.mrb[0].mxu0
  %370 = vmatprep.mubr.f32.mxu0 0.0
  %371 = vmatmul.mubr.f32.gmra.mrb[0].mxu0 %v159
  %v372 = vpop.f32.mrb[0].mxu0
  %v373 = vadd.f32 %v83, %v372
  %v374 = vpop.f32.mrb[0].mxu0
  %375 = vmatprep.mubr.f32.mxu0 0.0
  %376 = vmatmul.mubr.f32.gmra.mrb[0].mxu0 %v162
  %v377 = vpop.f32.mrb[0].mxu0
  %v378 = vadd.f32 %v83, %v377
  %v379 = vpop.f32.mrb[0].mxu0
  %380 = vmatprep.mubr.f32.mxu0 0.0
  %381 = vmatmul.mubr.f32.gmra.mrb[0].mxu0 %v165
  %v382 = vpop.f32.mrb[0].mxu0
  %v383 = vadd.f32 %v83, %v382
  %v384 = vpop.f32.mrb[0].mxu0
  %385 = vmatprep.mubr.f32.mxu0 0.0
  %386 = vmatmul.mubr.f32.gmra.mrb[0].mxu0 %v168
  %v387 = vpop.f32.mrb[0].mxu0
  %v388 = vadd.f32 %v83, %v387
  %v389 = vpop.f32.mrb[0].mxu0
  %390 = vmatprep.mubr.f32.mxu0 0.0
  %391 = vmatmul.mubr.f32.gmra.mrb[0].mxu0 %v171
  %v392 = vpop.f32.mrb[0].mxu0
  %v393 = vadd.f32 %v83, %v392
  %v394 = vpop.f32.mrb[0].mxu0
  %395 = vmatprep.mubr.f32.mxu0 0.0
  %396 = vmatmul.mubr.f32.gmra.mrb[0].mxu0 %v174
  %v397 = vpop.f32.mrb[0].mxu0
  %v398 = vadd.f32 %v83, %v397
  %v399 = vpop.f32.mrb[0].mxu0
  %400 = vmatprep.mubr.f32.mxu0 0.0
  %401 = vmatmul.mubr.f32.gmra.mrb[0].mxu0 %v177
  %v402 = vpop.f32.mrb[0].mxu0
  %v403 = vadd.f32 %v83, %v402
  %v404 = vpop.f32.mrb[0].mxu0
  %405 = vmatprep.mubr.f32.mxu0 0.0
  %406 = vmatmul.mubr.f32.gmra.mrb[0].mxu0 %v180
  %v407 = vpop.f32.mrb[0].mxu0
  %v408 = vadd.f32 %v83, %v407
  %v409 = vpop.f32.mrb[0].mxu0
  %410 = vdwg.mxu0
  %v411 = vmax.f32 %v253, 0.0
  %v412 = vmax.f32 %v258, 0.0
  %v413 = vmax.f32 %v263, 0.0
  %v414 = vmax.f32 %v268, 0.0
  %v415 = vmax.f32 %v273, 0.0
  %v416 = vmax.f32 %v278, 0.0
  %v417 = vmax.f32 %v283, 0.0
  %v418 = vmax.f32 %v288, 0.0
  %v419 = vmax.f32 %v293, 0.0
  %v420 = vmax.f32 %v298, 0.0
  %v421 = vmax.f32 %v303, 0.0
  %v422 = vmax.f32 %v308, 0.0
  %v423 = vmax.f32 %v313, 0.0
  %v424 = vmax.f32 %v318, 0.0
  %v425 = vmax.f32 %v323, 0.0
  %v426 = vmax.f32 %v328, 0.0
  %v427 = vmax.f32 %v333, 0.0
  %v428 = vmax.f32 %v338, 0.0
  %v429 = vmax.f32 %v343, 0.0
  %v430 = vmax.f32 %v348, 0.0
  %v431 = vmax.f32 %v353, 0.0
  %v432 = vmax.f32 %v358, 0.0
  %v433 = vmax.f32 %v363, 0.0
  %v434 = vmax.f32 %v368, 0.0
  %v435 = vmax.f32 %v373, 0.0
  %v436 = vmax.f32 %v378, 0.0
  %v437 = vmax.f32 %v383, 0.0
  %v438 = vmax.f32 %v388, 0.0
  %v439 = vmax.f32 %v393, 0.0
  %v440 = vmax.f32 %v398, 0.0
  %v441 = vmax.f32 %v403, 0.0
  %v442 = vmax.f32 %v408, 0.0
  %v443 = vld [vmem:[%s3] sm:$0xff]
  %v444 = vld [vmem:[%s3 + $0x8] sm:$0xff]
  %v445 = vld [vmem:[%s3 + $0x10] sm:$0xff]
  %v446 = vld [vmem:[%s3 + $0x18] sm:$0xff]
  %v447 = vld [vmem:[%s3 + $0x20] sm:$0xff]
  %v448 = vld [vmem:[%s3 + $0x28] sm:$0xff]
  %v449 = vld [vmem:[%s3 + $0x30] sm:$0xff]
  %v450 = vld [vmem:[%s3 + $0x38] sm:$0xff]
  %v451 = vld [vmem:[%s3 + $0x40] sm:$0xff]
  %v452 = vld [vmem:[%s3 + $0x48] sm:$0xff]
  %v453 = vld [vmem:[%s3 + $0x50] sm:$0xff]
  %v454 = vld [vmem:[%s3 + $0x58] sm:$0xff]
  %v455 = vld [vmem:[%s3 + $0x60] sm:$0xff]
  %v456 = vld [vmem:[%s3 + $0x68] sm:$0xff]
  %457 = vmatprep.subr.mxu0 0.0
  %458 = vmatpush1.msra.mxu0 %v411
  %459 = vmatprep.subr.mxu0 0.0
  %460 = vmatpush1.msra.mxu0 %v412
  %461 = vmatprep.subr.mxu0 0.0
  %462 = vmatpush1.msra.mxu0 %v413
  %463 = vmatprep.subr.mxu0 0.0
  %464 = vmatpush1.msra.mxu0 %v414
  %465 = vmatprep.subr.mxu0 0.0
  %466 = vmatpush1.msra.mxu0 %v415
  %467 = vmatprep.subr.mxu0 0.0
  %468 = vmatpush1.msra.mxu0 %v416
  %469 = vmatprep.subr.mxu0 0.0
  %470 = vmatpush1.msra.mxu0 %v417
  %471 = vmatprep.subr.mxu0 0.0
  %472 = vmatpush1.msra.mxu0 %v418
  %473 = vmatprep.subr.mxu0 0.0
  %474 = vmatpush1.msra.mxu0 %v419
  %475 = vmatprep.subr.mxu0 0.0
  %476 = vmatpush1.msra.mxu0 %v420
  %477 = vmatprep.subr.mxu0 0.0
  %478 = vmatpush1.msra.mxu0 %v421
  %479 = vmatprep.subr.mxu0 0.0
  %480 = vmatpush1.msra.mxu0 %v422
  %481 = vmatprep.subr.mxu0 0.0
  %482 = vmatpush1.msra.mxu0 %v423
  %483 = vmatprep.subr.mxu0 0.0
  %484 = vmatpush1.msra.mxu0 %v424
  %485 = vmatprep.subr.mxu0 0.0
  %486 = vmatpush1.msra.mxu0 %v425
  %487 = vmatprep.subr.mxu0 0.0
  %488 = vmatpush1.msra.mxu0 %v426
  %489 = vmatprep.subr.mxu0 0.0
  %490 = vmatpush1.msra.mxu0 %v427
  %491 = vmatprep.subr.mxu0 0.0
  %492 = vmatpush1.msra.mxu0 %v428
  %493 = vmatprep.subr.mxu0 0.0
  %494 = vmatpush1.msra.mxu0 %v429
  %495 = vmatprep.subr.mxu0 0.0
  %496 = vmatpush1.msra.mxu0 %v430
  %497 = vmatprep.subr.mxu0 0.0
  %498 = vmatpush1.msra.mxu0 %v431
  %499 = vmatprep.subr.mxu0 0.0
  %500 = vmatpush1.msra.mxu0 %v432
  %501 = vmatprep.subr.mxu0 0.0
  %502 = vmatpush1.msra.mxu0 %v433
  %503 = vmatprep.subr.mxu0 0.0
  %504 = vmatpush1.msra.mxu0 %v434
  %505 = vmatprep.subr.mxu0 0.0
  %506 = vmatpush1.msra.mxu0 %v435
  %507 = vmatprep.subr.mxu0 0.0
  %508 = vmatpush1.msra.mxu0 %v436
  %509 = vmatprep.subr.mxu0 0.0
  %510 = vmatpush1.msra.mxu0 %v437
  %511 = vmatprep.subr.mxu0 0.0
  %512 = vmatpush1.msra.mxu0 %v438
  %513 = vmatprep.subr.mxu0 0.0
  %514 = vmatpush1.msra.mxu0 %v439
  %515 = vmatprep.subr.mxu0 0.0
  %516 = vmatpush1.msra.mxu0 %v440
  %517 = vmatprep.subr.mxu0 0.0
  %518 = vmatpush1.msra.mxu0 %v441
  %519 = vmatprep.subr.mxu0 0.0
  %520 = vmatpush1.msra.mxu0 %v442
  %521 = vmatprep.mubr.f32.mxu0 %v444
  %522 = vmatmul.mubr.f32.gmra.mrb[0].mxu0 %v443
  %v523 = vpop.f32.mrb[0].mxu0
  %v524 = vadd.f32 0.0, %v523
  %v525 = vpop.f32.mrb[0].mxu0
  %526 = vmatprep.mubr.f32.mxu0 %v446
  %527 = vmatmul.mubr.f32.gmra.mrb[0].mxu0 %v445
  %v528 = vpop.f32.mrb[0].mxu0
  %v529 = vadd.f32 0.0, %v528
  %v530 = vpop.f32.mrb[0].mxu0
  %531 = vmatprep.mubr.f32.mxu0 %v448
  %532 = vmatmul.mubr.f32.gmra.mrb[0].mxu0 %v447
  %v533 = vpop.f32.mrb[0].mxu0
  %v534 = vadd.f32 0.0, %v533
  %v535 = vpop.f32.mrb[0].mxu0
  %536 = vmatprep.mubr.f32.mxu0 %v450
  %537 = vmatmul.mubr.f32.gmra.mrb[0].mxu0 %v449
  %v538 = vpop.f32.mrb[0].mxu0
  %v539 = vadd.f32 0.0, %v538
  %v540 = vpop.f32.mrb[0].mxu0
  %541 = vmatprep.mubr.f32.mxu0 %v452
  %542 = vmatmul.mubr.f32.gmra.mrb[0].mxu0 %v451
  %v543 = vpop.f32.mrb[0].mxu0
  %v544 = vadd.f32 0.0, %v543
  %v545 = vpop.f32.mrb[0].mxu0
  %546 = vmatprep.mubr.f32.mxu0 %v454
  %547 = vmatmul.mubr.f32.gmra.mrb[0].mxu0 %v453
  %v548 = vpop.f32.mrb[0].mxu0
  %v549 = vadd.f32 0.0, %v548
  %v550 = vpop.f32.mrb[0].mxu0
  %551 = vmatprep.mubr.f32.mxu0 %v456
  %552 = vmatmul.mubr.f32.gmra.mrb[0].mxu0 %v455
  %v553 = vpop.f32.mrb[0].mxu0
  %v554 = vadd.f32 0.0, %v553
  %v555 = vpop.f32.mrb[0].mxu0
  %556 = vdwg.mxu0
  %v557 = vld [vmem:[%s4] sm:$0xff]
  %v558 = vld [vmem:[%s4 + $0x8] sm:$0xff]
  %v559 = vld [vmem:[%s4 + $0x10] sm:$0xff]
  %v560 = vld [vmem:[%s4 + $0x18] sm:$0xff]
  %v561 = vld [vmem:[%s4 + $0x20] sm:$0xff]
  %v562 = vld [vmem:[%s4 + $0x28] sm:$0xff]
  %v563 = vld [vmem:[%s4 + $0x30] sm:$0xff]
  %v564 = vld [vmem:[%s4 + $0x38] sm:$0xff]
  %s565 = scalar_lea.vmem %s3, 112
  %v566 = vld [vmem:[%s565] sm:$0xff]
  %v567 = vld [vmem:[%s565 + $0x8] sm:$0xff]
  %v568 = vld [vmem:[%s565 + $0x10] sm:$0xff]
  %v569 = vld [vmem:[%s565 + $0x18] sm:$0xff]
  %v570 = vld [vmem:[%s565 + $0x20] sm:$0xff]
  %v571 = vld [vmem:[%s565 + $0x28] sm:$0xff]
  %v572 = vld [vmem:[%s565 + $0x30] sm:$0xff]
  %v573 = vld [vmem:[%s565 + $0x38] sm:$0xff]
  %v574 = vld [vmem:[%s565 + $0x40] sm:$0xff]
  %v575 = vld [vmem:[%s565 + $0x48] sm:$0xff]
  %v576 = vld [vmem:[%s565 + $0x50] sm:$0xff]
  %v577 = vld [vmem:[%s565 + $0x58] sm:$0xff]
  %v578 = vld [vmem:[%s565 + $0x60] sm:$0xff]
  %v579 = vld [vmem:[%s565 + $0x68] sm:$0xff]
  %580 = vmatprep.subr.mxu0 0.0
  %581 = vmatpush1.msra.mxu0 %v411
  %582 = vmatprep.subr.mxu0 0.0
  %583 = vmatpush1.msra.mxu0 %v412
  %584 = vmatprep.subr.mxu0 0.0
  %585 = vmatpush1.msra.mxu0 %v413
  %586 = vmatprep.subr.mxu0 0.0
  %587 = vmatpush1.msra.mxu0 %v414
  %588 = vmatprep.subr.mxu0 0.0
  %589 = vmatpush1.msra.mxu0 %v415
  %590 = vmatprep.subr.mxu0 0.0
  %591 = vmatpush1.msra.mxu0 %v416
  %592 = vmatprep.subr.mxu0 0.0
  %593 = vmatpush1.msra.mxu0 %v417
  %594 = vmatprep.subr.mxu0 0.0
  %595 = vmatpush1.msra.mxu0 %v418
  %596 = vmatprep.subr.mxu0 0.0
  %597 = vmatpush1.msra.mxu0 %v419
  %598 = vmatprep.subr.mxu0 0.0
  %599 = vmatpush1.msra.mxu0 %v420
  %600 = vmatprep.subr.mxu0 0.0
  %601 = vmatpush1.msra.mxu0 %v421
  %602 = vmatprep.subr.mxu0 0.0
  %603 = vmatpush1.msra.mxu0 %v422
  %604 = vmatprep.subr.mxu0 0.0
  %605 = vmatpush1.msra.mxu0 %v423
  %606 = vmatprep.subr.mxu0 0.0
  %607 = vmatpush1.msra.mxu0 %v424
  %608 = vmatprep.subr.mxu0 0.0
  %609 = vmatpush1.msra.mxu0 %v425
  %610 = vmatprep.subr.mxu0 0.0
  %611 = vmatpush1.msra.mxu0 %v426
  %612 = vmatprep.subr.mxu0 0.0
  %613 = vmatpush1.msra.mxu0 %v427
  %614 = vmatprep.subr.mxu0 0.0
  %615 = vmatpush1.msra.mxu0 %v428
  %616 = vmatprep.subr.mxu0 0.0
  %617 = vmatpush1.msra.mxu0 %v429
  %618 = vmatprep.subr.mxu0 0.0
  %619 = vmatpush1.msra.mxu0 %v430
  %620 = vmatprep.subr.mxu0 0.0
  %621 = vmatpush1.msra.mxu0 %v431
  %622 = vmatprep.subr.mxu0 0.0
  %623 = vmatpush1.msra.mxu0 %v432
  %624 = vmatprep.subr.mxu0 0.0
  %625 = vmatpush1.msra.mxu0 %v433
  %626 = vmatprep.subr.mxu0 0.0
  %627 = vmatpush1.msra.mxu0 %v434
  %628 = vmatprep.subr.mxu0 0.0
  %629 = vmatpush1.msra.mxu0 %v435
  %630 = vmatprep.subr.mxu0 0.0
  %631 = vmatpush1.msra.mxu0 %v436
  %632 = vmatprep.subr.mxu0 0.0
  %633 = vmatpush1.msra.mxu0 %v437
  %634 = vmatprep.subr.mxu0 0.0
  %635 = vmatpush1.msra.mxu0 %v438
  %636 = vmatprep.subr.mxu0 0.0
  %637 = vmatpush1.msra.mxu0 %v439
  %638 = vmatprep.subr.mxu0 0.0
  %639 = vmatpush1.msra.mxu0 %v440
  %640 = vmatprep.subr.mxu0 0.0
  %641 = vmatpush1.msra.mxu0 %v441
  %642 = vmatprep.subr.mxu0 0.0
  %643 = vmatpush1.msra.mxu0 %v442
  %644 = vmatprep.mubr.f32.mxu0 %v567
  %645 = vmatmul.mubr.f32.gmra.mrb[0].mxu0 %v566
  %v646 = vpop.f32.mrb[0].mxu0
  %v647 = vadd.f32 0.0, %v646
  %v648 = vpop.f32.mrb[0].mxu0
  %649 = vmatprep.mubr.f32.mxu0 %v569
  %650 = vmatmul.mubr.f32.gmra.mrb[0].mxu0 %v568
  %v651 = vpop.f32.mrb[0].mxu0
  %v652 = vadd.f32 0.0, %v651
  %v653 = vpop.f32.mrb[0].mxu0
  %654 = vmatprep.mubr.f32.mxu0 %v571
  %655 = vmatmul.mubr.f32.gmra.mrb[0].mxu0 %v570
  %v656 = vpop.f32.mrb[0].mxu0
  %v657 = vadd.f32 0.0, %v656
  %v658 = vpop.f32.mrb[0].mxu0
  %659 = vmatprep.mubr.f32.mxu0 %v573
  %660 = vmatmul.mubr.f32.gmra.mrb[0].mxu0 %v572
  %v661 = vpop.f32.mrb[0].mxu0
  %v662 = vadd.f32 0.0, %v661
  %v663 = vpop.f32.mrb[0].mxu0
  %664 = vmatprep.mubr.f32.mxu0 %v575
  %665 = vmatmul.mubr.f32.gmra.mrb[0].mxu0 %v574
  %v666 = vpop.f32.mrb[0].mxu0
  %v667 = vadd.f32 0.0, %v666
  %v668 = vpop.f32.mrb[0].mxu0
  %669 = vmatprep.mubr.f32.mxu0 %v577
  %670 = vmatmul.mubr.f32.gmra.mrb[0].mxu0 %v576
  %v671 = vpop.f32.mrb[0].mxu0
  %v672 = vadd.f32 0.0, %v671
  %v673 = vpop.f32.mrb[0].mxu0
  %674 = vmatprep.mubr.f32.mxu0 %v579
  %675 = vmatmul.mubr.f32.gmra.mrb[0].mxu0 %v578
  %v676 = vpop.f32.mrb[0].mxu0
  %v677 = vadd.f32 0.0, %v676
  %v678 = vpop.f32.mrb[0].mxu0
  %679 = vdwg.mxu0
  %s680 = scalar_lea.vmem %s4, 64
  %v681 = vld [vmem:[%s680] sm:$0xff]
  %v682 = vld [vmem:[%s680 + $0x8] sm:$0xff]
  %v683 = vld [vmem:[%s680 + $0x10] sm:$0xff]
  %v684 = vld [vmem:[%s680 + $0x18] sm:$0xff]
  %v685 = vld [vmem:[%s680 + $0x20] sm:$0xff]
  %v686 = vld [vmem:[%s680 + $0x28] sm:$0xff]
  %v687 = vld [vmem:[%s680 + $0x30] sm:$0xff]
  %v688 = vld [vmem:[%s680 + $0x38] sm:$0xff]
  %vm689 = vcmask 523264
  %v691 = vsel %vm689, %v647, 0
  %v694 = vsel %vm689, %v652, 0
  %v697 = vsel %vm689, %v657, 0
  %v700 = vsel %vm689, %v662, 0
  %v703 = vsel %vm689, %v667, 0
  %v706 = vsel %vm689, %v672, 0
  %v709 = vsel %vm689, %v677, 0
  %711 = vmatprep.subr.mxu0 0.0
  %712 = vmatpush1.msra.mxu0 %v681
  %713 = vmatprep.subr.mxu0 0.0
  %714 = vmatpush1.msra.mxu0 %v682
  %715 = vmatprep.subr.mxu0 0.0
  %716 = vmatpush1.msra.mxu0 %v683
  %717 = vmatprep.subr.mxu0 0.0
  %718 = vmatpush1.msra.mxu0 %v684
  %719 = vmatprep.subr.mxu0 0.0
  %720 = vmatpush1.msra.mxu0 %v685
  %721 = vmatprep.subr.mxu0 0.0
  %722 = vmatpush1.msra.mxu0 %v686
  %723 = vmatprep.subr.mxu0 0.0
  %724 = vmatpush1.msra.mxu0 %v687
  %725 = vmatprep.subr.mxu0 0.0
  %726 = vmatpush1.msra.mxu0 %v688
  %727 = vmatprep.subr.mxu0 0.0
  %728 = vmatpush1.msra.mxu0 0.0
  %729 = vmatprep.subr.mxu0 0.0
  %730 = vmatpush1.msra.mxu0 0.0
  %731 = vmatprep.subr.mxu0 0.0
  %732 = vmatpush1.msra.mxu0 0.0
  %733 = vmatprep.subr.mxu0 0.0
  %734 = vmatpush1.msra.mxu0 0.0
  %735 = vmatprep.subr.mxu0 0.0
  %736 = vmatpush1.msra.mxu0 0.0
  %737 = vmatprep.subr.mxu0 0.0
  %738 = vmatpush1.msra.mxu0 0.0
  %739 = vmatprep.subr.mxu0 0.0
  %740 = vmatpush1.msra.mxu0 0.0
  %741 = vmatprep.subr.mxu0 0.0
  %742 = vmatpush1.msra.mxu0 0.0
  %743 = vmatprep.subr.mxu0 0.0
  %744 = vmatpush1.msra.mxu0 0.0
  %745 = vmatprep.subr.mxu0 0.0
  %746 = vmatpush1.msra.mxu0 0.0
  %747 = vmatprep.subr.mxu0 0.0
  %748 = vmatpush1.msra.mxu0 0.0
  %749 = vmatprep.subr.mxu0 0.0
  %750 = vmatpush1.msra.mxu0 0.0
  %751 = vmatprep.subr.mxu0 0.0
  %752 = vmatpush1.msra.mxu0 0.0
  %753 = vmatprep.subr.mxu0 0.0
  %754 = vmatpush1.msra.mxu0 0.0
  %755 = vmatprep.subr.mxu0 0.0
  %756 = vmatpush1.msra.mxu0 0.0
  %757 = vmatprep.subr.mxu0 0.0
  %758 = vmatpush1.msra.mxu0 0.0
  %759 = vmatprep.subr.mxu0 0.0
  %760 = vmatpush1.msra.mxu0 0.0
  %761 = vmatprep.subr.mxu0 0.0
  %762 = vmatpush1.msra.mxu0 0.0
  %763 = vmatprep.subr.mxu0 0.0
  %764 = vmatpush1.msra.mxu0 0.0
  %765 = vmatprep.subr.mxu0 0.0
  %766 = vmatpush1.msra.mxu0 0.0
  %767 = vmatprep.subr.mxu0 0.0
  %768 = vmatpush1.msra.mxu0 0.0
  %769 = vmatprep.subr.mxu0 0.0
  %770 = vmatpush1.msra.mxu0 0.0
  %771 = vmatprep.subr.mxu0 0.0
  %772 = vmatpush1.msra.mxu0 0.0
  %773 = vmatprep.subr.mxu0 0.0
  %774 = vmatpush1.msra.mxu0 0.0
  %775 = vmatprep.mubr.f32.mxu0 0.0
  %776 = vmatmul.mubr.f32.gmra.mrb[0].mxu0 %v691
  %v777 = vpop.f32.mrb[0].mxu0
  %v778 = vadd.f32 0.0, %v777
  %v779 = vpop.f32.mrb[0].mxu0
  %780 = vmatprep.mubr.f32.mxu0 0.0
  %781 = vmatmul.mubr.f32.gmra.mrb[0].mxu0 %v694
  %v782 = vpop.f32.mrb[0].mxu0
  %v783 = vadd.f32 0.0, %v782
  %v784 = vpop.f32.mrb[0].mxu0
  %785 = vmatprep.mubr.f32.mxu0 0.0
  %786 = vmatmul.mubr.f32.gmra.mrb[0].mxu0 %v697
  %v787 = vpop.f32.mrb[0].mxu0
  %v788 = vadd.f32 0.0, %v787
  %v789 = vpop.f32.mrb[0].mxu0
  %790 = vmatprep.mubr.f32.mxu0 0.0
  %791 = vmatmul.mubr.f32.gmra.mrb[0].mxu0 %v700
  %v792 = vpop.f32.mrb[0].mxu0
  %v793 = vadd.f32 0.0, %v792
  %v794 = vpop.f32.mrb[0].mxu0
  %795 = vmatprep.mubr.f32.mxu0 0.0
  %796 = vmatmul.mubr.f32.gmra.mrb[0].mxu0 %v703
  %v797 = vpop.f32.mrb[0].mxu0
  %v798 = vadd.f32 0.0, %v797
  %v799 = vpop.f32.mrb[0].mxu0
  %800 = vmatprep.mubr.f32.mxu0 0.0
  %801 = vmatmul.mubr.f32.gmra.mrb[0].mxu0 %v706
  %v802 = vpop.f32.mrb[0].mxu0
  %v803 = vadd.f32 0.0, %v802
  %v804 = vpop.f32.mrb[0].mxu0
  %805 = vmatprep.mubr.f32.mxu0 0.0
  %806 = vmatmul.mubr.f32.gmra.mrb[0].mxu0 %v709
  %v807 = vpop.f32.mrb[0].mxu0
  %v808 = vadd.f32 0.0, %v807
  %v809 = vpop.f32.mrb[0].mxu0
  %810 = vdwg.mxu0
  %v812 = vsel %vm689, %v524, 0
  %v815 = vsel %vm689, %v529, 0
  %v818 = vsel %vm689, %v534, 0
  %v821 = vsel %vm689, %v539, 0
  %v824 = vsel %vm689, %v544, 0
  %v827 = vsel %vm689, %v549, 0
  %v830 = vsel %vm689, %v554, 0
  %832 = vmatprep.subr.mxu0 0.0
  %833 = vmatpush1.msra.mxu0 %v557
  %834 = vmatprep.subr.mxu0 0.0
  %835 = vmatpush1.msra.mxu0 %v558
  %836 = vmatprep.subr.mxu0 0.0
  %837 = vmatpush1.msra.mxu0 %v559
  %838 = vmatprep.subr.mxu0 0.0
  %839 = vmatpush1.msra.mxu0 %v560
  %840 = vmatprep.subr.mxu0 0.0
  %841 = vmatpush1.msra.mxu0 %v561
  %842 = vmatprep.subr.mxu0 0.0
  %843 = vmatpush1.msra.mxu0 %v562
  %844 = vmatprep.subr.mxu0 0.0
  %845 = vmatpush1.msra.mxu0 %v563
  %846 = vmatprep.subr.mxu0 0.0
  %847 = vmatpush1.msra.mxu0 %v564
  %848 = vmatprep.subr.mxu0 0.0
  %849 = vmatpush1.msra.mxu0 0.0
  %850 = vmatprep.subr.mxu0 0.0
  %851 = vmatpush1.msra.mxu0 0.0
  %852 = vmatprep.subr.mxu0 0.0
  %853 = vmatpush1.msra.mxu0 0.0
  %854 = vmatprep.subr.mxu0 0.0
  %855 = vmatpush1.msra.mxu0 0.0
  %856 = vmatprep.subr.mxu0 0.0
  %857 = vmatpush1.msra.mxu0 0.0
  %858 = vmatprep.subr.mxu0 0.0
  %859 = vmatpush1.msra.mxu0 0.0
  %860 = vmatprep.subr.mxu0 0.0
  %861 = vmatpush1.msra.mxu0 0.0
  %862 = vmatprep.subr.mxu0 0.0
  %863 = vmatpush1.msra.mxu0 0.0
  %864 = vmatprep.subr.mxu0 0.0
  %865 = vmatpush1.msra.mxu0 0.0
  %866 = vmatprep.subr.mxu0 0.0
  %867 = vmatpush1.msra.mxu0 0.0
  %868 = vmatprep.subr.mxu0 0.0
  %869 = vmatpush1.msra.mxu0 0.0
  %870 = vmatprep.subr.mxu0 0.0
  %871 = vmatpush1.msra.mxu0 0.0
  %872 = vmatprep.subr.mxu0 0.0
  %873 = vmatpush1.msra.mxu0 0.0
  %874 = vmatprep.subr.mxu0 0.0
  %875 = vmatpush1.msra.mxu0 0.0
  %876 = vmatprep.subr.mxu0 0.0
  %877 = vmatpush1.msra.mxu0 0.0
  %878 = vmatprep.subr.mxu0 0.0
  %879 = vmatpush1.msra.mxu0 0.0
  %880 = vmatprep.subr.mxu0 0.0
  %881 = vmatpush1.msra.mxu0 0.0
  %882 = vmatprep.subr.mxu0 0.0
  %883 = vmatpush1.msra.mxu0 0.0
  %884 = vmatprep.subr.mxu0 0.0
  %885 = vmatpush1.msra.mxu0 0.0
  %886 = vmatprep.subr.mxu0 0.0
  %887 = vmatpush1.msra.mxu0 0.0
  %888 = vmatprep.subr.mxu0 0.0
  %889 = vmatpush1.msra.mxu0 0.0
  %890 = vmatprep.subr.mxu0 0.0
  %891 = vmatpush1.msra.mxu0 0.0
  %892 = vmatprep.subr.mxu0 0.0
  %893 = vmatpush1.msra.mxu0 0.0
  %894 = vmatprep.subr.mxu0 0.0
  %895 = vmatpush1.msra.mxu0 0.0
  %896 = vmatprep.mubr.f32.mxu0 0.0
  %897 = vmatmul.mubr.f32.gmra.mrb[0].mxu0 %v812
  %v898 = vpop.f32.mrb[0].mxu0
  %v899 = vadd.f32 %v778, %v898
  %v900 = vpop.f32.mrb[0].mxu0
  %901 = vmatprep.mubr.f32.mxu0 0.0
  %902 = vmatmul.mubr.f32.gmra.mrb[0].mxu0 %v815
  %v903 = vpop.f32.mrb[0].mxu0
  %v904 = vadd.f32 %v783, %v903
  %v905 = vpop.f32.mrb[0].mxu0
  %906 = vmatprep.mubr.f32.mxu0 0.0
  %907 = vmatmul.mubr.f32.gmra.mrb[0].mxu0 %v818
  %v908 = vpop.f32.mrb[0].mxu0
  %v909 = vadd.f32 %v788, %v908
  %v910 = vpop.f32.mrb[0].mxu0
  %911 = vmatprep.mubr.f32.mxu0 0.0
  %912 = vmatmul.mubr.f32.gmra.mrb[0].mxu0 %v821
  %v913 = vpop.f32.mrb[0].mxu0
  %v914 = vadd.f32 %v793, %v913
  %v915 = vpop.f32.mrb[0].mxu0
  %916 = vmatprep.mubr.f32.mxu0 0.0
  %917 = vmatmul.mubr.f32.gmra.mrb[0].mxu0 %v824
  %v918 = vpop.f32.mrb[0].mxu0
  %v919 = vadd.f32 %v798, %v918
  %v920 = vpop.f32.mrb[0].mxu0
  %921 = vmatprep.mubr.f32.mxu0 0.0
  %922 = vmatmul.mubr.f32.gmra.mrb[0].mxu0 %v827
  %v923 = vpop.f32.mrb[0].mxu0
  %v924 = vadd.f32 %v803, %v923
  %v925 = vpop.f32.mrb[0].mxu0
  %926 = vmatprep.mubr.f32.mxu0 0.0
  %927 = vmatmul.mubr.f32.gmra.mrb[0].mxu0 %v830
  %v928 = vpop.f32.mrb[0].mxu0
  %v929 = vadd.f32 %v808, %v928
  %v930 = vpop.f32.mrb[0].mxu0
  %931 = vdwg.mxu0
  %s932 = scalar_lea.vmem %s3, 224
  %v933 = vld [vmem:[%s932] sm:$0xff]
  %v934 = vld [vmem:[%s932 + $0x8] sm:$0xff]
  %v935 = vld [vmem:[%s932 + $0x10] sm:$0xff]
  %v936 = vld [vmem:[%s932 + $0x18] sm:$0xff]
  %v937 = vld [vmem:[%s932 + $0x20] sm:$0xff]
  %v938 = vld [vmem:[%s932 + $0x28] sm:$0xff]
  %v939 = vld [vmem:[%s932 + $0x30] sm:$0xff]
  %v940 = vld [vmem:[%s932 + $0x38] sm:$0xff]
  %v941 = vld [vmem:[%s932 + $0x40] sm:$0xff]
  %v942 = vld [vmem:[%s932 + $0x48] sm:$0xff]
  %v943 = vld [vmem:[%s932 + $0x50] sm:$0xff]
  %v944 = vld [vmem:[%s932 + $0x58] sm:$0xff]
  %v945 = vld [vmem:[%s932 + $0x60] sm:$0xff]
  %v946 = vld [vmem:[%s932 + $0x68] sm:$0xff]
  %947 = vmatprep.subr.mxu0 0.0
  %948 = vmatpush1.msra.mxu0 %v411
  %949 = vmatprep.subr.mxu0 0.0
  %950 = vmatpush1.msra.mxu0 %v412
  %951 = vmatprep.subr.mxu0 0.0
  %952 = vmatpush1.msra.mxu0 %v413
  %953 = vmatprep.subr.mxu0 0.0
  %954 = vmatpush1.msra.mxu0 %v414
  %955 = vmatprep.subr.mxu0 0.0
  %956 = vmatpush1.msra.mxu0 %v415
  %957 = vmatprep.subr.mxu0 0.0
  %958 = vmatpush1.msra.mxu0 %v416
  %959 = vmatprep.subr.mxu0 0.0
  %960 = vmatpush1.msra.mxu0 %v417
  %961 = vmatprep.subr.mxu0 0.0
  %962 = vmatpush1.msra.mxu0 %v418
  %963 = vmatprep.subr.mxu0 0.0
  %964 = vmatpush1.msra.mxu0 %v419
  %965 = vmatprep.subr.mxu0 0.0
  %966 = vmatpush1.msra.mxu0 %v420
  %967 = vmatprep.subr.mxu0 0.0
  %968 = vmatpush1.msra.mxu0 %v421
  %969 = vmatprep.subr.mxu0 0.0
  %970 = vmatpush1.msra.mxu0 %v422
  %971 = vmatprep.subr.mxu0 0.0
  %972 = vmatpush1.msra.mxu0 %v423
  %973 = vmatprep.subr.mxu0 0.0
  %974 = vmatpush1.msra.mxu0 %v424
  %975 = vmatprep.subr.mxu0 0.0
  %976 = vmatpush1.msra.mxu0 %v425
  %977 = vmatprep.subr.mxu0 0.0
  %978 = vmatpush1.msra.mxu0 %v426
  %979 = vmatprep.subr.mxu0 0.0
  %980 = vmatpush1.msra.mxu0 %v427
  %981 = vmatprep.subr.mxu0 0.0
  %982 = vmatpush1.msra.mxu0 %v428
  %983 = vmatprep.subr.mxu0 0.0
  %984 = vmatpush1.msra.mxu0 %v429
  %985 = vmatprep.subr.mxu0 0.0
  %986 = vmatpush1.msra.mxu0 %v430
  %987 = vmatprep.subr.mxu0 0.0
  %988 = vmatpush1.msra.mxu0 %v431
  %989 = vmatprep.subr.mxu0 0.0
  %990 = vmatpush1.msra.mxu0 %v432
  %991 = vmatprep.subr.mxu0 0.0
  %992 = vmatpush1.msra.mxu0 %v433
  %993 = vmatprep.subr.mxu0 0.0
  %994 = vmatpush1.msra.mxu0 %v434
  %995 = vmatprep.subr.mxu0 0.0
  %996 = vmatpush1.msra.mxu0 %v435
  %997 = vmatprep.subr.mxu0 0.0
  %998 = vmatpush1.msra.mxu0 %v436
  %999 = vmatprep.subr.mxu0 0.0
  %1000 = vmatpush1.msra.mxu0 %v437
  %1001 = vmatprep.subr.mxu0 0.0
  %1002 = vmatpush1.msra.mxu0 %v438
  %1003 = vmatprep.subr.mxu0 0.0
  %1004 = vmatpush1.msra.mxu0 %v439
  %1005 = vmatprep.subr.mxu0 0.0
  %1006 = vmatpush1.msra.mxu0 %v440
  %1007 = vmatprep.subr.mxu0 0.0
  %1008 = vmatpush1.msra.mxu0 %v441
  %1009 = vmatprep.subr.mxu0 0.0
  %1010 = vmatpush1.msra.mxu0 %v442
  %1011 = vmatprep.mubr.f32.mxu0 %v934
  %1012 = vmatmul.mubr.f32.gmra.mrb[0].mxu0 %v933
  %v1013 = vpop.f32.mrb[0].mxu0
  %v1014 = vadd.f32 0.0, %v1013
  %v1015 = vpop.f32.mrb[0].mxu0
  %1016 = vmatprep.mubr.f32.mxu0 %v936
  %1017 = vmatmul.mubr.f32.gmra.mrb[0].mxu0 %v935
  %v1018 = vpop.f32.mrb[0].mxu0
  %v1019 = vadd.f32 0.0, %v1018
  %v1020 = vpop.f32.mrb[0].mxu0
  %1021 = vmatprep.mubr.f32.mxu0 %v938
  %1022 = vmatmul.mubr.f32.gmra.mrb[0].mxu0 %v937
  %v1023 = vpop.f32.mrb[0].mxu0
  %v1024 = vadd.f32 0.0, %v1023
  %v1025 = vpop.f32.mrb[0].mxu0
  %1026 = vmatprep.mubr.f32.mxu0 %v940
  %1027 = vmatmul.mubr.f32.gmra.mrb[0].mxu0 %v939
  %v1028 = vpop.f32.mrb[0].mxu0
  %v1029 = vadd.f32 0.0, %v1028
  %v1030 = vpop.f32.mrb[0].mxu0
  %1031 = vmatprep.mubr.f32.mxu0 %v942
  %1032 = vmatmul.mubr.f32.gmra.mrb[0].mxu0 %v941
  %v1033 = vpop.f32.mrb[0].mxu0
  %v1034 = vadd.f32 0.0, %v1033
  %v1035 = vpop.f32.mrb[0].mxu0
  %1036 = vmatprep.mubr.f32.mxu0 %v944
  %1037 = vmatmul.mubr.f32.gmra.mrb[0].mxu0 %v943
  %v1038 = vpop.f32.mrb[0].mxu0
  %v1039 = vadd.f32 0.0, %v1038
  %v1040 = vpop.f32.mrb[0].mxu0
  %1041 = vmatprep.mubr.f32.mxu0 %v946
  %1042 = vmatmul.mubr.f32.gmra.mrb[0].mxu0 %v945
  %v1043 = vpop.f32.mrb[0].mxu0
  %v1044 = vadd.f32 0.0, %v1043
  %v1045 = vpop.f32.mrb[0].mxu0
  %1046 = vdwg.mxu0
  %s1047 = scalar_lea.vmem %s4, 128
  %v1048 = vld [vmem:[%s1047] sm:$0xff]
  %v1049 = vld [vmem:[%s1047 + $0x8] sm:$0xff]
  %v1050 = vld [vmem:[%s1047 + $0x10] sm:$0xff]
  %v1051 = vld [vmem:[%s1047 + $0x18] sm:$0xff]
  %v1052 = vld [vmem:[%s1047 + $0x20] sm:$0xff]
  %v1053 = vld [vmem:[%s1047 + $0x28] sm:$0xff]
  %v1054 = vld [vmem:[%s1047 + $0x30] sm:$0xff]
  %v1055 = vld [vmem:[%s1047 + $0x38] sm:$0xff]
  %v1057 = vsel %vm689, %v1014, 0
  %v1060 = vsel %vm689, %v1019, 0
  %v1063 = vsel %vm689, %v1024, 0
  %v1066 = vsel %vm689, %v1029, 0
  %v1069 = vsel %vm689, %v1034, 0
  %v1072 = vsel %vm689, %v1039, 0
  %v1075 = vsel %vm689, %v1044, 0
  %1077 = vmatprep.subr.mxu0 0.0
  %1078 = vmatpush1.msra.mxu0 %v1048
  %1079 = vmatprep.subr.mxu0 0.0
  %1080 = vmatpush1.msra.mxu0 %v1049
  %1081 = vmatprep.subr.mxu0 0.0
  %1082 = vmatpush1.msra.mxu0 %v1050
  %1083 = vmatprep.subr.mxu0 0.0
  %1084 = vmatpush1.msra.mxu0 %v1051
  %1085 = vmatprep.subr.mxu0 0.0
  %1086 = vmatpush1.msra.mxu0 %v1052
  %1087 = vmatprep.subr.mxu0 0.0
  %1088 = vmatpush1.msra.mxu0 %v1053
  %1089 = vmatprep.subr.mxu0 0.0
  %1090 = vmatpush1.msra.mxu0 %v1054
  %1091 = vmatprep.subr.mxu0 0.0
  %1092 = vmatpush1.msra.mxu0 %v1055
  %1093 = vmatprep.subr.mxu0 0.0
  %1094 = vmatpush1.msra.mxu0 0.0
  %1095 = vmatprep.subr.mxu0 0.0
  %1096 = vmatpush1.msra.mxu0 0.0
  %1097 = vmatprep.subr.mxu0 0.0
  %1098 = vmatpush1.msra.mxu0 0.0
  %1099 = vmatprep.subr.mxu0 0.0
  %1100 = vmatpush1.msra.mxu0 0.0
  %1101 = vmatprep.subr.mxu0 0.0
  %1102 = vmatpush1.msra.mxu0 0.0
  %1103 = vmatprep.subr.mxu0 0.0
  %1104 = vmatpush1.msra.mxu0 0.0
  %1105 = vmatprep.subr.mxu0 0.0
  %1106 = vmatpush1.msra.mxu0 0.0
  %1107 = vmatprep.subr.mxu0 0.0
  %1108 = vmatpush1.msra.mxu0 0.0
  %1109 = vmatprep.subr.mxu0 0.0
  %1110 = vmatpush1.msra.mxu0 0.0
  %1111 = vmatprep.subr.mxu0 0.0
  %1112 = vmatpush1.msra.mxu0 0.0
  %1113 = vmatprep.subr.mxu0 0.0
  %1114 = vmatpush1.msra.mxu0 0.0
  %1115 = vmatprep.subr.mxu0 0.0
  %1116 = vmatpush1.msra.mxu0 0.0
  %1117 = vmatprep.subr.mxu0 0.0
  %1118 = vmatpush1.msra.mxu0 0.0
  %1119 = vmatprep.subr.mxu0 0.0
  %1120 = vmatpush1.msra.mxu0 0.0
  %1121 = vmatprep.subr.mxu0 0.0
  %1122 = vmatpush1.msra.mxu0 0.0
  %1123 = vmatprep.subr.mxu0 0.0
  %1124 = vmatpush1.msra.mxu0 0.0
  %1125 = vmatprep.subr.mxu0 0.0
  %1126 = vmatpush1.msra.mxu0 0.0
  %1127 = vmatprep.subr.mxu0 0.0
  %1128 = vmatpush1.msra.mxu0 0.0
  %1129 = vmatprep.subr.mxu0 0.0
  %1130 = vmatpush1.msra.mxu0 0.0
  %1131 = vmatprep.subr.mxu0 0.0
  %1132 = vmatpush1.msra.mxu0 0.0
  %1133 = vmatprep.subr.mxu0 0.0
  %1134 = vmatpush1.msra.mxu0 0.0
  %1135 = vmatprep.subr.mxu0 0.0
  %1136 = vmatpush1.msra.mxu0 0.0
  %1137 = vmatprep.subr.mxu0 0.0
  %1138 = vmatpush1.msra.mxu0 0.0
  %1139 = vmatprep.subr.mxu0 0.0
  %1140 = vmatpush1.msra.mxu0 0.0
  %1141 = vmatprep.mubr.f32.mxu0 0.0
  %1142 = vmatmul.mubr.f32.gmra.mrb[0].mxu0 %v1057
  %v1143 = vpop.f32.mrb[0].mxu0
  %v1144 = vadd.f32 0.0, %v1143
  %v1145 = vpop.f32.mrb[0].mxu0
  %1146 = vmatprep.mubr.f32.mxu0 0.0
  %1147 = vmatmul.mubr.f32.gmra.mrb[0].mxu0 %v1060
  %v1148 = vpop.f32.mrb[0].mxu0
  %v1149 = vadd.f32 0.0, %v1148
  %v1150 = vpop.f32.mrb[0].mxu0
  %1151 = vmatprep.mubr.f32.mxu0 0.0
  %1152 = vmatmul.mubr.f32.gmra.mrb[0].mxu0 %v1063
  %v1153 = vpop.f32.mrb[0].mxu0
  %v1154 = vadd.f32 0.0, %v1153
  %v1155 = vpop.f32.mrb[0].mxu0
  %1156 = vmatprep.mubr.f32.mxu0 0.0
  %1157 = vmatmul.mubr.f32.gmra.mrb[0].mxu0 %v1066
  %v1158 = vpop.f32.mrb[0].mxu0
  %v1159 = vadd.f32 0.0, %v1158
  %v1160 = vpop.f32.mrb[0].mxu0
  %1161 = vmatprep.mubr.f32.mxu0 0.0
  %1162 = vmatmul.mubr.f32.gmra.mrb[0].mxu0 %v1069
  %v1163 = vpop.f32.mrb[0].mxu0
  %v1164 = vadd.f32 0.0, %v1163
  %v1165 = vpop.f32.mrb[0].mxu0
  %1166 = vmatprep.mubr.f32.mxu0 0.0
  %1167 = vmatmul.mubr.f32.gmra.mrb[0].mxu0 %v1072
  %v1168 = vpop.f32.mrb[0].mxu0
  %v1169 = vadd.f32 0.0, %v1168
  %v1170 = vpop.f32.mrb[0].mxu0
  %1171 = vmatprep.mubr.f32.mxu0 0.0
  %1172 = vmatmul.mubr.f32.gmra.mrb[0].mxu0 %v1075
  %v1173 = vpop.f32.mrb[0].mxu0
  %v1174 = vadd.f32 0.0, %v1173
  %v1175 = vpop.f32.mrb[0].mxu0
  %1176 = vdwg.mxu0
  %v1177 = vadd.f32 %v899, %v1144
  %v1178 = vadd.f32 %v904, %v1149
  %v1179 = vadd.f32 %v909, %v1154
  %v1180 = vadd.f32 %v914, %v1159
  %v1181 = vadd.f32 %v919, %v1164
  %v1182 = vadd.f32 %v924, %v1169
  %v1183 = vadd.f32 %v929, %v1174
  %s1184 = scalar_lea.vmem %s3, 336
  %v1185 = vld [vmem:[%s1184] sm:$0xff]
  %v1186 = vld [vmem:[%s1184 + $0x8] sm:$0xff]
  %v1187 = vld [vmem:[%s1184 + $0x10] sm:$0xff]
  %v1188 = vld [vmem:[%s1184 + $0x18] sm:$0xff]
  %v1189 = vld [vmem:[%s1184 + $0x20] sm:$0xff]
  %v1190 = vld [vmem:[%s1184 + $0x28] sm:$0xff]
  %v1191 = vld [vmem:[%s1184 + $0x30] sm:$0xff]
  %v1192 = vld [vmem:[%s1184 + $0x38] sm:$0xff]
  %v1193 = vld [vmem:[%s1184 + $0x40] sm:$0xff]
  %v1194 = vld [vmem:[%s1184 + $0x48] sm:$0xff]
  %v1195 = vld [vmem:[%s1184 + $0x50] sm:$0xff]
  %v1196 = vld [vmem:[%s1184 + $0x58] sm:$0xff]
  %v1197 = vld [vmem:[%s1184 + $0x60] sm:$0xff]
  %v1198 = vld [vmem:[%s1184 + $0x68] sm:$0xff]
  %1199 = vmatprep.subr.mxu0 0.0
  %1200 = vmatpush1.msra.mxu0 %v411
  %1201 = vmatprep.subr.mxu0 0.0
  %1202 = vmatpush1.msra.mxu0 %v412
  %1203 = vmatprep.subr.mxu0 0.0
  %1204 = vmatpush1.msra.mxu0 %v413
  %1205 = vmatprep.subr.mxu0 0.0
  %1206 = vmatpush1.msra.mxu0 %v414
  %1207 = vmatprep.subr.mxu0 0.0
  %1208 = vmatpush1.msra.mxu0 %v415
  %1209 = vmatprep.subr.mxu0 0.0
  %1210 = vmatpush1.msra.mxu0 %v416
  %1211 = vmatprep.subr.mxu0 0.0
  %1212 = vmatpush1.msra.mxu0 %v417
  %1213 = vmatprep.subr.mxu0 0.0
  %1214 = vmatpush1.msra.mxu0 %v418
  %1215 = vmatprep.subr.mxu0 0.0
  %1216 = vmatpush1.msra.mxu0 %v419
  %1217 = vmatprep.subr.mxu0 0.0
  %1218 = vmatpush1.msra.mxu0 %v420
  %1219 = vmatprep.subr.mxu0 0.0
  %1220 = vmatpush1.msra.mxu0 %v421
  %1221 = vmatprep.subr.mxu0 0.0
  %1222 = vmatpush1.msra.mxu0 %v422
  %1223 = vmatprep.subr.mxu0 0.0
  %1224 = vmatpush1.msra.mxu0 %v423
  %1225 = vmatprep.subr.mxu0 0.0
  %1226 = vmatpush1.msra.mxu0 %v424
  %1227 = vmatprep.subr.mxu0 0.0
  %1228 = vmatpush1.msra.mxu0 %v425
  %1229 = vmatprep.subr.mxu0 0.0
  %1230 = vmatpush1.msra.mxu0 %v426
  %1231 = vmatprep.subr.mxu0 0.0
  %1232 = vmatpush1.msra.mxu0 %v427
  %1233 = vmatprep.subr.mxu0 0.0
  %1234 = vmatpush1.msra.mxu0 %v428
  %1235 = vmatprep.subr.mxu0 0.0
  %1236 = vmatpush1.msra.mxu0 %v429
  %1237 = vmatprep.subr.mxu0 0.0
  %1238 = vmatpush1.msra.mxu0 %v430
  %1239 = vmatprep.subr.mxu0 0.0
  %1240 = vmatpush1.msra.mxu0 %v431
  %1241 = vmatprep.subr.mxu0 0.0
  %1242 = vmatpush1.msra.mxu0 %v432
  %1243 = vmatprep.subr.mxu0 0.0
  %1244 = vmatpush1.msra.mxu0 %v433
  %1245 = vmatprep.subr.mxu0 0.0
  %1246 = vmatpush1.msra.mxu0 %v434
  %1247 = vmatprep.subr.mxu0 0.0
  %1248 = vmatpush1.msra.mxu0 %v435
  %1249 = vmatprep.subr.mxu0 0.0
  %1250 = vmatpush1.msra.mxu0 %v436
  %1251 = vmatprep.subr.mxu0 0.0
  %1252 = vmatpush1.msra.mxu0 %v437
  %1253 = vmatprep.subr.mxu0 0.0
  %1254 = vmatpush1.msra.mxu0 %v438
  %1255 = vmatprep.subr.mxu0 0.0
  %1256 = vmatpush1.msra.mxu0 %v439
  %1257 = vmatprep.subr.mxu0 0.0
  %1258 = vmatpush1.msra.mxu0 %v440
  %1259 = vmatprep.subr.mxu0 0.0
  %1260 = vmatpush1.msra.mxu0 %v441
  %1261 = vmatprep.subr.mxu0 0.0
  %1262 = vmatpush1.msra.mxu0 %v442
  %1263 = vmatprep.mubr.f32.mxu0 %v1186
  %1264 = vmatmul.mubr.f32.gmra.mrb[0].mxu0 %v1185
  %v1265 = vpop.f32.mrb[0].mxu0
  %v1266 = vadd.f32 0.0, %v1265
  %v1267 = vpop.f32.mrb[0].mxu0
  %1268 = vmatprep.mubr.f32.mxu0 %v1188
  %1269 = vmatmul.mubr.f32.gmra.mrb[0].mxu0 %v1187
  %v1270 = vpop.f32.mrb[0].mxu0
  %v1271 = vadd.f32 0.0, %v1270
  %v1272 = vpop.f32.mrb[0].mxu0
  %1273 = vmatprep.mubr.f32.mxu0 %v1190
  %1274 = vmatmul.mubr.f32.gmra.mrb[0].mxu0 %v1189
  %v1275 = vpop.f32.mrb[0].mxu0
  %v1276 = vadd.f32 0.0, %v1275
  %v1277 = vpop.f32.mrb[0].mxu0
  %1278 = vmatprep.mubr.f32.mxu0 %v1192
  %1279 = vmatmul.mubr.f32.gmra.mrb[0].mxu0 %v1191
  %v1280 = vpop.f32.mrb[0].mxu0
  %v1281 = vadd.f32 0.0, %v1280
  %v1282 = vpop.f32.mrb[0].mxu0
  %1283 = vmatprep.mubr.f32.mxu0 %v1194
  %1284 = vmatmul.mubr.f32.gmra.mrb[0].mxu0 %v1193
  %v1285 = vpop.f32.mrb[0].mxu0
  %v1286 = vadd.f32 0.0, %v1285
  %v1287 = vpop.f32.mrb[0].mxu0
  %1288 = vmatprep.mubr.f32.mxu0 %v1196
  %1289 = vmatmul.mubr.f32.gmra.mrb[0].mxu0 %v1195
  %v1290 = vpop.f32.mrb[0].mxu0
  %v1291 = vadd.f32 0.0, %v1290
  %v1292 = vpop.f32.mrb[0].mxu0
  %1293 = vmatprep.mubr.f32.mxu0 %v1198
  %1294 = vmatmul.mubr.f32.gmra.mrb[0].mxu0 %v1197
  %v1295 = vpop.f32.mrb[0].mxu0
  %v1296 = vadd.f32 0.0, %v1295
  %v1297 = vpop.f32.mrb[0].mxu0
  %1298 = vdwg.mxu0
  %s1299 = scalar_lea.vmem %s4, 192
  %v1300 = vld [vmem:[%s1299] sm:$0xff]
  %v1301 = vld [vmem:[%s1299 + $0x8] sm:$0xff]
  %v1302 = vld [vmem:[%s1299 + $0x10] sm:$0xff]
  %v1303 = vld [vmem:[%s1299 + $0x18] sm:$0xff]
  %v1304 = vld [vmem:[%s1299 + $0x20] sm:$0xff]
  %v1305 = vld [vmem:[%s1299 + $0x28] sm:$0xff]
  %v1306 = vld [vmem:[%s1299 + $0x30] sm:$0xff]
  %v1307 = vld [vmem:[%s1299 + $0x38] sm:$0xff]
  %v1309 = vsel %vm689, %v1266, 0
  %v1312 = vsel %vm689, %v1271, 0
  %v1315 = vsel %vm689, %v1276, 0
  %v1318 = vsel %vm689, %v1281, 0
  %v1321 = vsel %vm689, %v1286, 0
  %v1324 = vsel %vm689, %v1291, 0
  %v1327 = vsel %vm689, %v1296, 0
  %1329 = vmatprep.subr.mxu0 0.0
  %1330 = vmatpush1.msra.mxu0 %v1300
  %1331 = vmatprep.subr.mxu0 0.0
  %1332 = vmatpush1.msra.mxu0 %v1301
  %1333 = vmatprep.subr.mxu0 0.0
  %1334 = vmatpush1.msra.mxu0 %v1302
  %1335 = vmatprep.subr.mxu0 0.0
  %1336 = vmatpush1.msra.mxu0 %v1303
  %1337 = vmatprep.subr.mxu0 0.0
  %1338 = vmatpush1.msra.mxu0 %v1304
  %1339 = vmatprep.subr.mxu0 0.0
  %1340 = vmatpush1.msra.mxu0 %v1305
  %1341 = vmatprep.subr.mxu0 0.0
  %1342 = vmatpush1.msra.mxu0 %v1306
  %1343 = vmatprep.subr.mxu0 0.0
  %1344 = vmatpush1.msra.mxu0 %v1307
  %1345 = vmatprep.subr.mxu0 0.0
  %1346 = vmatpush1.msra.mxu0 0.0
  %1347 = vmatprep.subr.mxu0 0.0
  %1348 = vmatpush1.msra.mxu0 0.0
  %1349 = vmatprep.subr.mxu0 0.0
  %1350 = vmatpush1.msra.mxu0 0.0
  %1351 = vmatprep.subr.mxu0 0.0
  %1352 = vmatpush1.msra.mxu0 0.0
  %1353 = vmatprep.subr.mxu0 0.0
  %1354 = vmatpush1.msra.mxu0 0.0
  %1355 = vmatprep.subr.mxu0 0.0
  %1356 = vmatpush1.msra.mxu0 0.0
  %1357 = vmatprep.subr.mxu0 0.0
  %1358 = vmatpush1.msra.mxu0 0.0
  %1359 = vmatprep.subr.mxu0 0.0
  %1360 = vmatpush1.msra.mxu0 0.0
  %1361 = vmatprep.subr.mxu0 0.0
  %1362 = vmatpush1.msra.mxu0 0.0
  %1363 = vmatprep.subr.mxu0 0.0
  %1364 = vmatpush1.msra.mxu0 0.0
  %1365 = vmatprep.subr.mxu0 0.0
  %1366 = vmatpush1.msra.mxu0 0.0
  %1367 = vmatprep.subr.mxu0 0.0
  %1368 = vmatpush1.msra.mxu0 0.0
  %1369 = vmatprep.subr.mxu0 0.0
  %1370 = vmatpush1.msra.mxu0 0.0
  %1371 = vmatprep.subr.mxu0 0.0
  %1372 = vmatpush1.msra.mxu0 0.0
  %1373 = vmatprep.subr.mxu0 0.0
  %1374 = vmatpush1.msra.mxu0 0.0
  %1375 = vmatprep.subr.mxu0 0.0
  %1376 = vmatpush1.msra.mxu0 0.0
  %1377 = vmatprep.subr.mxu0 0.0
  %1378 = vmatpush1.msra.mxu0 0.0
  %1379 = vmatprep.subr.mxu0 0.0
  %1380 = vmatpush1.msra.mxu0 0.0
  %1381 = vmatprep.subr.mxu0 0.0
  %1382 = vmatpush1.msra.mxu0 0.0
  %1383 = vmatprep.subr.mxu0 0.0
  %1384 = vmatpush1.msra.mxu0 0.0
  %1385 = vmatprep.subr.mxu0 0.0
  %1386 = vmatpush1.msra.mxu0 0.0
  %1387 = vmatprep.subr.mxu0 0.0
  %1388 = vmatpush1.msra.mxu0 0.0
  %1389 = vmatprep.subr.mxu0 0.0
  %1390 = vmatpush1.msra.mxu0 0.0
  %1391 = vmatprep.subr.mxu0 0.0
  %1392 = vmatpush1.msra.mxu0 0.0
  %1393 = vmatprep.mubr.f32.mxu0 0.0
  %1394 = vmatmul.mubr.f32.gmra.mrb[0].mxu0 %v1309
  %v1395 = vpop.f32.mrb[0].mxu0
  %v1396 = vadd.f32 0.0, %v1395
  %v1397 = vpop.f32.mrb[0].mxu0
  %1398 = vmatprep.mubr.f32.mxu0 0.0
  %1399 = vmatmul.mubr.f32.gmra.mrb[0].mxu0 %v1312
  %v1400 = vpop.f32.mrb[0].mxu0
  %v1401 = vadd.f32 0.0, %v1400
  %v1402 = vpop.f32.mrb[0].mxu0
  %1403 = vmatprep.mubr.f32.mxu0 0.0
  %1404 = vmatmul.mubr.f32.gmra.mrb[0].mxu0 %v1315
  %v1405 = vpop.f32.mrb[0].mxu0
  %v1406 = vadd.f32 0.0, %v1405
  %v1407 = vpop.f32.mrb[0].mxu0
  %1408 = vmatprep.mubr.f32.mxu0 0.0
  %1409 = vmatmul.mubr.f32.gmra.mrb[0].mxu0 %v1318
  %v1410 = vpop.f32.mrb[0].mxu0
  %v1411 = vadd.f32 0.0, %v1410
  %v1412 = vpop.f32.mrb[0].mxu0
  %1413 = vmatprep.mubr.f32.mxu0 0.0
  %1414 = vmatmul.mubr.f32.gmra.mrb[0].mxu0 %v1321
  %v1415 = vpop.f32.mrb[0].mxu0
  %v1416 = vadd.f32 0.0, %v1415
  %v1417 = vpop.f32.mrb[0].mxu0
  %1418 = vmatprep.mubr.f32.mxu0 0.0
  %1419 = vmatmul.mubr.f32.gmra.mrb[0].mxu0 %v1324
  %v1420 = vpop.f32.mrb[0].mxu0
  %v1421 = vadd.f32 0.0, %v1420
  %v1422 = vpop.f32.mrb[0].mxu0
  %1423 = vmatprep.mubr.f32.mxu0 0.0
  %1424 = vmatmul.mubr.f32.gmra.mrb[0].mxu0 %v1327
  %v1425 = vpop.f32.mrb[0].mxu0
  %v1426 = vadd.f32 0.0, %v1425
  %v1427 = vpop.f32.mrb[0].mxu0
  %1428 = vdwg.mxu0
  %v1429 = vadd.f32 %v1177, %v1396
  %v1430 = vadd.f32 %v1178, %v1401
  %v1431 = vadd.f32 %v1179, %v1406
  %v1432 = vadd.f32 %v1180, %v1411
  %v1433 = vadd.f32 %v1181, %v1416
  %v1434 = vadd.f32 %v1182, %v1421
  %v1435 = vadd.f32 %v1183, %v1426
  %s1436 = scalar_lea.vmem %s3, 448
  %v1437 = vld [vmem:[%s1436] sm:$0xff]
  %v1438 = vld [vmem:[%s1436 + $0x8] sm:$0xff]
  %v1439 = vld [vmem:[%s1436 + $0x10] sm:$0xff]
  %v1440 = vld [vmem:[%s1436 + $0x18] sm:$0xff]
  %v1441 = vld [vmem:[%s1436 + $0x20] sm:$0xff]
  %v1442 = vld [vmem:[%s1436 + $0x28] sm:$0xff]
  %v1443 = vld [vmem:[%s1436 + $0x30] sm:$0xff]
  %v1444 = vld [vmem:[%s1436 + $0x38] sm:$0xff]
  %v1445 = vld [vmem:[%s1436 + $0x40] sm:$0xff]
  %v1446 = vld [vmem:[%s1436 + $0x48] sm:$0xff]
  %v1447 = vld [vmem:[%s1436 + $0x50] sm:$0xff]
  %v1448 = vld [vmem:[%s1436 + $0x58] sm:$0xff]
  %v1449 = vld [vmem:[%s1436 + $0x60] sm:$0xff]
  %v1450 = vld [vmem:[%s1436 + $0x68] sm:$0xff]
  %1451 = vmatprep.subr.mxu0 0.0
  %1452 = vmatpush1.msra.mxu0 %v411
  %1453 = vmatprep.subr.mxu0 0.0
  %1454 = vmatpush1.msra.mxu0 %v412
  %1455 = vmatprep.subr.mxu0 0.0
  %1456 = vmatpush1.msra.mxu0 %v413
  %1457 = vmatprep.subr.mxu0 0.0
  %1458 = vmatpush1.msra.mxu0 %v414
  %1459 = vmatprep.subr.mxu0 0.0
  %1460 = vmatpush1.msra.mxu0 %v415
  %1461 = vmatprep.subr.mxu0 0.0
  %1462 = vmatpush1.msra.mxu0 %v416
  %1463 = vmatprep.subr.mxu0 0.0
  %1464 = vmatpush1.msra.mxu0 %v417
  %1465 = vmatprep.subr.mxu0 0.0
  %1466 = vmatpush1.msra.mxu0 %v418
  %1467 = vmatprep.subr.mxu0 0.0
  %1468 = vmatpush1.msra.mxu0 %v419
  %1469 = vmatprep.subr.mxu0 0.0
  %1470 = vmatpush1.msra.mxu0 %v420
  %1471 = vmatprep.subr.mxu0 0.0
  %1472 = vmatpush1.msra.mxu0 %v421
  %1473 = vmatprep.subr.mxu0 0.0
  %1474 = vmatpush1.msra.mxu0 %v422
  %1475 = vmatprep.subr.mxu0 0.0
  %1476 = vmatpush1.msra.mxu0 %v423
  %1477 = vmatprep.subr.mxu0 0.0
  %1478 = vmatpush1.msra.mxu0 %v424
  %1479 = vmatprep.subr.mxu0 0.0
  %1480 = vmatpush1.msra.mxu0 %v425
  %1481 = vmatprep.subr.mxu0 0.0
  %1482 = vmatpush1.msra.mxu0 %v426
  %1483 = vmatprep.subr.mxu0 0.0
  %1484 = vmatpush1.msra.mxu0 %v427
  %1485 = vmatprep.subr.mxu0 0.0
  %1486 = vmatpush1.msra.mxu0 %v428
  %1487 = vmatprep.subr.mxu0 0.0
  %1488 = vmatpush1.msra.mxu0 %v429
  %1489 = vmatprep.subr.mxu0 0.0
  %1490 = vmatpush1.msra.mxu0 %v430
  %1491 = vmatprep.subr.mxu0 0.0
  %1492 = vmatpush1.msra.mxu0 %v431
  %1493 = vmatprep.subr.mxu0 0.0
  %1494 = vmatpush1.msra.mxu0 %v432
  %1495 = vmatprep.subr.mxu0 0.0
  %1496 = vmatpush1.msra.mxu0 %v433
  %1497 = vmatprep.subr.mxu0 0.0
  %1498 = vmatpush1.msra.mxu0 %v434
  %1499 = vmatprep.subr.mxu0 0.0
  %1500 = vmatpush1.msra.mxu0 %v435
  %1501 = vmatprep.subr.mxu0 0.0
  %1502 = vmatpush1.msra.mxu0 %v436
  %1503 = vmatprep.subr.mxu0 0.0
  %1504 = vmatpush1.msra.mxu0 %v437
  %1505 = vmatprep.subr.mxu0 0.0
  %1506 = vmatpush1.msra.mxu0 %v438
  %1507 = vmatprep.subr.mxu0 0.0
  %1508 = vmatpush1.msra.mxu0 %v439
  %1509 = vmatprep.subr.mxu0 0.0
  %1510 = vmatpush1.msra.mxu0 %v440
  %1511 = vmatprep.subr.mxu0 0.0
  %1512 = vmatpush1.msra.mxu0 %v441
  %1513 = vmatprep.subr.mxu0 0.0
  %1514 = vmatpush1.msra.mxu0 %v442
  %1515 = vmatprep.mubr.f32.mxu0 %v1438
  %1516 = vmatmul.mubr.f32.gmra.mrb[0].mxu0 %v1437
  %v1517 = vpop.f32.mrb[0].mxu0
  %v1518 = vadd.f32 0.0, %v1517
  %v1519 = vpop.f32.mrb[0].mxu0
  %1520 = vmatprep.mubr.f32.mxu0 %v1440
  %1521 = vmatmul.mubr.f32.gmra.mrb[0].mxu0 %v1439
  %v1522 = vpop.f32.mrb[0].mxu0
  %v1523 = vadd.f32 0.0, %v1522
  %v1524 = vpop.f32.mrb[0].mxu0
  %1525 = vmatprep.mubr.f32.mxu0 %v1442
  %1526 = vmatmul.mubr.f32.gmra.mrb[0].mxu0 %v1441
  %v1527 = vpop.f32.mrb[0].mxu0
  %v1528 = vadd.f32 0.0, %v1527
  %v1529 = vpop.f32.mrb[0].mxu0
  %1530 = vmatprep.mubr.f32.mxu0 %v1444
  %1531 = vmatmul.mubr.f32.gmra.mrb[0].mxu0 %v1443
  %v1532 = vpop.f32.mrb[0].mxu0
  %v1533 = vadd.f32 0.0, %v1532
  %v1534 = vpop.f32.mrb[0].mxu0
  %1535 = vmatprep.mubr.f32.mxu0 %v1446
  %1536 = vmatmul.mubr.f32.gmra.mrb[0].mxu0 %v1445
  %v1537 = vpop.f32.mrb[0].mxu0
  %v1538 = vadd.f32 0.0, %v1537
  %v1539 = vpop.f32.mrb[0].mxu0
  %1540 = vmatprep.mubr.f32.mxu0 %v1448
  %1541 = vmatmul.mubr.f32.gmra.mrb[0].mxu0 %v1447
  %v1542 = vpop.f32.mrb[0].mxu0
  %v1543 = vadd.f32 0.0, %v1542
  %v1544 = vpop.f32.mrb[0].mxu0
  %1545 = vmatprep.mubr.f32.mxu0 %v1450
  %1546 = vmatmul.mubr.f32.gmra.mrb[0].mxu0 %v1449
  %v1547 = vpop.f32.mrb[0].mxu0
  %v1548 = vadd.f32 0.0, %v1547
  %v1549 = vpop.f32.mrb[0].mxu0
  %1550 = vdwg.mxu0
  %s1551 = scalar_lea.vmem %s4, 256
  %v1552 = vld [vmem:[%s1551] sm:$0xff]
  %v1553 = vld [vmem:[%s1551 + $0x8] sm:$0xff]
  %v1554 = vld [vmem:[%s1551 + $0x10] sm:$0xff]
  %v1555 = vld [vmem:[%s1551 + $0x18] sm:$0xff]
  %v1556 = vld [vmem:[%s1551 + $0x20] sm:$0xff]
  %v1557 = vld [vmem:[%s1551 + $0x28] sm:$0xff]
  %v1558 = vld [vmem:[%s1551 + $0x30] sm:$0xff]
  %v1559 = vld [vmem:[%s1551 + $0x38] sm:$0xff]
  %v1561 = vsel %vm689, %v1518, 0
  %v1564 = vsel %vm689, %v1523, 0
  %v1567 = vsel %vm689, %v1528, 0
  %v1570 = vsel %vm689, %v1533, 0
  %v1573 = vsel %vm689, %v1538, 0
  %v1576 = vsel %vm689, %v1543, 0
  %v1579 = vsel %vm689, %v1548, 0
  %1581 = vmatprep.subr.mxu0 0.0
  %1582 = vmatpush1.msra.mxu0 %v1552
  %1583 = vmatprep.subr.mxu0 0.0
  %1584 = vmatpush1.msra.mxu0 %v1553
  %1585 = vmatprep.subr.mxu0 0.0
  %1586 = vmatpush1.msra.mxu0 %v1554
  %1587 = vmatprep.subr.mxu0 0.0
  %1588 = vmatpush1.msra.mxu0 %v1555
  %1589 = vmatprep.subr.mxu0 0.0
  %1590 = vmatpush1.msra.mxu0 %v1556
  %1591 = vmatprep.subr.mxu0 0.0
  %1592 = vmatpush1.msra.mxu0 %v1557
  %1593 = vmatprep.subr.mxu0 0.0
  %1594 = vmatpush1.msra.mxu0 %v1558
  %1595 = vmatprep.subr.mxu0 0.0
  %1596 = vmatpush1.msra.mxu0 %v1559
  %1597 = vmatprep.subr.mxu0 0.0
  %1598 = vmatpush1.msra.mxu0 0.0
  %1599 = vmatprep.subr.mxu0 0.0
  %1600 = vmatpush1.msra.mxu0 0.0
  %1601 = vmatprep.subr.mxu0 0.0
  %1602 = vmatpush1.msra.mxu0 0.0
  %1603 = vmatprep.subr.mxu0 0.0
  %1604 = vmatpush1.msra.mxu0 0.0
  %1605 = vmatprep.subr.mxu0 0.0
  %1606 = vmatpush1.msra.mxu0 0.0
  %1607 = vmatprep.subr.mxu0 0.0
  %1608 = vmatpush1.msra.mxu0 0.0
  %1609 = vmatprep.subr.mxu0 0.0
  %1610 = vmatpush1.msra.mxu0 0.0
  %1611 = vmatprep.subr.mxu0 0.0
  %1612 = vmatpush1.msra.mxu0 0.0
  %1613 = vmatprep.subr.mxu0 0.0
  %1614 = vmatpush1.msra.mxu0 0.0
  %1615 = vmatprep.subr.mxu0 0.0
  %1616 = vmatpush1.msra.mxu0 0.0
  %1617 = vmatprep.subr.mxu0 0.0
  %1618 = vmatpush1.msra.mxu0 0.0
  %1619 = vmatprep.subr.mxu0 0.0
  %1620 = vmatpush1.msra.mxu0 0.0
  %1621 = vmatprep.subr.mxu0 0.0
  %1622 = vmatpush1.msra.mxu0 0.0
  %1623 = vmatprep.subr.mxu0 0.0
  %1624 = vmatpush1.msra.mxu0 0.0
  %1625 = vmatprep.subr.mxu0 0.0
  %1626 = vmatpush1.msra.mxu0 0.0
  %1627 = vmatprep.subr.mxu0 0.0
  %1628 = vmatpush1.msra.mxu0 0.0
  %1629 = vmatprep.subr.mxu0 0.0
  %1630 = vmatpush1.msra.mxu0 0.0
  %1631 = vmatprep.subr.mxu0 0.0
  %1632 = vmatpush1.msra.mxu0 0.0
  %1633 = vmatprep.subr.mxu0 0.0
  %1634 = vmatpush1.msra.mxu0 0.0
  %1635 = vmatprep.subr.mxu0 0.0
  %1636 = vmatpush1.msra.mxu0 0.0
  %1637 = vmatprep.subr.mxu0 0.0
  %1638 = vmatpush1.msra.mxu0 0.0
  %1639 = vmatprep.subr.mxu0 0.0
  %1640 = vmatpush1.msra.mxu0 0.0
  %1641 = vmatprep.subr.mxu0 0.0
  %1642 = vmatpush1.msra.mxu0 0.0
  %1643 = vmatprep.subr.mxu0 0.0
  %1644 = vmatpush1.msra.mxu0 0.0
  %1645 = vmatprep.mubr.f32.mxu0 0.0
  %1646 = vmatmul.mubr.f32.gmra.mrb[0].mxu0 %v1561
  %v1647 = vpop.f32.mrb[0].mxu0
  %v1648 = vadd.f32 0.0, %v1647
  %v1649 = vpop.f32.mrb[0].mxu0
  %1650 = vmatprep.mubr.f32.mxu0 0.0
  %1651 = vmatmul.mubr.f32.gmra.mrb[0].mxu0 %v1564
  %v1652 = vpop.f32.mrb[0].mxu0
  %v1653 = vadd.f32 0.0, %v1652
  %v1654 = vpop.f32.mrb[0].mxu0
  %1655 = vmatprep.mubr.f32.mxu0 0.0
  %1656 = vmatmul.mubr.f32.gmra.mrb[0].mxu0 %v1567
  %v1657 = vpop.f32.mrb[0].mxu0
  %v1658 = vadd.f32 0.0, %v1657
  %v1659 = vpop.f32.mrb[0].mxu0
  %1660 = vmatprep.mubr.f32.mxu0 0.0
  %1661 = vmatmul.mubr.f32.gmra.mrb[0].mxu0 %v1570
  %v1662 = vpop.f32.mrb[0].mxu0
  %v1663 = vadd.f32 0.0, %v1662
  %v1664 = vpop.f32.mrb[0].mxu0
  %1665 = vmatprep.mubr.f32.mxu0 0.0
  %1666 = vmatmul.mubr.f32.gmra.mrb[0].mxu0 %v1573
  %v1667 = vpop.f32.mrb[0].mxu0
  %v1668 = vadd.f32 0.0, %v1667
  %v1669 = vpop.f32.mrb[0].mxu0
  %1670 = vmatprep.mubr.f32.mxu0 0.0
  %1671 = vmatmul.mubr.f32.gmra.mrb[0].mxu0 %v1576
  %v1672 = vpop.f32.mrb[0].mxu0
  %v1673 = vadd.f32 0.0, %v1672
  %v1674 = vpop.f32.mrb[0].mxu0
  %1675 = vmatprep.mubr.f32.mxu0 0.0
  %1676 = vmatmul.mubr.f32.gmra.mrb[0].mxu0 %v1579
  %v1677 = vpop.f32.mrb[0].mxu0
  %v1678 = vadd.f32 0.0, %v1677
  %v1679 = vpop.f32.mrb[0].mxu0
  %1680 = vdwg.mxu0
  %v1681 = vadd.f32 %v1429, %v1648
  %v1682 = vadd.f32 %v1430, %v1653
  %v1683 = vadd.f32 %v1431, %v1658
  %v1684 = vadd.f32 %v1432, %v1663
  %v1685 = vadd.f32 %v1433, %v1668
  %v1686 = vadd.f32 %v1434, %v1673
  %v1687 = vadd.f32 %v1435, %v1678
  %s1688 = scalar_lea.vmem %s3, 560
  %v1689 = vld [vmem:[%s1688] sm:$0xff]
  %v1690 = vld [vmem:[%s1688 + $0x8] sm:$0xff]
  %v1691 = vld [vmem:[%s1688 + $0x10] sm:$0xff]
  %v1692 = vld [vmem:[%s1688 + $0x18] sm:$0xff]
  %v1693 = vld [vmem:[%s1688 + $0x20] sm:$0xff]
  %v1694 = vld [vmem:[%s1688 + $0x28] sm:$0xff]
  %v1695 = vld [vmem:[%s1688 + $0x30] sm:$0xff]
  %v1696 = vld [vmem:[%s1688 + $0x38] sm:$0xff]
  %v1697 = vld [vmem:[%s1688 + $0x40] sm:$0xff]
  %v1698 = vld [vmem:[%s1688 + $0x48] sm:$0xff]
  %v1699 = vld [vmem:[%s1688 + $0x50] sm:$0xff]
  %v1700 = vld [vmem:[%s1688 + $0x58] sm:$0xff]
  %v1701 = vld [vmem:[%s1688 + $0x60] sm:$0xff]
  %v1702 = vld [vmem:[%s1688 + $0x68] sm:$0xff]
  %1703 = vmatprep.subr.mxu0 0.0
  %1704 = vmatpush1.msra.mxu0 %v411
  %1705 = vmatprep.subr.mxu0 0.0
  %1706 = vmatpush1.msra.mxu0 %v412
  %1707 = vmatprep.subr.mxu0 0.0
  %1708 = vmatpush1.msra.mxu0 %v413
  %1709 = vmatprep.subr.mxu0 0.0
  %1710 = vmatpush1.msra.mxu0 %v414
  %1711 = vmatprep.subr.mxu0 0.0
  %1712 = vmatpush1.msra.mxu0 %v415
  %1713 = vmatprep.subr.mxu0 0.0
  %1714 = vmatpush1.msra.mxu0 %v416
  %1715 = vmatprep.subr.mxu0 0.0
  %1716 = vmatpush1.msra.mxu0 %v417
  %1717 = vmatprep.subr.mxu0 0.0
  %1718 = vmatpush1.msra.mxu0 %v418
  %1719 = vmatprep.subr.mxu0 0.0
  %1720 = vmatpush1.msra.mxu0 %v419
  %1721 = vmatprep.subr.mxu0 0.0
  %1722 = vmatpush1.msra.mxu0 %v420
  %1723 = vmatprep.subr.mxu0 0.0
  %1724 = vmatpush1.msra.mxu0 %v421
  %1725 = vmatprep.subr.mxu0 0.0
  %1726 = vmatpush1.msra.mxu0 %v422
  %1727 = vmatprep.subr.mxu0 0.0
  %1728 = vmatpush1.msra.mxu0 %v423
  %1729 = vmatprep.subr.mxu0 0.0
  %1730 = vmatpush1.msra.mxu0 %v424
  %1731 = vmatprep.subr.mxu0 0.0
  %1732 = vmatpush1.msra.mxu0 %v425
  %1733 = vmatprep.subr.mxu0 0.0
  %1734 = vmatpush1.msra.mxu0 %v426
  %1735 = vmatprep.subr.mxu0 0.0
  %1736 = vmatpush1.msra.mxu0 %v427
  %1737 = vmatprep.subr.mxu0 0.0
  %1738 = vmatpush1.msra.mxu0 %v428
  %1739 = vmatprep.subr.mxu0 0.0
  %1740 = vmatpush1.msra.mxu0 %v429
  %1741 = vmatprep.subr.mxu0 0.0
  %1742 = vmatpush1.msra.mxu0 %v430
  %1743 = vmatprep.subr.mxu0 0.0
  %1744 = vmatpush1.msra.mxu0 %v431
  %1745 = vmatprep.subr.mxu0 0.0
  %1746 = vmatpush1.msra.mxu0 %v432
  %1747 = vmatprep.subr.mxu0 0.0
  %1748 = vmatpush1.msra.mxu0 %v433
  %1749 = vmatprep.subr.mxu0 0.0
  %1750 = vmatpush1.msra.mxu0 %v434
  %1751 = vmatprep.subr.mxu0 0.0
  %1752 = vmatpush1.msra.mxu0 %v435
  %1753 = vmatprep.subr.mxu0 0.0
  %1754 = vmatpush1.msra.mxu0 %v436
  %1755 = vmatprep.subr.mxu0 0.0
  %1756 = vmatpush1.msra.mxu0 %v437
  %1757 = vmatprep.subr.mxu0 0.0
  %1758 = vmatpush1.msra.mxu0 %v438
  %1759 = vmatprep.subr.mxu0 0.0
  %1760 = vmatpush1.msra.mxu0 %v439
  %1761 = vmatprep.subr.mxu0 0.0
  %1762 = vmatpush1.msra.mxu0 %v440
  %1763 = vmatprep.subr.mxu0 0.0
  %1764 = vmatpush1.msra.mxu0 %v441
  %1765 = vmatprep.subr.mxu0 0.0
  %1766 = vmatpush1.msra.mxu0 %v442
  %1767 = vmatprep.mubr.f32.mxu0 %v1690
  %1768 = vmatmul.mubr.f32.gmra.mrb[0].mxu0 %v1689
  %v1769 = vpop.f32.mrb[0].mxu0
  %v1770 = vadd.f32 0.0, %v1769
  %v1771 = vpop.f32.mrb[0].mxu0
  %1772 = vmatprep.mubr.f32.mxu0 %v1692
  %1773 = vmatmul.mubr.f32.gmra.mrb[0].mxu0 %v1691
  %v1774 = vpop.f32.mrb[0].mxu0
  %v1775 = vadd.f32 0.0, %v1774
  %v1776 = vpop.f32.mrb[0].mxu0
  %1777 = vmatprep.mubr.f32.mxu0 %v1694
  %1778 = vmatmul.mubr.f32.gmra.mrb[0].mxu0 %v1693
  %v1779 = vpop.f32.mrb[0].mxu0
  %v1780 = vadd.f32 0.0, %v1779
  %v1781 = vpop.f32.mrb[0].mxu0
  %1782 = vmatprep.mubr.f32.mxu0 %v1696
  %1783 = vmatmul.mubr.f32.gmra.mrb[0].mxu0 %v1695
  %v1784 = vpop.f32.mrb[0].mxu0
  %v1785 = vadd.f32 0.0, %v1784
  %v1786 = vpop.f32.mrb[0].mxu0
  %1787 = vmatprep.mubr.f32.mxu0 %v1698
  %1788 = vmatmul.mubr.f32.gmra.mrb[0].mxu0 %v1697
  %v1789 = vpop.f32.mrb[0].mxu0
  %v1790 = vadd.f32 0.0, %v1789
  %v1791 = vpop.f32.mrb[0].mxu0
  %1792 = vmatprep.mubr.f32.mxu0 %v1700
  %1793 = vmatmul.mubr.f32.gmra.mrb[0].mxu0 %v1699
  %v1794 = vpop.f32.mrb[0].mxu0
  %v1795 = vadd.f32 0.0, %v1794
  %v1796 = vpop.f32.mrb[0].mxu0
  %1797 = vmatprep.mubr.f32.mxu0 %v1702
  %1798 = vmatmul.mubr.f32.gmra.mrb[0].mxu0 %v1701
  %v1799 = vpop.f32.mrb[0].mxu0
  %v1800 = vadd.f32 0.0, %v1799
  %v1801 = vpop.f32.mrb[0].mxu0
  %1802 = vdwg.mxu0
  %s1803 = scalar_lea.vmem %s4, 320
  %v1804 = vld [vmem:[%s1803] sm:$0xff]
  %v1805 = vld [vmem:[%s1803 + $0x8] sm:$0xff]
  %v1806 = vld [vmem:[%s1803 + $0x10] sm:$0xff]
  %v1807 = vld [vmem:[%s1803 + $0x18] sm:$0xff]
  %v1808 = vld [vmem:[%s1803 + $0x20] sm:$0xff]
  %v1809 = vld [vmem:[%s1803 + $0x28] sm:$0xff]
  %v1810 = vld [vmem:[%s1803 + $0x30] sm:$0xff]
  %v1811 = vld [vmem:[%s1803 + $0x38] sm:$0xff]
  %v1813 = vsel %vm689, %v1770, 0
  %v1816 = vsel %vm689, %v1775, 0
  %v1819 = vsel %vm689, %v1780, 0
  %v1822 = vsel %vm689, %v1785, 0
  %v1825 = vsel %vm689, %v1790, 0
  %v1828 = vsel %vm689, %v1795, 0
  %v1831 = vsel %vm689, %v1800, 0
  %1833 = vmatprep.subr.mxu0 0.0
  %1834 = vmatpush1.msra.mxu0 %v1804
  %1835 = vmatprep.subr.mxu0 0.0
  %1836 = vmatpush1.msra.mxu0 %v1805
  %1837 = vmatprep.subr.mxu0 0.0
  %1838 = vmatpush1.msra.mxu0 %v1806
  %1839 = vmatprep.subr.mxu0 0.0
  %1840 = vmatpush1.msra.mxu0 %v1807
  %1841 = vmatprep.subr.mxu0 0.0
  %1842 = vmatpush1.msra.mxu0 %v1808
  %1843 = vmatprep.subr.mxu0 0.0
  %1844 = vmatpush1.msra.mxu0 %v1809
  %1845 = vmatprep.subr.mxu0 0.0
  %1846 = vmatpush1.msra.mxu0 %v1810
  %1847 = vmatprep.subr.mxu0 0.0
  %1848 = vmatpush1.msra.mxu0 %v1811
  %1849 = vmatprep.subr.mxu0 0.0
  %1850 = vmatpush1.msra.mxu0 0.0
  %1851 = vmatprep.subr.mxu0 0.0
  %1852 = vmatpush1.msra.mxu0 0.0
  %1853 = vmatprep.subr.mxu0 0.0
  %1854 = vmatpush1.msra.mxu0 0.0
  %1855 = vmatprep.subr.mxu0 0.0
  %1856 = vmatpush1.msra.mxu0 0.0
  %1857 = vmatprep.subr.mxu0 0.0
  %1858 = vmatpush1.msra.mxu0 0.0
  %1859 = vmatprep.subr.mxu0 0.0
  %1860 = vmatpush1.msra.mxu0 0.0
  %1861 = vmatprep.subr.mxu0 0.0
  %1862 = vmatpush1.msra.mxu0 0.0
  %1863 = vmatprep.subr.mxu0 0.0
  %1864 = vmatpush1.msra.mxu0 0.0
  %1865 = vmatprep.subr.mxu0 0.0
  %1866 = vmatpush1.msra.mxu0 0.0
  %1867 = vmatprep.subr.mxu0 0.0
  %1868 = vmatpush1.msra.mxu0 0.0
  %1869 = vmatprep.subr.mxu0 0.0
  %1870 = vmatpush1.msra.mxu0 0.0
  %1871 = vmatprep.subr.mxu0 0.0
  %1872 = vmatpush1.msra.mxu0 0.0
  %1873 = vmatprep.subr.mxu0 0.0
  %1874 = vmatpush1.msra.mxu0 0.0
  %1875 = vmatprep.subr.mxu0 0.0
  %1876 = vmatpush1.msra.mxu0 0.0
  %1877 = vmatprep.subr.mxu0 0.0
  %1878 = vmatpush1.msra.mxu0 0.0
  %1879 = vmatprep.subr.mxu0 0.0
  %1880 = vmatpush1.msra.mxu0 0.0
  %1881 = vmatprep.subr.mxu0 0.0
  %1882 = vmatpush1.msra.mxu0 0.0
  %1883 = vmatprep.subr.mxu0 0.0
  %1884 = vmatpush1.msra.mxu0 0.0
  %1885 = vmatprep.subr.mxu0 0.0
  %1886 = vmatpush1.msra.mxu0 0.0
  %1887 = vmatprep.subr.mxu0 0.0
  %1888 = vmatpush1.msra.mxu0 0.0
  %1889 = vmatprep.subr.mxu0 0.0
  %1890 = vmatpush1.msra.mxu0 0.0
  %1891 = vmatprep.subr.mxu0 0.0
  %1892 = vmatpush1.msra.mxu0 0.0
  %1893 = vmatprep.subr.mxu0 0.0
  %1894 = vmatpush1.msra.mxu0 0.0
  %1895 = vmatprep.subr.mxu0 0.0
  %1896 = vmatpush1.msra.mxu0 0.0
  %1897 = vmatprep.mubr.f32.mxu0 0.0
  %1898 = vmatmul.mubr.f32.gmra.mrb[0].mxu0 %v1813
  %v1899 = vpop.f32.mrb[0].mxu0
  %v1900 = vadd.f32 0.0, %v1899
  %v1901 = vpop.f32.mrb[0].mxu0
  %1902 = vmatprep.mubr.f32.mxu0 0.0
  %1903 = vmatmul.mubr.f32.gmra.mrb[0].mxu0 %v1816
  %v1904 = vpop.f32.mrb[0].mxu0
  %v1905 = vadd.f32 0.0, %v1904
  %v1906 = vpop.f32.mrb[0].mxu0
  %1907 = vmatprep.mubr.f32.mxu0 0.0
  %1908 = vmatmul.mubr.f32.gmra.mrb[0].mxu0 %v1819
  %v1909 = vpop.f32.mrb[0].mxu0
  %v1910 = vadd.f32 0.0, %v1909
  %v1911 = vpop.f32.mrb[0].mxu0
  %1912 = vmatprep.mubr.f32.mxu0 0.0
  %1913 = vmatmul.mubr.f32.gmra.mrb[0].mxu0 %v1822
  %v1914 = vpop.f32.mrb[0].mxu0
  %v1915 = vadd.f32 0.0, %v1914
  %v1916 = vpop.f32.mrb[0].mxu0
  %1917 = vmatprep.mubr.f32.mxu0 0.0
  %1918 = vmatmul.mubr.f32.gmra.mrb[0].mxu0 %v1825
  %v1919 = vpop.f32.mrb[0].mxu0
  %v1920 = vadd.f32 0.0, %v1919
  %v1921 = vpop.f32.mrb[0].mxu0
  %1922 = vmatprep.mubr.f32.mxu0 0.0
  %1923 = vmatmul.mubr.f32.gmra.mrb[0].mxu0 %v1828
  %v1924 = vpop.f32.mrb[0].mxu0
  %v1925 = vadd.f32 0.0, %v1924
  %v1926 = vpop.f32.mrb[0].mxu0
  %1927 = vmatprep.mubr.f32.mxu0 0.0
  %1928 = vmatmul.mubr.f32.gmra.mrb[0].mxu0 %v1831
  %v1929 = vpop.f32.mrb[0].mxu0
  %v1930 = vadd.f32 0.0, %v1929
  %v1931 = vpop.f32.mrb[0].mxu0
  %1932 = vdwg.mxu0
  %v1933 = vadd.f32 %v1681, %v1900
  %v1934 = vadd.f32 %v1682, %v1905
  %v1935 = vadd.f32 %v1683, %v1910
  %v1936 = vadd.f32 %v1684, %v1915
  %v1937 = vadd.f32 %v1685, %v1920
  %v1938 = vadd.f32 %v1686, %v1925
  %v1939 = vadd.f32 %v1687, %v1930
  %s1940 = scalar_lea.vmem %s3, 672
  %v1941 = vld [vmem:[%s1940] sm:$0xff]
  %v1942 = vld [vmem:[%s1940 + $0x8] sm:$0xff]
  %v1943 = vld [vmem:[%s1940 + $0x10] sm:$0xff]
  %v1944 = vld [vmem:[%s1940 + $0x18] sm:$0xff]
  %v1945 = vld [vmem:[%s1940 + $0x20] sm:$0xff]
  %v1946 = vld [vmem:[%s1940 + $0x28] sm:$0xff]
  %v1947 = vld [vmem:[%s1940 + $0x30] sm:$0xff]
  %v1948 = vld [vmem:[%s1940 + $0x38] sm:$0xff]
  %v1949 = vld [vmem:[%s1940 + $0x40] sm:$0xff]
  %v1950 = vld [vmem:[%s1940 + $0x48] sm:$0xff]
  %v1951 = vld [vmem:[%s1940 + $0x50] sm:$0xff]
  %v1952 = vld [vmem:[%s1940 + $0x58] sm:$0xff]
  %v1953 = vld [vmem:[%s1940 + $0x60] sm:$0xff]
  %v1954 = vld [vmem:[%s1940 + $0x68] sm:$0xff]
  %1955 = vmatprep.subr.mxu0 0.0
  %1956 = vmatpush1.msra.mxu0 %v411
  %1957 = vmatprep.subr.mxu0 0.0
  %1958 = vmatpush1.msra.mxu0 %v412
  %1959 = vmatprep.subr.mxu0 0.0
  %1960 = vmatpush1.msra.mxu0 %v413
  %1961 = vmatprep.subr.mxu0 0.0
  %1962 = vmatpush1.msra.mxu0 %v414
  %1963 = vmatprep.subr.mxu0 0.0
  %1964 = vmatpush1.msra.mxu0 %v415
  %1965 = vmatprep.subr.mxu0 0.0
  %1966 = vmatpush1.msra.mxu0 %v416
  %1967 = vmatprep.subr.mxu0 0.0
  %1968 = vmatpush1.msra.mxu0 %v417
  %1969 = vmatprep.subr.mxu0 0.0
  %1970 = vmatpush1.msra.mxu0 %v418
  %1971 = vmatprep.subr.mxu0 0.0
  %1972 = vmatpush1.msra.mxu0 %v419
  %1973 = vmatprep.subr.mxu0 0.0
  %1974 = vmatpush1.msra.mxu0 %v420
  %1975 = vmatprep.subr.mxu0 0.0
  %1976 = vmatpush1.msra.mxu0 %v421
  %1977 = vmatprep.subr.mxu0 0.0
  %1978 = vmatpush1.msra.mxu0 %v422
  %1979 = vmatprep.subr.mxu0 0.0
  %1980 = vmatpush1.msra.mxu0 %v423
  %1981 = vmatprep.subr.mxu0 0.0
  %1982 = vmatpush1.msra.mxu0 %v424
  %1983 = vmatprep.subr.mxu0 0.0
  %1984 = vmatpush1.msra.mxu0 %v425
  %1985 = vmatprep.subr.mxu0 0.0
  %1986 = vmatpush1.msra.mxu0 %v426
  %1987 = vmatprep.subr.mxu0 0.0
  %1988 = vmatpush1.msra.mxu0 %v427
  %1989 = vmatprep.subr.mxu0 0.0
  %1990 = vmatpush1.msra.mxu0 %v428
  %1991 = vmatprep.subr.mxu0 0.0
  %1992 = vmatpush1.msra.mxu0 %v429
  %1993 = vmatprep.subr.mxu0 0.0
  %1994 = vmatpush1.msra.mxu0 %v430
  %1995 = vmatprep.subr.mxu0 0.0
  %1996 = vmatpush1.msra.mxu0 %v431
  %1997 = vmatprep.subr.mxu0 0.0
  %1998 = vmatpush1.msra.mxu0 %v432
  %1999 = vmatprep.subr.mxu0 0.0
  %2000 = vmatpush1.msra.mxu0 %v433
  %2001 = vmatprep.subr.mxu0 0.0
  %2002 = vmatpush1.msra.mxu0 %v434
  %2003 = vmatprep.subr.mxu0 0.0
  %2004 = vmatpush1.msra.mxu0 %v435
  %2005 = vmatprep.subr.mxu0 0.0
  %2006 = vmatpush1.msra.mxu0 %v436
  %2007 = vmatprep.subr.mxu0 0.0
  %2008 = vmatpush1.msra.mxu0 %v437
  %2009 = vmatprep.subr.mxu0 0.0
  %2010 = vmatpush1.msra.mxu0 %v438
  %2011 = vmatprep.subr.mxu0 0.0
  %2012 = vmatpush1.msra.mxu0 %v439
  %2013 = vmatprep.subr.mxu0 0.0
  %2014 = vmatpush1.msra.mxu0 %v440
  %2015 = vmatprep.subr.mxu0 0.0
  %2016 = vmatpush1.msra.mxu0 %v441
  %2017 = vmatprep.subr.mxu0 0.0
  %2018 = vmatpush1.msra.mxu0 %v442
  %2019 = vmatprep.mubr.f32.mxu0 %v1942
  %2020 = vmatmul.mubr.f32.gmra.mrb[0].mxu0 %v1941
  %v2021 = vpop.f32.mrb[0].mxu0
  %v2022 = vadd.f32 0.0, %v2021
  %v2023 = vpop.f32.mrb[0].mxu0
  %2024 = vmatprep.mubr.f32.mxu0 %v1944
  %2025 = vmatmul.mubr.f32.gmra.mrb[0].mxu0 %v1943
  %v2026 = vpop.f32.mrb[0].mxu0
  %v2027 = vadd.f32 0.0, %v2026
  %v2028 = vpop.f32.mrb[0].mxu0
  %2029 = vmatprep.mubr.f32.mxu0 %v1946
  %2030 = vmatmul.mubr.f32.gmra.mrb[0].mxu0 %v1945
  %v2031 = vpop.f32.mrb[0].mxu0
  %v2032 = vadd.f32 0.0, %v2031
  %v2033 = vpop.f32.mrb[0].mxu0
  %2034 = vmatprep.mubr.f32.mxu0 %v1948
  %2035 = vmatmul.mubr.f32.gmra.mrb[0].mxu0 %v1947
  %v2036 = vpop.f32.mrb[0].mxu0
  %v2037 = vadd.f32 0.0, %v2036
  %v2038 = vpop.f32.mrb[0].mxu0
  %2039 = vmatprep.mubr.f32.mxu0 %v1950
  %2040 = vmatmul.mubr.f32.gmra.mrb[0].mxu0 %v1949
  %v2041 = vpop.f32.mrb[0].mxu0
  %v2042 = vadd.f32 0.0, %v2041
  %v2043 = vpop.f32.mrb[0].mxu0
  %2044 = vmatprep.mubr.f32.mxu0 %v1952
  %2045 = vmatmul.mubr.f32.gmra.mrb[0].mxu0 %v1951
  %v2046 = vpop.f32.mrb[0].mxu0
  %v2047 = vadd.f32 0.0, %v2046
  %v2048 = vpop.f32.mrb[0].mxu0
  %2049 = vmatprep.mubr.f32.mxu0 %v1954
  %2050 = vmatmul.mubr.f32.gmra.mrb[0].mxu0 %v1953
  %v2051 = vpop.f32.mrb[0].mxu0
  %v2052 = vadd.f32 0.0, %v2051
  %v2053 = vpop.f32.mrb[0].mxu0
  %2054 = vdwg.mxu0
  %s2055 = scalar_lea.vmem %s4, 384
  %v2056 = vld [vmem:[%s2055] sm:$0xff]
  %v2057 = vld [vmem:[%s2055 + $0x8] sm:$0xff]
  %v2058 = vld [vmem:[%s2055 + $0x10] sm:$0xff]
  %v2059 = vld [vmem:[%s2055 + $0x18] sm:$0xff]
  %v2060 = vld [vmem:[%s2055 + $0x20] sm:$0xff]
  %v2061 = vld [vmem:[%s2055 + $0x28] sm:$0xff]
  %v2062 = vld [vmem:[%s2055 + $0x30] sm:$0xff]
  %v2063 = vld [vmem:[%s2055 + $0x38] sm:$0xff]
  %v2065 = vsel %vm689, %v2022, 0
  %v2068 = vsel %vm689, %v2027, 0
  %v2071 = vsel %vm689, %v2032, 0
  %v2074 = vsel %vm689, %v2037, 0
  %v2077 = vsel %vm689, %v2042, 0
  %v2080 = vsel %vm689, %v2047, 0
  %v2083 = vsel %vm689, %v2052, 0
  %2085 = vmatprep.subr.mxu0 0.0
  %2086 = vmatpush1.msra.mxu0 %v2056
  %2087 = vmatprep.subr.mxu0 0.0
  %2088 = vmatpush1.msra.mxu0 %v2057
  %2089 = vmatprep.subr.mxu0 0.0
  %2090 = vmatpush1.msra.mxu0 %v2058
  %2091 = vmatprep.subr.mxu0 0.0
  %2092 = vmatpush1.msra.mxu0 %v2059
  %2093 = vmatprep.subr.mxu0 0.0
  %2094 = vmatpush1.msra.mxu0 %v2060
  %2095 = vmatprep.subr.mxu0 0.0
  %2096 = vmatpush1.msra.mxu0 %v2061
  %2097 = vmatprep.subr.mxu0 0.0
  %2098 = vmatpush1.msra.mxu0 %v2062
  %2099 = vmatprep.subr.mxu0 0.0
  %2100 = vmatpush1.msra.mxu0 %v2063
  %2101 = vmatprep.subr.mxu0 0.0
  %2102 = vmatpush1.msra.mxu0 0.0
  %2103 = vmatprep.subr.mxu0 0.0
  %2104 = vmatpush1.msra.mxu0 0.0
  %2105 = vmatprep.subr.mxu0 0.0
  %2106 = vmatpush1.msra.mxu0 0.0
  %2107 = vmatprep.subr.mxu0 0.0
  %2108 = vmatpush1.msra.mxu0 0.0
  %2109 = vmatprep.subr.mxu0 0.0
  %2110 = vmatpush1.msra.mxu0 0.0
  %2111 = vmatprep.subr.mxu0 0.0
  %2112 = vmatpush1.msra.mxu0 0.0
  %2113 = vmatprep.subr.mxu0 0.0
  %2114 = vmatpush1.msra.mxu0 0.0
  %2115 = vmatprep.subr.mxu0 0.0
  %2116 = vmatpush1.msra.mxu0 0.0
  %2117 = vmatprep.subr.mxu0 0.0
  %2118 = vmatpush1.msra.mxu0 0.0
  %2119 = vmatprep.subr.mxu0 0.0
  %2120 = vmatpush1.msra.mxu0 0.0
  %2121 = vmatprep.subr.mxu0 0.0
  %2122 = vmatpush1.msra.mxu0 0.0
  %2123 = vmatprep.subr.mxu0 0.0
  %2124 = vmatpush1.msra.mxu0 0.0
  %2125 = vmatprep.subr.mxu0 0.0
  %2126 = vmatpush1.msra.mxu0 0.0
  %2127 = vmatprep.subr.mxu0 0.0
  %2128 = vmatpush1.msra.mxu0 0.0
  %2129 = vmatprep.subr.mxu0 0.0
  %2130 = vmatpush1.msra.mxu0 0.0
  %2131 = vmatprep.subr.mxu0 0.0
  %2132 = vmatpush1.msra.mxu0 0.0
  %2133 = vmatprep.subr.mxu0 0.0
  %2134 = vmatpush1.msra.mxu0 0.0
  %2135 = vmatprep.subr.mxu0 0.0
  %2136 = vmatpush1.msra.mxu0 0.0
  %2137 = vmatprep.subr.mxu0 0.0
  %2138 = vmatpush1.msra.mxu0 0.0
  %2139 = vmatprep.subr.mxu0 0.0
  %2140 = vmatpush1.msra.mxu0 0.0
  %2141 = vmatprep.subr.mxu0 0.0
  %2142 = vmatpush1.msra.mxu0 0.0
  %2143 = vmatprep.subr.mxu0 0.0
  %2144 = vmatpush1.msra.mxu0 0.0
  %2145 = vmatprep.subr.mxu0 0.0
  %2146 = vmatpush1.msra.mxu0 0.0
  %2147 = vmatprep.subr.mxu0 0.0
  %2148 = vmatpush1.msra.mxu0 0.0
  %2149 = vmatprep.mubr.f32.mxu0 0.0
  %2150 = vmatmul.mubr.f32.gmra.mrb[0].mxu0 %v2065
  %v2151 = vpop.f32.mrb[0].mxu0
  %v2152 = vadd.f32 0.0, %v2151
  %v2153 = vpop.f32.mrb[0].mxu0
  %2154 = vmatprep.mubr.f32.mxu0 0.0
  %2155 = vmatmul.mubr.f32.gmra.mrb[0].mxu0 %v2068
  %v2156 = vpop.f32.mrb[0].mxu0
  %v2157 = vadd.f32 0.0, %v2156
  %v2158 = vpop.f32.mrb[0].mxu0
  %2159 = vmatprep.mubr.f32.mxu0 0.0
  %2160 = vmatmul.mubr.f32.gmra.mrb[0].mxu0 %v2071
  %v2161 = vpop.f32.mrb[0].mxu0
  %v2162 = vadd.f32 0.0, %v2161
  %v2163 = vpop.f32.mrb[0].mxu0
  %2164 = vmatprep.mubr.f32.mxu0 0.0
  %2165 = vmatmul.mubr.f32.gmra.mrb[0].mxu0 %v2074
  %v2166 = vpop.f32.mrb[0].mxu0
  %v2167 = vadd.f32 0.0, %v2166
  %v2168 = vpop.f32.mrb[0].mxu0
  %2169 = vmatprep.mubr.f32.mxu0 0.0
  %2170 = vmatmul.mubr.f32.gmra.mrb[0].mxu0 %v2077
  %v2171 = vpop.f32.mrb[0].mxu0
  %v2172 = vadd.f32 0.0, %v2171
  %v2173 = vpop.f32.mrb[0].mxu0
  %2174 = vmatprep.mubr.f32.mxu0 0.0
  %2175 = vmatmul.mubr.f32.gmra.mrb[0].mxu0 %v2080
  %v2176 = vpop.f32.mrb[0].mxu0
  %v2177 = vadd.f32 0.0, %v2176
  %v2178 = vpop.f32.mrb[0].mxu0
  %2179 = vmatprep.mubr.f32.mxu0 0.0
  %2180 = vmatmul.mubr.f32.gmra.mrb[0].mxu0 %v2083
  %v2181 = vpop.f32.mrb[0].mxu0
  %v2182 = vadd.f32 0.0, %v2181
  %v2183 = vpop.f32.mrb[0].mxu0
  %2184 = vdwg.mxu0
  %v2185 = vadd.f32 %v1933, %v2152
  %v2186 = vadd.f32 %v1934, %v2157
  %v2187 = vadd.f32 %v1935, %v2162
  %v2188 = vadd.f32 %v1936, %v2167
  %v2189 = vadd.f32 %v1937, %v2172
  %v2190 = vadd.f32 %v1938, %v2177
  %v2191 = vadd.f32 %v1939, %v2182
  %s2192 = scalar_lea.vmem %s3, 784
  %v2193 = vld [vmem:[%s2192] sm:$0xff]
  %v2194 = vld [vmem:[%s2192 + $0x8] sm:$0xff]
  %v2195 = vld [vmem:[%s2192 + $0x10] sm:$0xff]
  %v2196 = vld [vmem:[%s2192 + $0x18] sm:$0xff]
  %v2197 = vld [vmem:[%s2192 + $0x20] sm:$0xff]
  %v2198 = vld [vmem:[%s2192 + $0x28] sm:$0xff]
  %v2199 = vld [vmem:[%s2192 + $0x30] sm:$0xff]
  %v2200 = vld [vmem:[%s2192 + $0x38] sm:$0xff]
  %v2201 = vld [vmem:[%s2192 + $0x40] sm:$0xff]
  %v2202 = vld [vmem:[%s2192 + $0x48] sm:$0xff]
  %v2203 = vld [vmem:[%s2192 + $0x50] sm:$0xff]
  %v2204 = vld [vmem:[%s2192 + $0x58] sm:$0xff]
  %v2205 = vld [vmem:[%s2192 + $0x60] sm:$0xff]
  %v2206 = vld [vmem:[%s2192 + $0x68] sm:$0xff]
  %2207 = vmatprep.subr.mxu0 0.0
  %2208 = vmatpush1.msra.mxu0 %v411
  %2209 = vmatprep.subr.mxu0 0.0
  %2210 = vmatpush1.msra.mxu0 %v412
  %2211 = vmatprep.subr.mxu0 0.0
  %2212 = vmatpush1.msra.mxu0 %v413
  %2213 = vmatprep.subr.mxu0 0.0
  %2214 = vmatpush1.msra.mxu0 %v414
  %2215 = vmatprep.subr.mxu0 0.0
  %2216 = vmatpush1.msra.mxu0 %v415
  %2217 = vmatprep.subr.mxu0 0.0
  %2218 = vmatpush1.msra.mxu0 %v416
  %2219 = vmatprep.subr.mxu0 0.0
  %2220 = vmatpush1.msra.mxu0 %v417
  %2221 = vmatprep.subr.mxu0 0.0
  %2222 = vmatpush1.msra.mxu0 %v418
  %2223 = vmatprep.subr.mxu0 0.0
  %2224 = vmatpush1.msra.mxu0 %v419
  %2225 = vmatprep.subr.mxu0 0.0
  %2226 = vmatpush1.msra.mxu0 %v420
  %2227 = vmatprep.subr.mxu0 0.0
  %2228 = vmatpush1.msra.mxu0 %v421
  %2229 = vmatprep.subr.mxu0 0.0
  %2230 = vmatpush1.msra.mxu0 %v422
  %2231 = vmatprep.subr.mxu0 0.0
  %2232 = vmatpush1.msra.mxu0 %v423
  %2233 = vmatprep.subr.mxu0 0.0
  %2234 = vmatpush1.msra.mxu0 %v424
  %2235 = vmatprep.subr.mxu0 0.0
  %2236 = vmatpush1.msra.mxu0 %v425
  %2237 = vmatprep.subr.mxu0 0.0
  %2238 = vmatpush1.msra.mxu0 %v426
  %2239 = vmatprep.subr.mxu0 0.0
  %2240 = vmatpush1.msra.mxu0 %v427
  %2241 = vmatprep.subr.mxu0 0.0
  %2242 = vmatpush1.msra.mxu0 %v428
  %2243 = vmatprep.subr.mxu0 0.0
  %2244 = vmatpush1.msra.mxu0 %v429
  %2245 = vmatprep.subr.mxu0 0.0
  %2246 = vmatpush1.msra.mxu0 %v430
  %2247 = vmatprep.subr.mxu0 0.0
  %2248 = vmatpush1.msra.mxu0 %v431
  %2249 = vmatprep.subr.mxu0 0.0
  %2250 = vmatpush1.msra.mxu0 %v432
  %2251 = vmatprep.subr.mxu0 0.0
  %2252 = vmatpush1.msra.mxu0 %v433
  %2253 = vmatprep.subr.mxu0 0.0
  %2254 = vmatpush1.msra.mxu0 %v434
  %2255 = vmatprep.subr.mxu0 0.0
  %2256 = vmatpush1.msra.mxu0 %v435
  %2257 = vmatprep.subr.mxu0 0.0
  %2258 = vmatpush1.msra.mxu0 %v436
  %2259 = vmatprep.subr.mxu0 0.0
  %2260 = vmatpush1.msra.mxu0 %v437
  %2261 = vmatprep.subr.mxu0 0.0
  %2262 = vmatpush1.msra.mxu0 %v438
  %2263 = vmatprep.subr.mxu0 0.0
  %2264 = vmatpush1.msra.mxu0 %v439
  %2265 = vmatprep.subr.mxu0 0.0
  %2266 = vmatpush1.msra.mxu0 %v440
  %2267 = vmatprep.subr.mxu0 0.0
  %2268 = vmatpush1.msra.mxu0 %v441
  %2269 = vmatprep.subr.mxu0 0.0
  %2270 = vmatpush1.msra.mxu0 %v442
  %2271 = vmatprep.mubr.f32.mxu0 %v2194
  %2272 = vmatmul.mubr.f32.gmra.mrb[0].mxu0 %v2193
  %v2273 = vpop.f32.mrb[0].mxu0
  %v2274 = vadd.f32 0.0, %v2273
  %v2275 = vpop.f32.mrb[0].mxu0
  %2276 = vmatprep.mubr.f32.mxu0 %v2196
  %2277 = vmatmul.mubr.f32.gmra.mrb[0].mxu0 %v2195
  %v2278 = vpop.f32.mrb[0].mxu0
  %v2279 = vadd.f32 0.0, %v2278
  %v2280 = vpop.f32.mrb[0].mxu0
  %2281 = vmatprep.mubr.f32.mxu0 %v2198
  %2282 = vmatmul.mubr.f32.gmra.mrb[0].mxu0 %v2197
  %v2283 = vpop.f32.mrb[0].mxu0
  %v2284 = vadd.f32 0.0, %v2283
  %v2285 = vpop.f32.mrb[0].mxu0
  %2286 = vmatprep.mubr.f32.mxu0 %v2200
  %2287 = vmatmul.mubr.f32.gmra.mrb[0].mxu0 %v2199
  %v2288 = vpop.f32.mrb[0].mxu0
  %v2289 = vadd.f32 0.0, %v2288
  %v2290 = vpop.f32.mrb[0].mxu0
  %2291 = vmatprep.mubr.f32.mxu0 %v2202
  %2292 = vmatmul.mubr.f32.gmra.mrb[0].mxu0 %v2201
  %v2293 = vpop.f32.mrb[0].mxu0
  %v2294 = vadd.f32 0.0, %v2293
  %v2295 = vpop.f32.mrb[0].mxu0
  %2296 = vmatprep.mubr.f32.mxu0 %v2204
  %2297 = vmatmul.mubr.f32.gmra.mrb[0].mxu0 %v2203
  %v2298 = vpop.f32.mrb[0].mxu0
  %v2299 = vadd.f32 0.0, %v2298
  %v2300 = vpop.f32.mrb[0].mxu0
  %2301 = vmatprep.mubr.f32.mxu0 %v2206
  %2302 = vmatmul.mubr.f32.gmra.mrb[0].mxu0 %v2205
  %v2303 = vpop.f32.mrb[0].mxu0
  %v2304 = vadd.f32 0.0, %v2303
  %v2305 = vpop.f32.mrb[0].mxu0
  %2306 = vdwg.mxu0
  %s2307 = scalar_lea.vmem %s4, 448
  %v2308 = vld [vmem:[%s2307] sm:$0xff]
  %v2309 = vld [vmem:[%s2307 + $0x8] sm:$0xff]
  %v2310 = vld [vmem:[%s2307 + $0x10] sm:$0xff]
  %v2311 = vld [vmem:[%s2307 + $0x18] sm:$0xff]
  %v2312 = vld [vmem:[%s2307 + $0x20] sm:$0xff]
  %v2313 = vld [vmem:[%s2307 + $0x28] sm:$0xff]
  %v2314 = vld [vmem:[%s2307 + $0x30] sm:$0xff]
  %v2315 = vld [vmem:[%s2307 + $0x38] sm:$0xff]
  %v2317 = vsel %vm689, %v2274, 0
  %v2320 = vsel %vm689, %v2279, 0
  %v2323 = vsel %vm689, %v2284, 0
  %v2326 = vsel %vm689, %v2289, 0
  %v2329 = vsel %vm689, %v2294, 0
  %v2332 = vsel %vm689, %v2299, 0
  %v2335 = vsel %vm689, %v2304, 0
  %2337 = vmatprep.subr.mxu0 0.0
  %2338 = vmatpush1.msra.mxu0 %v2308
  %2339 = vmatprep.subr.mxu0 0.0
  %2340 = vmatpush1.msra.mxu0 %v2309
  %2341 = vmatprep.subr.mxu0 0.0
  %2342 = vmatpush1.msra.mxu0 %v2310
  %2343 = vmatprep.subr.mxu0 0.0
  %2344 = vmatpush1.msra.mxu0 %v2311
  %2345 = vmatprep.subr.mxu0 0.0
  %2346 = vmatpush1.msra.mxu0 %v2312
  %2347 = vmatprep.subr.mxu0 0.0
  %2348 = vmatpush1.msra.mxu0 %v2313
  %2349 = vmatprep.subr.mxu0 0.0
  %2350 = vmatpush1.msra.mxu0 %v2314
  %2351 = vmatprep.subr.mxu0 0.0
  %2352 = vmatpush1.msra.mxu0 %v2315
  %2353 = vmatprep.subr.mxu0 0.0
  %2354 = vmatpush1.msra.mxu0 0.0
  %2355 = vmatprep.subr.mxu0 0.0
  %2356 = vmatpush1.msra.mxu0 0.0
  %2357 = vmatprep.subr.mxu0 0.0
  %2358 = vmatpush1.msra.mxu0 0.0
  %2359 = vmatprep.subr.mxu0 0.0
  %2360 = vmatpush1.msra.mxu0 0.0
  %2361 = vmatprep.subr.mxu0 0.0
  %2362 = vmatpush1.msra.mxu0 0.0
  %2363 = vmatprep.subr.mxu0 0.0
  %2364 = vmatpush1.msra.mxu0 0.0
  %2365 = vmatprep.subr.mxu0 0.0
  %2366 = vmatpush1.msra.mxu0 0.0
  %2367 = vmatprep.subr.mxu0 0.0
  %2368 = vmatpush1.msra.mxu0 0.0
  %2369 = vmatprep.subr.mxu0 0.0
  %2370 = vmatpush1.msra.mxu0 0.0
  %2371 = vmatprep.subr.mxu0 0.0
  %2372 = vmatpush1.msra.mxu0 0.0
  %2373 = vmatprep.subr.mxu0 0.0
  %2374 = vmatpush1.msra.mxu0 0.0
  %2375 = vmatprep.subr.mxu0 0.0
  %2376 = vmatpush1.msra.mxu0 0.0
  %2377 = vmatprep.subr.mxu0 0.0
  %2378 = vmatpush1.msra.mxu0 0.0
  %2379 = vmatprep.subr.mxu0 0.0
  %2380 = vmatpush1.msra.mxu0 0.0
  %2381 = vmatprep.subr.mxu0 0.0
  %2382 = vmatpush1.msra.mxu0 0.0
  %2383 = vmatprep.subr.mxu0 0.0
  %2384 = vmatpush1.msra.mxu0 0.0
  %2385 = vmatprep.subr.mxu0 0.0
  %2386 = vmatpush1.msra.mxu0 0.0
  %2387 = vmatprep.subr.mxu0 0.0
  %2388 = vmatpush1.msra.mxu0 0.0
  %2389 = vmatprep.subr.mxu0 0.0
  %2390 = vmatpush1.msra.mxu0 0.0
  %2391 = vmatprep.subr.mxu0 0.0
  %2392 = vmatpush1.msra.mxu0 0.0
  %2393 = vmatprep.subr.mxu0 0.0
  %2394 = vmatpush1.msra.mxu0 0.0
  %2395 = vmatprep.subr.mxu0 0.0
  %2396 = vmatpush1.msra.mxu0 0.0
  %2397 = vmatprep.subr.mxu0 0.0
  %2398 = vmatpush1.msra.mxu0 0.0
  %2399 = vmatprep.subr.mxu0 0.0
  %2400 = vmatpush1.msra.mxu0 0.0
  %2401 = vmatprep.mubr.f32.mxu0 0.0
  %2402 = vmatmul.mubr.f32.gmra.mrb[0].mxu0 %v2317
  %v2403 = vpop.f32.mrb[0].mxu0
  %v2404 = vadd.f32 0.0, %v2403
  %v2405 = vpop.f32.mrb[0].mxu0
  %2406 = vmatprep.mubr.f32.mxu0 0.0
  %2407 = vmatmul.mubr.f32.gmra.mrb[0].mxu0 %v2320
  %v2408 = vpop.f32.mrb[0].mxu0
  %v2409 = vadd.f32 0.0, %v2408
  %v2410 = vpop.f32.mrb[0].mxu0
  %2411 = vmatprep.mubr.f32.mxu0 0.0
  %2412 = vmatmul.mubr.f32.gmra.mrb[0].mxu0 %v2323
  %v2413 = vpop.f32.mrb[0].mxu0
  %v2414 = vadd.f32 0.0, %v2413
  %v2415 = vpop.f32.mrb[0].mxu0
  %2416 = vmatprep.mubr.f32.mxu0 0.0
  %2417 = vmatmul.mubr.f32.gmra.mrb[0].mxu0 %v2326
  %v2418 = vpop.f32.mrb[0].mxu0
  %v2419 = vadd.f32 0.0, %v2418
  %v2420 = vpop.f32.mrb[0].mxu0
  %2421 = vmatprep.mubr.f32.mxu0 0.0
  %2422 = vmatmul.mubr.f32.gmra.mrb[0].mxu0 %v2329
  %v2423 = vpop.f32.mrb[0].mxu0
  %v2424 = vadd.f32 0.0, %v2423
  %v2425 = vpop.f32.mrb[0].mxu0
  %2426 = vmatprep.mubr.f32.mxu0 0.0
  %2427 = vmatmul.mubr.f32.gmra.mrb[0].mxu0 %v2332
  %v2428 = vpop.f32.mrb[0].mxu0
  %v2429 = vadd.f32 0.0, %v2428
  %v2430 = vpop.f32.mrb[0].mxu0
  %2431 = vmatprep.mubr.f32.mxu0 0.0
  %2432 = vmatmul.mubr.f32.gmra.mrb[0].mxu0 %v2335
  %v2433 = vpop.f32.mrb[0].mxu0
  %v2434 = vadd.f32 0.0, %v2433
  %v2435 = vpop.f32.mrb[0].mxu0
  %2436 = vdwg.mxu0
  %v2437 = vadd.f32 %v2185, %v2404
  %v2438 = vadd.f32 %v2186, %v2409
  %v2439 = vadd.f32 %v2187, %v2414
  %v2440 = vadd.f32 %v2188, %v2419
  %v2441 = vadd.f32 %v2189, %v2424
  %v2442 = vadd.f32 %v2190, %v2429
  %v2443 = vadd.f32 %v2191, %v2434
  %s2444 = scalar_lea.vmem %s3, 896
  %v2445 = vld [vmem:[%s2444] sm:$0xff]
  %v2446 = vld [vmem:[%s2444 + $0x8] sm:$0xff]
  %v2447 = vld [vmem:[%s2444 + $0x10] sm:$0xff]
  %v2448 = vld [vmem:[%s2444 + $0x18] sm:$0xff]
  %v2449 = vld [vmem:[%s2444 + $0x20] sm:$0xff]
  %v2450 = vld [vmem:[%s2444 + $0x28] sm:$0xff]
  %v2451 = vld [vmem:[%s2444 + $0x30] sm:$0xff]
  %v2452 = vld [vmem:[%s2444 + $0x38] sm:$0xff]
  %v2453 = vld [vmem:[%s2444 + $0x40] sm:$0xff]
  %v2454 = vld [vmem:[%s2444 + $0x48] sm:$0xff]
  %v2455 = vld [vmem:[%s2444 + $0x50] sm:$0xff]
  %v2456 = vld [vmem:[%s2444 + $0x58] sm:$0xff]
  %v2457 = vld [vmem:[%s2444 + $0x60] sm:$0xff]
  %v2458 = vld [vmem:[%s2444 + $0x68] sm:$0xff]
  %2459 = vmatprep.subr.mxu0 0.0
  %2460 = vmatpush1.msra.mxu0 %v411
  %2461 = vmatprep.subr.mxu0 0.0
  %2462 = vmatpush1.msra.mxu0 %v412
  %2463 = vmatprep.subr.mxu0 0.0
  %2464 = vmatpush1.msra.mxu0 %v413
  %2465 = vmatprep.subr.mxu0 0.0
  %2466 = vmatpush1.msra.mxu0 %v414
  %2467 = vmatprep.subr.mxu0 0.0
  %2468 = vmatpush1.msra.mxu0 %v415
  %2469 = vmatprep.subr.mxu0 0.0
  %2470 = vmatpush1.msra.mxu0 %v416
  %2471 = vmatprep.subr.mxu0 0.0
  %2472 = vmatpush1.msra.mxu0 %v417
  %2473 = vmatprep.subr.mxu0 0.0
  %2474 = vmatpush1.msra.mxu0 %v418
  %2475 = vmatprep.subr.mxu0 0.0
  %2476 = vmatpush1.msra.mxu0 %v419
  %2477 = vmatprep.subr.mxu0 0.0
  %2478 = vmatpush1.msra.mxu0 %v420
  %2479 = vmatprep.subr.mxu0 0.0
  %2480 = vmatpush1.msra.mxu0 %v421
  %2481 = vmatprep.subr.mxu0 0.0
  %2482 = vmatpush1.msra.mxu0 %v422
  %2483 = vmatprep.subr.mxu0 0.0
  %2484 = vmatpush1.msra.mxu0 %v423
  %2485 = vmatprep.subr.mxu0 0.0
  %2486 = vmatpush1.msra.mxu0 %v424
  %2487 = vmatprep.subr.mxu0 0.0
  %2488 = vmatpush1.msra.mxu0 %v425
  %2489 = vmatprep.subr.mxu0 0.0
  %2490 = vmatpush1.msra.mxu0 %v426
  %2491 = vmatprep.subr.mxu0 0.0
  %2492 = vmatpush1.msra.mxu0 %v427
  %2493 = vmatprep.subr.mxu0 0.0
  %2494 = vmatpush1.msra.mxu0 %v428
  %2495 = vmatprep.subr.mxu0 0.0
  %2496 = vmatpush1.msra.mxu0 %v429
  %2497 = vmatprep.subr.mxu0 0.0
  %2498 = vmatpush1.msra.mxu0 %v430
  %2499 = vmatprep.subr.mxu0 0.0
  %2500 = vmatpush1.msra.mxu0 %v431
  %2501 = vmatprep.subr.mxu0 0.0
  %2502 = vmatpush1.msra.mxu0 %v432
  %2503 = vmatprep.subr.mxu0 0.0
  %2504 = vmatpush1.msra.mxu0 %v433
  %2505 = vmatprep.subr.mxu0 0.0
  %2506 = vmatpush1.msra.mxu0 %v434
  %2507 = vmatprep.subr.mxu0 0.0
  %2508 = vmatpush1.msra.mxu0 %v435
  %2509 = vmatprep.subr.mxu0 0.0
  %2510 = vmatpush1.msra.mxu0 %v436
  %2511 = vmatprep.subr.mxu0 0.0
  %2512 = vmatpush1.msra.mxu0 %v437
  %2513 = vmatprep.subr.mxu0 0.0
  %2514 = vmatpush1.msra.mxu0 %v438
  %2515 = vmatprep.subr.mxu0 0.0
  %2516 = vmatpush1.msra.mxu0 %v439
  %2517 = vmatprep.subr.mxu0 0.0
  %2518 = vmatpush1.msra.mxu0 %v440
  %2519 = vmatprep.subr.mxu0 0.0
  %2520 = vmatpush1.msra.mxu0 %v441
  %2521 = vmatprep.subr.mxu0 0.0
  %2522 = vmatpush1.msra.mxu0 %v442
  %2523 = vmatprep.mubr.f32.mxu0 %v2446
  %2524 = vmatmul.mubr.f32.gmra.mrb[0].mxu0 %v2445
  %v2525 = vpop.f32.mrb[0].mxu0
  %v2526 = vadd.f32 0.0, %v2525
  %v2527 = vpop.f32.mrb[0].mxu0
  %2528 = vmatprep.mubr.f32.mxu0 %v2448
  %2529 = vmatmul.mubr.f32.gmra.mrb[0].mxu0 %v2447
  %v2530 = vpop.f32.mrb[0].mxu0
  %v2531 = vadd.f32 0.0, %v2530
  %v2532 = vpop.f32.mrb[0].mxu0
  %2533 = vmatprep.mubr.f32.mxu0 %v2450
  %2534 = vmatmul.mubr.f32.gmra.mrb[0].mxu0 %v2449
  %v2535 = vpop.f32.mrb[0].mxu0
  %v2536 = vadd.f32 0.0, %v2535
  %v2537 = vpop.f32.mrb[0].mxu0
  %2538 = vmatprep.mubr.f32.mxu0 %v2452
  %2539 = vmatmul.mubr.f32.gmra.mrb[0].mxu0 %v2451
  %v2540 = vpop.f32.mrb[0].mxu0
  %v2541 = vadd.f32 0.0, %v2540
  %v2542 = vpop.f32.mrb[0].mxu0
  %2543 = vmatprep.mubr.f32.mxu0 %v2454
  %2544 = vmatmul.mubr.f32.gmra.mrb[0].mxu0 %v2453
  %v2545 = vpop.f32.mrb[0].mxu0
  %v2546 = vadd.f32 0.0, %v2545
  %v2547 = vpop.f32.mrb[0].mxu0
  %2548 = vmatprep.mubr.f32.mxu0 %v2456
  %2549 = vmatmul.mubr.f32.gmra.mrb[0].mxu0 %v2455
  %v2550 = vpop.f32.mrb[0].mxu0
  %v2551 = vadd.f32 0.0, %v2550
  %v2552 = vpop.f32.mrb[0].mxu0
  %2553 = vmatprep.mubr.f32.mxu0 %v2458
  %2554 = vmatmul.mubr.f32.gmra.mrb[0].mxu0 %v2457
  %v2555 = vpop.f32.mrb[0].mxu0
  %v2556 = vadd.f32 0.0, %v2555
  %v2557 = vpop.f32.mrb[0].mxu0
  %2558 = vdwg.mxu0
  %s2559 = scalar_lea.vmem %s4, 512
  %v2560 = vld [vmem:[%s2559] sm:$0xff]
  %v2561 = vld [vmem:[%s2559 + $0x8] sm:$0xff]
  %v2562 = vld [vmem:[%s2559 + $0x10] sm:$0xff]
  %v2563 = vld [vmem:[%s2559 + $0x18] sm:$0xff]
  %v2564 = vld [vmem:[%s2559 + $0x20] sm:$0xff]
  %v2565 = vld [vmem:[%s2559 + $0x28] sm:$0xff]
  %v2566 = vld [vmem:[%s2559 + $0x30] sm:$0xff]
  %v2567 = vld [vmem:[%s2559 + $0x38] sm:$0xff]
  %v2569 = vsel %vm689, %v2526, 0
  %v2572 = vsel %vm689, %v2531, 0
  %v2575 = vsel %vm689, %v2536, 0
  %v2578 = vsel %vm689, %v2541, 0
  %v2581 = vsel %vm689, %v2546, 0
  %v2584 = vsel %vm689, %v2551, 0
  %v2587 = vsel %vm689, %v2556, 0
  %2589 = vmatprep.subr.mxu0 0.0
  %2590 = vmatpush1.msra.mxu0 %v2560
  %2591 = vmatprep.subr.mxu0 0.0
  %2592 = vmatpush1.msra.mxu0 %v2561
  %2593 = vmatprep.subr.mxu0 0.0
  %2594 = vmatpush1.msra.mxu0 %v2562
  %2595 = vmatprep.subr.mxu0 0.0
  %2596 = vmatpush1.msra.mxu0 %v2563
  %2597 = vmatprep.subr.mxu0 0.0
  %2598 = vmatpush1.msra.mxu0 %v2564
  %2599 = vmatprep.subr.mxu0 0.0
  %2600 = vmatpush1.msra.mxu0 %v2565
  %2601 = vmatprep.subr.mxu0 0.0
  %2602 = vmatpush1.msra.mxu0 %v2566
  %2603 = vmatprep.subr.mxu0 0.0
  %2604 = vmatpush1.msra.mxu0 %v2567
  %2605 = vmatprep.subr.mxu0 0.0
  %2606 = vmatpush1.msra.mxu0 0.0
  %2607 = vmatprep.subr.mxu0 0.0
  %2608 = vmatpush1.msra.mxu0 0.0
  %2609 = vmatprep.subr.mxu0 0.0
  %2610 = vmatpush1.msra.mxu0 0.0
  %2611 = vmatprep.subr.mxu0 0.0
  %2612 = vmatpush1.msra.mxu0 0.0
  %2613 = vmatprep.subr.mxu0 0.0
  %2614 = vmatpush1.msra.mxu0 0.0
  %2615 = vmatprep.subr.mxu0 0.0
  %2616 = vmatpush1.msra.mxu0 0.0
  %2617 = vmatprep.subr.mxu0 0.0
  %2618 = vmatpush1.msra.mxu0 0.0
  %2619 = vmatprep.subr.mxu0 0.0
  %2620 = vmatpush1.msra.mxu0 0.0
  %2621 = vmatprep.subr.mxu0 0.0
  %2622 = vmatpush1.msra.mxu0 0.0
  %2623 = vmatprep.subr.mxu0 0.0
  %2624 = vmatpush1.msra.mxu0 0.0
  %2625 = vmatprep.subr.mxu0 0.0
  %2626 = vmatpush1.msra.mxu0 0.0
  %2627 = vmatprep.subr.mxu0 0.0
  %2628 = vmatpush1.msra.mxu0 0.0
  %2629 = vmatprep.subr.mxu0 0.0
  %2630 = vmatpush1.msra.mxu0 0.0
  %2631 = vmatprep.subr.mxu0 0.0
  %2632 = vmatpush1.msra.mxu0 0.0
  %2633 = vmatprep.subr.mxu0 0.0
  %2634 = vmatpush1.msra.mxu0 0.0
  %2635 = vmatprep.subr.mxu0 0.0
  %2636 = vmatpush1.msra.mxu0 0.0
  %2637 = vmatprep.subr.mxu0 0.0
  %2638 = vmatpush1.msra.mxu0 0.0
  %2639 = vmatprep.subr.mxu0 0.0
  %2640 = vmatpush1.msra.mxu0 0.0
  %2641 = vmatprep.subr.mxu0 0.0
  %2642 = vmatpush1.msra.mxu0 0.0
  %2643 = vmatprep.subr.mxu0 0.0
  %2644 = vmatpush1.msra.mxu0 0.0
  %2645 = vmatprep.subr.mxu0 0.0
  %2646 = vmatpush1.msra.mxu0 0.0
  %2647 = vmatprep.subr.mxu0 0.0
  %2648 = vmatpush1.msra.mxu0 0.0
  %2649 = vmatprep.subr.mxu0 0.0
  %2650 = vmatpush1.msra.mxu0 0.0
  %2651 = vmatprep.subr.mxu0 0.0
  %2652 = vmatpush1.msra.mxu0 0.0
  %2653 = vmatprep.mubr.f32.mxu0 0.0
  %2654 = vmatmul.mubr.f32.gmra.mrb[0].mxu0 %v2569
  %v2655 = vpop.f32.mrb[0].mxu0
  %v2656 = vadd.f32 0.0, %v2655
  %v2657 = vpop.f32.mrb[0].mxu0
  %2658 = vmatprep.mubr.f32.mxu0 0.0
  %2659 = vmatmul.mubr.f32.gmra.mrb[0].mxu0 %v2572
  %v2660 = vpop.f32.mrb[0].mxu0
  %v2661 = vadd.f32 0.0, %v2660
  %v2662 = vpop.f32.mrb[0].mxu0
  %2663 = vmatprep.mubr.f32.mxu0 0.0
  %2664 = vmatmul.mubr.f32.gmra.mrb[0].mxu0 %v2575
  %v2665 = vpop.f32.mrb[0].mxu0
  %v2666 = vadd.f32 0.0, %v2665
  %v2667 = vpop.f32.mrb[0].mxu0
  %2668 = vmatprep.mubr.f32.mxu0 0.0
  %2669 = vmatmul.mubr.f32.gmra.mrb[0].mxu0 %v2578
  %v2670 = vpop.f32.mrb[0].mxu0
  %v2671 = vadd.f32 0.0, %v2670
  %v2672 = vpop.f32.mrb[0].mxu0
  %2673 = vmatprep.mubr.f32.mxu0 0.0
  %2674 = vmatmul.mubr.f32.gmra.mrb[0].mxu0 %v2581
  %v2675 = vpop.f32.mrb[0].mxu0
  %v2676 = vadd.f32 0.0, %v2675
  %v2677 = vpop.f32.mrb[0].mxu0
  %2678 = vmatprep.mubr.f32.mxu0 0.0
  %2679 = vmatmul.mubr.f32.gmra.mrb[0].mxu0 %v2584
  %v2680 = vpop.f32.mrb[0].mxu0
  %v2681 = vadd.f32 0.0, %v2680
  %v2682 = vpop.f32.mrb[0].mxu0
  %2683 = vmatprep.mubr.f32.mxu0 0.0
  %2684 = vmatmul.mubr.f32.gmra.mrb[0].mxu0 %v2587
  %v2685 = vpop.f32.mrb[0].mxu0
  %v2686 = vadd.f32 0.0, %v2685
  %v2687 = vpop.f32.mrb[0].mxu0
  %2688 = vdwg.mxu0
  %v2689 = vadd.f32 %v2437, %v2656
  %v2690 = vadd.f32 %v2438, %v2661
  %v2691 = vadd.f32 %v2439, %v2666
  %v2692 = vadd.f32 %v2440, %v2671
  %v2693 = vadd.f32 %v2441, %v2676
  %v2694 = vadd.f32 %v2442, %v2681
  %v2695 = vadd.f32 %v2443, %v2686
  %v2696 = vld [vmem:[%s5] sm:$0x1]
  %v2698 = vlaneseq
  %v2699 = vshrl.u32 %v2698, 7
  %v2700 = vsub.s32 0, %v2699
  %v2701 = vrot.slane %v2696, %v2700
  %v2703 = vadd.f32 %v2689, %v2701
  %v2704 = vadd.f32 %v2690, %v2701
  %v2705 = vadd.f32 %v2691, %v2701
  %v2706 = vadd.f32 %v2692, %v2701
  %v2707 = vadd.f32 %v2693, %v2701
  %v2708 = vadd.f32 %v2694, %v2701
  %v2709 = vadd.f32 %v2695, %v2701
  %v2710 = vmax.f32 %v2703, 0.0
  %v2711 = vmax.f32 %v2704, 0.0
  %v2712 = vmax.f32 %v2705, 0.0
  %v2713 = vmax.f32 %v2706, 0.0
  %v2714 = vmax.f32 %v2707, 0.0
  %v2715 = vmax.f32 %v2708, 0.0
  %v2716 = vmax.f32 %v2709, 0.0
  %v2717 = vld [vmem:[%s6] sm:$0xff]
  %v2718 = vld [vmem:[%s6 + $0x8] sm:$0xff]
  %vm2719 = vcmask 457728
  %v2721 = vsel %vm2719, %v2717, 0
  %v2724 = vsel %vm2719, %v2718, 0
  %2726 = vmatprep.subr.mxu0 0.0
  %2727 = vmatpush1.msra.mxu0 %v2710
  %2728 = vmatprep.subr.mxu0 0.0
  %2729 = vmatpush1.msra.mxu0 %v2711
  %2730 = vmatprep.subr.mxu0 0.0
  %2731 = vmatpush1.msra.mxu0 %v2712
  %2732 = vmatprep.subr.mxu0 0.0
  %2733 = vmatpush1.msra.mxu0 %v2713
  %2734 = vmatprep.subr.mxu0 0.0
  %2735 = vmatpush1.msra.mxu0 %v2714
  %2736 = vmatprep.subr.mxu0 0.0
  %2737 = vmatpush1.msra.mxu0 %v2715
  %2738 = vmatprep.subr.mxu0 0.0
  %2739 = vmatpush1.msra.mxu0 %v2716
  %2740 = vmatprep.subr.mxu0 0.0
  %2741 = vmatpush1.msra.mxu0 0.0
  %2742 = vmatprep.subr.mxu0 0.0
  %2743 = vmatpush1.msra.mxu0 0.0
  %2744 = vmatprep.subr.mxu0 0.0
  %2745 = vmatpush1.msra.mxu0 0.0
  %2746 = vmatprep.subr.mxu0 0.0
  %2747 = vmatpush1.msra.mxu0 0.0
  %2748 = vmatprep.subr.mxu0 0.0
  %2749 = vmatpush1.msra.mxu0 0.0
  %2750 = vmatprep.subr.mxu0 0.0
  %2751 = vmatpush1.msra.mxu0 0.0
  %2752 = vmatprep.subr.mxu0 0.0
  %2753 = vmatpush1.msra.mxu0 0.0
  %2754 = vmatprep.subr.mxu0 0.0
  %2755 = vmatpush1.msra.mxu0 0.0
  %2756 = vmatprep.subr.mxu0 0.0
  %2757 = vmatpush1.msra.mxu0 0.0
  %2758 = vmatprep.subr.mxu0 0.0
  %2759 = vmatpush1.msra.mxu0 0.0
  %2760 = vmatprep.subr.mxu0 0.0
  %2761 = vmatpush1.msra.mxu0 0.0
  %2762 = vmatprep.subr.mxu0 0.0
  %2763 = vmatpush1.msra.mxu0 0.0
  %2764 = vmatprep.subr.mxu0 0.0
  %2765 = vmatpush1.msra.mxu0 0.0
  %2766 = vmatprep.subr.mxu0 0.0
  %2767 = vmatpush1.msra.mxu0 0.0
  %2768 = vmatprep.subr.mxu0 0.0
  %2769 = vmatpush1.msra.mxu0 0.0
  %2770 = vmatprep.subr.mxu0 0.0
  %2771 = vmatpush1.msra.mxu0 0.0
  %2772 = vmatprep.subr.mxu0 0.0
  %2773 = vmatpush1.msra.mxu0 0.0
  %2774 = vmatprep.subr.mxu0 0.0
  %2775 = vmatpush1.msra.mxu0 0.0
  %2776 = vmatprep.subr.mxu0 0.0
  %2777 = vmatpush1.msra.mxu0 0.0
  %2778 = vmatprep.subr.mxu0 0.0
  %2779 = vmatpush1.msra.mxu0 0.0
  %2780 = vmatprep.subr.mxu0 0.0
  %2781 = vmatpush1.msra.mxu0 0.0
  %2782 = vmatprep.subr.mxu0 0.0
  %2783 = vmatpush1.msra.mxu0 0.0
  %2784 = vmatprep.subr.mxu0 0.0
  %2785 = vmatpush1.msra.mxu0 0.0
  %2786 = vmatprep.subr.mxu0 0.0
  %2787 = vmatpush1.msra.mxu0 0.0
  %2788 = vmatprep.subr.mxu0 0.0
  %2789 = vmatpush1.msra.mxu0 0.0
  %2790 = vmatprep.mubr.f32.mxu0 0.0
  %2791 = vmatmul.mubr.f32.gmra.mrb[0].mxu0 %v2721
  %v2792 = vpop.f32.mrb[0].mxu0
  %v2793 = vadd.f32 0.0, %v2792
  %v2794 = vpop.f32.mrb[0].mxu0
  %2795 = vmatprep.mubr.f32.mxu0 0.0
  %2796 = vmatmul.mubr.f32.gmra.mrb[0].mxu0 %v2724
  %v2797 = vpop.f32.mrb[0].mxu0
  %v2798 = vadd.f32 0.0, %v2797
  %v2799 = vpop.f32.mrb[0].mxu0
  %2800 = vdwg.mxu0
  %v2801 = vld [vmem:[%s7] sm:$0xff]
  %v2802 = vld [vmem:[%s7 + $0x8] sm:$0xff]
  %v2803 = vld [vmem:[%s7 + $0x10] sm:$0xff]
  %v2804 = vld [vmem:[%s7 + $0x18] sm:$0xff]
  %v2805 = vld [vmem:[%s7 + $0x20] sm:$0xff]
  %v2806 = vld [vmem:[%s7 + $0x28] sm:$0xff]
  %v2807 = vld [vmem:[%s7 + $0x30] sm:$0xff]
  %v2808 = vld [vmem:[%s7 + $0x38] sm:$0xff]
  %s2809 = scalar_lea.vmem %s6, 16
  %v2810 = vld [vmem:[%s2809] sm:$0xff]
  %v2811 = vld [vmem:[%s2809 + $0x8] sm:$0xff]
  %v2813 = vsel %vm2719, %v2810, 0
  %v2816 = vsel %vm2719, %v2811, 0
  %2818 = vmatprep.subr.mxu0 0.0
  %2819 = vmatpush1.msra.mxu0 %v2710
  %2820 = vmatprep.subr.mxu0 0.0
  %2821 = vmatpush1.msra.mxu0 %v2711
  %2822 = vmatprep.subr.mxu0 0.0
  %2823 = vmatpush1.msra.mxu0 %v2712
  %2824 = vmatprep.subr.mxu0 0.0
  %2825 = vmatpush1.msra.mxu0 %v2713
  %2826 = vmatprep.subr.mxu0 0.0
  %2827 = vmatpush1.msra.mxu0 %v2714
  %2828 = vmatprep.subr.mxu0 0.0
  %2829 = vmatpush1.msra.mxu0 %v2715
  %2830 = vmatprep.subr.mxu0 0.0
  %2831 = vmatpush1.msra.mxu0 %v2716
  %2832 = vmatprep.subr.mxu0 0.0
  %2833 = vmatpush1.msra.mxu0 0.0
  %2834 = vmatprep.subr.mxu0 0.0
  %2835 = vmatpush1.msra.mxu0 0.0
  %2836 = vmatprep.subr.mxu0 0.0
  %2837 = vmatpush1.msra.mxu0 0.0
  %2838 = vmatprep.subr.mxu0 0.0
  %2839 = vmatpush1.msra.mxu0 0.0
  %2840 = vmatprep.subr.mxu0 0.0
  %2841 = vmatpush1.msra.mxu0 0.0
  %2842 = vmatprep.subr.mxu0 0.0
  %2843 = vmatpush1.msra.mxu0 0.0
  %2844 = vmatprep.subr.mxu0 0.0
  %2845 = vmatpush1.msra.mxu0 0.0
  %2846 = vmatprep.subr.mxu0 0.0
  %2847 = vmatpush1.msra.mxu0 0.0
  %2848 = vmatprep.subr.mxu0 0.0
  %2849 = vmatpush1.msra.mxu0 0.0
  %2850 = vmatprep.subr.mxu0 0.0
  %2851 = vmatpush1.msra.mxu0 0.0
  %2852 = vmatprep.subr.mxu0 0.0
  %2853 = vmatpush1.msra.mxu0 0.0
  %2854 = vmatprep.subr.mxu0 0.0
  %2855 = vmatpush1.msra.mxu0 0.0
  %2856 = vmatprep.subr.mxu0 0.0
  %2857 = vmatpush1.msra.mxu0 0.0
  %2858 = vmatprep.subr.mxu0 0.0
  %2859 = vmatpush1.msra.mxu0 0.0
  %2860 = vmatprep.subr.mxu0 0.0
  %2861 = vmatpush1.msra.mxu0 0.0
  %2862 = vmatprep.subr.mxu0 0.0
  %2863 = vmatpush1.msra.mxu0 0.0
  %2864 = vmatprep.subr.mxu0 0.0
  %2865 = vmatpush1.msra.mxu0 0.0
  %2866 = vmatprep.subr.mxu0 0.0
  %2867 = vmatpush1.msra.mxu0 0.0
  %2868 = vmatprep.subr.mxu0 0.0
  %2869 = vmatpush1.msra.mxu0 0.0
  %2870 = vmatprep.subr.mxu0 0.0
  %2871 = vmatpush1.msra.mxu0 0.0
  %2872 = vmatprep.subr.mxu0 0.0
  %2873 = vmatpush1.msra.mxu0 0.0
  %2874 = vmatprep.subr.mxu0 0.0
  %2875 = vmatpush1.msra.mxu0 0.0
  %2876 = vmatprep.subr.mxu0 0.0
  %2877 = vmatpush1.msra.mxu0 0.0
  %2878 = vmatprep.subr.mxu0 0.0
  %2879 = vmatpush1.msra.mxu0 0.0
  %2880 = vmatprep.subr.mxu0 0.0
  %2881 = vmatpush1.msra.mxu0 0.0
  %2882 = vmatprep.mubr.f32.mxu0 0.0
  %2883 = vmatmul.mubr.f32.gmra.mrb[0].mxu0 %v2813
  %v2884 = vpop.f32.mrb[0].mxu0
  %v2885 = vadd.f32 0.0, %v2884
  %v2886 = vpop.f32.mrb[0].mxu0
  %2887 = vmatprep.mubr.f32.mxu0 0.0
  %2888 = vmatmul.mubr.f32.gmra.mrb[0].mxu0 %v2816
  %v2889 = vpop.f32.mrb[0].mxu0
  %v2890 = vadd.f32 0.0, %v2889
  %v2891 = vpop.f32.mrb[0].mxu0
  %2892 = vdwg.mxu0
  %s2893 = scalar_lea.vmem %s7, 64
  %v2894 = vld [vmem:[%s2893] sm:$0xff]
  %v2895 = vld [vmem:[%s2893 + $0x8] sm:$0xff]
  %v2896 = vld [vmem:[%s2893 + $0x10] sm:$0xff]
  %v2897 = vld [vmem:[%s2893 + $0x18] sm:$0xff]
  %v2898 = vld [vmem:[%s2893 + $0x20] sm:$0xff]
  %v2899 = vld [vmem:[%s2893 + $0x28] sm:$0xff]
  %v2900 = vld [vmem:[%s2893 + $0x30] sm:$0xff]
  %v2901 = vld [vmem:[%s2893 + $0x38] sm:$0xff]
  %v2903 = vsel %vm689, %v2885, 0
  %v2906 = vsel %vm689, %v2890, 0
  %2908 = vmatprep.subr.mxu0 0.0
  %2909 = vmatpush1.msra.mxu0 %v2894
  %2910 = vmatprep.subr.mxu0 0.0
  %2911 = vmatpush1.msra.mxu0 %v2895
  %2912 = vmatprep.subr.mxu0 0.0
  %2913 = vmatpush1.msra.mxu0 %v2896
  %2914 = vmatprep.subr.mxu0 0.0
  %2915 = vmatpush1.msra.mxu0 %v2897
  %2916 = vmatprep.subr.mxu0 0.0
  %2917 = vmatpush1.msra.mxu0 %v2898
  %2918 = vmatprep.subr.mxu0 0.0
  %2919 = vmatpush1.msra.mxu0 %v2899
  %2920 = vmatprep.subr.mxu0 0.0
  %2921 = vmatpush1.msra.mxu0 %v2900
  %2922 = vmatprep.subr.mxu0 0.0
  %2923 = vmatpush1.msra.mxu0 %v2901
  %2924 = vmatprep.subr.mxu0 0.0
  %2925 = vmatpush1.msra.mxu0 0.0
  %2926 = vmatprep.subr.mxu0 0.0
  %2927 = vmatpush1.msra.mxu0 0.0
  %2928 = vmatprep.subr.mxu0 0.0
  %2929 = vmatpush1.msra.mxu0 0.0
  %2930 = vmatprep.subr.mxu0 0.0
  %2931 = vmatpush1.msra.mxu0 0.0
  %2932 = vmatprep.subr.mxu0 0.0
  %2933 = vmatpush1.msra.mxu0 0.0
  %2934 = vmatprep.subr.mxu0 0.0
  %2935 = vmatpush1.msra.mxu0 0.0
  %2936 = vmatprep.subr.mxu0 0.0
  %2937 = vmatpush1.msra.mxu0 0.0
  %2938 = vmatprep.subr.mxu0 0.0
  %2939 = vmatpush1.msra.mxu0 0.0
  %2940 = vmatprep.subr.mxu0 0.0
  %2941 = vmatpush1.msra.mxu0 0.0
  %2942 = vmatprep.subr.mxu0 0.0
  %2943 = vmatpush1.msra.mxu0 0.0
  %2944 = vmatprep.subr.mxu0 0.0
  %2945 = vmatpush1.msra.mxu0 0.0
  %2946 = vmatprep.subr.mxu0 0.0
  %2947 = vmatpush1.msra.mxu0 0.0
  %2948 = vmatprep.subr.mxu0 0.0
  %2949 = vmatpush1.msra.mxu0 0.0
  %2950 = vmatprep.subr.mxu0 0.0
  %2951 = vmatpush1.msra.mxu0 0.0
  %2952 = vmatprep.subr.mxu0 0.0
  %2953 = vmatpush1.msra.mxu0 0.0
  %2954 = vmatprep.subr.mxu0 0.0
  %2955 = vmatpush1.msra.mxu0 0.0
  %2956 = vmatprep.subr.mxu0 0.0
  %2957 = vmatpush1.msra.mxu0 0.0
  %2958 = vmatprep.subr.mxu0 0.0
  %2959 = vmatpush1.msra.mxu0 0.0
  %2960 = vmatprep.subr.mxu0 0.0
  %2961 = vmatpush1.msra.mxu0 0.0
  %2962 = vmatprep.subr.mxu0 0.0
  %2963 = vmatpush1.msra.mxu0 0.0
  %2964 = vmatprep.subr.mxu0 0.0
  %2965 = vmatpush1.msra.mxu0 0.0
  %2966 = vmatprep.subr.mxu0 0.0
  %2967 = vmatpush1.msra.mxu0 0.0
  %2968 = vmatprep.subr.mxu0 0.0
  %2969 = vmatpush1.msra.mxu0 0.0
  %2970 = vmatprep.subr.mxu0 0.0
  %2971 = vmatpush1.msra.mxu0 0.0
  %2972 = vmatprep.mubr.f32.mxu0 0.0
  %2973 = vmatmul.mubr.f32.gmra.mrb[0].mxu0 %v2903
  %v2974 = vpop.f32.mrb[0].mxu0
  %v2975 = vadd.f32 0.0, %v2974
  %v2976 = vpop.f32.mrb[0].mxu0
  %2977 = vmatprep.mubr.f32.mxu0 0.0
  %2978 = vmatmul.mubr.f32.gmra.mrb[0].mxu0 %v2906
  %v2979 = vpop.f32.mrb[0].mxu0
  %v2980 = vadd.f32 0.0, %v2979
  %v2981 = vpop.f32.mrb[0].mxu0
  %2982 = vdwg.mxu0
  %v2984 = vsel %vm689, %v2793, 0
  %v2987 = vsel %vm689, %v2798, 0
  %2989 = vmatprep.subr.mxu0 0.0
  %2990 = vmatpush1.msra.mxu0 %v2801
  %2991 = vmatprep.subr.mxu0 0.0
  %2992 = vmatpush1.msra.mxu0 %v2802
  %2993 = vmatprep.subr.mxu0 0.0
  %2994 = vmatpush1.msra.mxu0 %v2803
  %2995 = vmatprep.subr.mxu0 0.0
  %2996 = vmatpush1.msra.mxu0 %v2804
  %2997 = vmatprep.subr.mxu0 0.0
  %2998 = vmatpush1.msra.mxu0 %v2805
  %2999 = vmatprep.subr.mxu0 0.0
  %3000 = vmatpush1.msra.mxu0 %v2806
  %3001 = vmatprep.subr.mxu0 0.0
  %3002 = vmatpush1.msra.mxu0 %v2807
  %3003 = vmatprep.subr.mxu0 0.0
  %3004 = vmatpush1.msra.mxu0 %v2808
  %3005 = vmatprep.subr.mxu0 0.0
  %3006 = vmatpush1.msra.mxu0 0.0
  %3007 = vmatprep.subr.mxu0 0.0
  %3008 = vmatpush1.msra.mxu0 0.0
  %3009 = vmatprep.subr.mxu0 0.0
  %3010 = vmatpush1.msra.mxu0 0.0
  %3011 = vmatprep.subr.mxu0 0.0
  %3012 = vmatpush1.msra.mxu0 0.0
  %3013 = vmatprep.subr.mxu0 0.0
  %3014 = vmatpush1.msra.mxu0 0.0
  %3015 = vmatprep.subr.mxu0 0.0
  %3016 = vmatpush1.msra.mxu0 0.0
  %3017 = vmatprep.subr.mxu0 0.0
  %3018 = vmatpush1.msra.mxu0 0.0
  %3019 = vmatprep.subr.mxu0 0.0
  %3020 = vmatpush1.msra.mxu0 0.0
  %3021 = vmatprep.subr.mxu0 0.0
  %3022 = vmatpush1.msra.mxu0 0.0
  %3023 = vmatprep.subr.mxu0 0.0
  %3024 = vmatpush1.msra.mxu0 0.0
  %3025 = vmatprep.subr.mxu0 0.0
  %3026 = vmatpush1.msra.mxu0 0.0
  %3027 = vmatprep.subr.mxu0 0.0
  %3028 = vmatpush1.msra.mxu0 0.0
  %3029 = vmatprep.subr.mxu0 0.0
  %3030 = vmatpush1.msra.mxu0 0.0
  %3031 = vmatprep.subr.mxu0 0.0
  %3032 = vmatpush1.msra.mxu0 0.0
  %3033 = vmatprep.subr.mxu0 0.0
  %3034 = vmatpush1.msra.mxu0 0.0
  %3035 = vmatprep.subr.mxu0 0.0
  %3036 = vmatpush1.msra.mxu0 0.0
  %3037 = vmatprep.subr.mxu0 0.0
  %3038 = vmatpush1.msra.mxu0 0.0
  %3039 = vmatprep.subr.mxu0 0.0
  %3040 = vmatpush1.msra.mxu0 0.0
  %3041 = vmatprep.subr.mxu0 0.0
  %3042 = vmatpush1.msra.mxu0 0.0
  %3043 = vmatprep.subr.mxu0 0.0
  %3044 = vmatpush1.msra.mxu0 0.0
  %3045 = vmatprep.subr.mxu0 0.0
  %3046 = vmatpush1.msra.mxu0 0.0
  %3047 = vmatprep.subr.mxu0 0.0
  %3048 = vmatpush1.msra.mxu0 0.0
  %3049 = vmatprep.subr.mxu0 0.0
  %3050 = vmatpush1.msra.mxu0 0.0
  %3051 = vmatprep.subr.mxu0 0.0
  %3052 = vmatpush1.msra.mxu0 0.0
  %3053 = vmatprep.mubr.f32.mxu0 0.0
  %3054 = vmatmul.mubr.f32.gmra.mrb[0].mxu0 %v2984
  %v3055 = vpop.f32.mrb[0].mxu0
  %v3056 = vadd.f32 %v2975, %v3055
  %v3057 = vpop.f32.mrb[0].mxu0
  %3058 = vmatprep.mubr.f32.mxu0 0.0
  %3059 = vmatmul.mubr.f32.gmra.mrb[0].mxu0 %v2987
  %v3060 = vpop.f32.mrb[0].mxu0
  %v3061 = vadd.f32 %v2980, %v3060
  %v3062 = vpop.f32.mrb[0].mxu0
  %3063 = vdwg.mxu0
  %s3064 = scalar_lea.vmem %s6, 32
  %v3065 = vld [vmem:[%s3064] sm:$0xff]
  %v3066 = vld [vmem:[%s3064 + $0x8] sm:$0xff]
  %v3068 = vsel %vm2719, %v3065, 0
  %v3071 = vsel %vm2719, %v3066, 0
  %3073 = vmatprep.subr.mxu0 0.0
  %3074 = vmatpush1.msra.mxu0 %v2710
  %3075 = vmatprep.subr.mxu0 0.0
  %3076 = vmatpush1.msra.mxu0 %v2711
  %3077 = vmatprep.subr.mxu0 0.0
  %3078 = vmatpush1.msra.mxu0 %v2712
  %3079 = vmatprep.subr.mxu0 0.0
  %3080 = vmatpush1.msra.mxu0 %v2713
  %3081 = vmatprep.subr.mxu0 0.0
  %3082 = vmatpush1.msra.mxu0 %v2714
  %3083 = vmatprep.subr.mxu0 0.0
  %3084 = vmatpush1.msra.mxu0 %v2715
  %3085 = vmatprep.subr.mxu0 0.0
  %3086 = vmatpush1.msra.mxu0 %v2716
  %3087 = vmatprep.subr.mxu0 0.0
  %3088 = vmatpush1.msra.mxu0 0.0
  %3089 = vmatprep.subr.mxu0 0.0
  %3090 = vmatpush1.msra.mxu0 0.0
  %3091 = vmatprep.subr.mxu0 0.0
  %3092 = vmatpush1.msra.mxu0 0.0
  %3093 = vmatprep.subr.mxu0 0.0
  %3094 = vmatpush1.msra.mxu0 0.0
  %3095 = vmatprep.subr.mxu0 0.0
  %3096 = vmatpush1.msra.mxu0 0.0
  %3097 = vmatprep.subr.mxu0 0.0
  %3098 = vmatpush1.msra.mxu0 0.0
  %3099 = vmatprep.subr.mxu0 0.0
  %3100 = vmatpush1.msra.mxu0 0.0
  %3101 = vmatprep.subr.mxu0 0.0
  %3102 = vmatpush1.msra.mxu0 0.0
  %3103 = vmatprep.subr.mxu0 0.0
  %3104 = vmatpush1.msra.mxu0 0.0
  %3105 = vmatprep.subr.mxu0 0.0
  %3106 = vmatpush1.msra.mxu0 0.0
  %3107 = vmatprep.subr.mxu0 0.0
  %3108 = vmatpush1.msra.mxu0 0.0
  %3109 = vmatprep.subr.mxu0 0.0
  %3110 = vmatpush1.msra.mxu0 0.0
  %3111 = vmatprep.subr.mxu0 0.0
  %3112 = vmatpush1.msra.mxu0 0.0
  %3113 = vmatprep.subr.mxu0 0.0
  %3114 = vmatpush1.msra.mxu0 0.0
  %3115 = vmatprep.subr.mxu0 0.0
  %3116 = vmatpush1.msra.mxu0 0.0
  %3117 = vmatprep.subr.mxu0 0.0
  %3118 = vmatpush1.msra.mxu0 0.0
  %3119 = vmatprep.subr.mxu0 0.0
  %3120 = vmatpush1.msra.mxu0 0.0
  %3121 = vmatprep.subr.mxu0 0.0
  %3122 = vmatpush1.msra.mxu0 0.0
  %3123 = vmatprep.subr.mxu0 0.0
  %3124 = vmatpush1.msra.mxu0 0.0
  %3125 = vmatprep.subr.mxu0 0.0
  %3126 = vmatpush1.msra.mxu0 0.0
  %3127 = vmatprep.subr.mxu0 0.0
  %3128 = vmatpush1.msra.mxu0 0.0
  %3129 = vmatprep.subr.mxu0 0.0
  %3130 = vmatpush1.msra.mxu0 0.0
  %3131 = vmatprep.subr.mxu0 0.0
  %3132 = vmatpush1.msra.mxu0 0.0
  %3133 = vmatprep.subr.mxu0 0.0
  %3134 = vmatpush1.msra.mxu0 0.0
  %3135 = vmatprep.subr.mxu0 0.0
  %3136 = vmatpush1.msra.mxu0 0.0
  %3137 = vmatprep.mubr.f32.mxu0 0.0
  %3138 = vmatmul.mubr.f32.gmra.mrb[0].mxu0 %v3068
  %v3139 = vpop.f32.mrb[0].mxu0
  %v3140 = vadd.f32 0.0, %v3139
  %v3141 = vpop.f32.mrb[0].mxu0
  %3142 = vmatprep.mubr.f32.mxu0 0.0
  %3143 = vmatmul.mubr.f32.gmra.mrb[0].mxu0 %v3071
  %v3144 = vpop.f32.mrb[0].mxu0
  %v3145 = vadd.f32 0.0, %v3144
  %v3146 = vpop.f32.mrb[0].mxu0
  %3147 = vdwg.mxu0
  %s3148 = scalar_lea.vmem %s7, 128
  %v3149 = vld [vmem:[%s3148] sm:$0xff]
  %v3150 = vld [vmem:[%s3148 + $0x8] sm:$0xff]
  %v3151 = vld [vmem:[%s3148 + $0x10] sm:$0xff]
  %v3152 = vld [vmem:[%s3148 + $0x18] sm:$0xff]
  %v3153 = vld [vmem:[%s3148 + $0x20] sm:$0xff]
  %v3154 = vld [vmem:[%s3148 + $0x28] sm:$0xff]
  %v3155 = vld [vmem:[%s3148 + $0x30] sm:$0xff]
  %v3156 = vld [vmem:[%s3148 + $0x38] sm:$0xff]
  %v3158 = vsel %vm689, %v3140, 0
  %v3161 = vsel %vm689, %v3145, 0
  %3163 = vmatprep.subr.mxu0 0.0
  %3164 = vmatpush1.msra.mxu0 %v3149
  %3165 = vmatprep.subr.mxu0 0.0
  %3166 = vmatpush1.msra.mxu0 %v3150
  %3167 = vmatprep.subr.mxu0 0.0
  %3168 = vmatpush1.msra.mxu0 %v3151
  %3169 = vmatprep.subr.mxu0 0.0
  %3170 = vmatpush1.msra.mxu0 %v3152
  %3171 = vmatprep.subr.mxu0 0.0
  %3172 = vmatpush1.msra.mxu0 %v3153
  %3173 = vmatprep.subr.mxu0 0.0
  %3174 = vmatpush1.msra.mxu0 %v3154
  %3175 = vmatprep.subr.mxu0 0.0
  %3176 = vmatpush1.msra.mxu0 %v3155
  %3177 = vmatprep.subr.mxu0 0.0
  %3178 = vmatpush1.msra.mxu0 %v3156
  %3179 = vmatprep.subr.mxu0 0.0
  %3180 = vmatpush1.msra.mxu0 0.0
  %3181 = vmatprep.subr.mxu0 0.0
  %3182 = vmatpush1.msra.mxu0 0.0
  %3183 = vmatprep.subr.mxu0 0.0
  %3184 = vmatpush1.msra.mxu0 0.0
  %3185 = vmatprep.subr.mxu0 0.0
  %3186 = vmatpush1.msra.mxu0 0.0
  %3187 = vmatprep.subr.mxu0 0.0
  %3188 = vmatpush1.msra.mxu0 0.0
  %3189 = vmatprep.subr.mxu0 0.0
  %3190 = vmatpush1.msra.mxu0 0.0
  %3191 = vmatprep.subr.mxu0 0.0
  %3192 = vmatpush1.msra.mxu0 0.0
  %3193 = vmatprep.subr.mxu0 0.0
  %3194 = vmatpush1.msra.mxu0 0.0
  %3195 = vmatprep.subr.mxu0 0.0
  %3196 = vmatpush1.msra.mxu0 0.0
  %3197 = vmatprep.subr.mxu0 0.0
  %3198 = vmatpush1.msra.mxu0 0.0
  %3199 = vmatprep.subr.mxu0 0.0
  %3200 = vmatpush1.msra.mxu0 0.0
  %3201 = vmatprep.subr.mxu0 0.0
  %3202 = vmatpush1.msra.mxu0 0.0
  %3203 = vmatprep.subr.mxu0 0.0
  %3204 = vmatpush1.msra.mxu0 0.0
  %3205 = vmatprep.subr.mxu0 0.0
  %3206 = vmatpush1.msra.mxu0 0.0
  %3207 = vmatprep.subr.mxu0 0.0
  %3208 = vmatpush1.msra.mxu0 0.0
  %3209 = vmatprep.subr.mxu0 0.0
  %3210 = vmatpush1.msra.mxu0 0.0
  %3211 = vmatprep.subr.mxu0 0.0
  %3212 = vmatpush1.msra.mxu0 0.0
  %3213 = vmatprep.subr.mxu0 0.0
  %3214 = vmatpush1.msra.mxu0 0.0
  %3215 = vmatprep.subr.mxu0 0.0
  %3216 = vmatpush1.msra.mxu0 0.0
  %3217 = vmatprep.subr.mxu0 0.0
  %3218 = vmatpush1.msra.mxu0 0.0
  %3219 = vmatprep.subr.mxu0 0.0
  %3220 = vmatpush1.msra.mxu0 0.0
  %3221 = vmatprep.subr.mxu0 0.0
  %3222 = vmatpush1.msra.mxu0 0.0
  %3223 = vmatprep.subr.mxu0 0.0
  %3224 = vmatpush1.msra.mxu0 0.0
  %3225 = vmatprep.subr.mxu0 0.0
  %3226 = vmatpush1.msra.mxu0 0.0
  %3227 = vmatprep.mubr.f32.mxu0 0.0
  %3228 = vmatmul.mubr.f32.gmra.mrb[0].mxu0 %v3158
  %v3229 = vpop.f32.mrb[0].mxu0
  %v3230 = vadd.f32 0.0, %v3229
  %v3231 = vpop.f32.mrb[0].mxu0
  %3232 = vmatprep.mubr.f32.mxu0 0.0
  %3233 = vmatmul.mubr.f32.gmra.mrb[0].mxu0 %v3161
  %v3234 = vpop.f32.mrb[0].mxu0
  %v3235 = vadd.f32 0.0, %v3234
  %v3236 = vpop.f32.mrb[0].mxu0
  %3237 = vdwg.mxu0
  %v3238 = vadd.f32 %v3056, %v3230
  %v3239 = vadd.f32 %v3061, %v3235
  %s3240 = scalar_lea.vmem %s6, 48
  %v3241 = vld [vmem:[%s3240] sm:$0xff]
  %v3242 = vld [vmem:[%s3240 + $0x8] sm:$0xff]
  %v3244 = vsel %vm2719, %v3241, 0
  %v3247 = vsel %vm2719, %v3242, 0
  %3249 = vmatprep.subr.mxu0 0.0
  %3250 = vmatpush1.msra.mxu0 %v2710
  %3251 = vmatprep.subr.mxu0 0.0
  %3252 = vmatpush1.msra.mxu0 %v2711
  %3253 = vmatprep.subr.mxu0 0.0
  %3254 = vmatpush1.msra.mxu0 %v2712
  %3255 = vmatprep.subr.mxu0 0.0
  %3256 = vmatpush1.msra.mxu0 %v2713
  %3257 = vmatprep.subr.mxu0 0.0
  %3258 = vmatpush1.msra.mxu0 %v2714
  %3259 = vmatprep.subr.mxu0 0.0
  %3260 = vmatpush1.msra.mxu0 %v2715
  %3261 = vmatprep.subr.mxu0 0.0
  %3262 = vmatpush1.msra.mxu0 %v2716
  %3263 = vmatprep.subr.mxu0 0.0
  %3264 = vmatpush1.msra.mxu0 0.0
  %3265 = vmatprep.subr.mxu0 0.0
  %3266 = vmatpush1.msra.mxu0 0.0
  %3267 = vmatprep.subr.mxu0 0.0
  %3268 = vmatpush1.msra.mxu0 0.0
  %3269 = vmatprep.subr.mxu0 0.0
  %3270 = vmatpush1.msra.mxu0 0.0
  %3271 = vmatprep.subr.mxu0 0.0
  %3272 = vmatpush1.msra.mxu0 0.0
  %3273 = vmatprep.subr.mxu0 0.0
  %3274 = vmatpush1.msra.mxu0 0.0
  %3275 = vmatprep.subr.mxu0 0.0
  %3276 = vmatpush1.msra.mxu0 0.0
  %3277 = vmatprep.subr.mxu0 0.0
  %3278 = vmatpush1.msra.mxu0 0.0
  %3279 = vmatprep.subr.mxu0 0.0
  %3280 = vmatpush1.msra.mxu0 0.0
  %3281 = vmatprep.subr.mxu0 0.0
  %3282 = vmatpush1.msra.mxu0 0.0
  %3283 = vmatprep.subr.mxu0 0.0
  %3284 = vmatpush1.msra.mxu0 0.0
  %3285 = vmatprep.subr.mxu0 0.0
  %3286 = vmatpush1.msra.mxu0 0.0
  %3287 = vmatprep.subr.mxu0 0.0
  %3288 = vmatpush1.msra.mxu0 0.0
  %3289 = vmatprep.subr.mxu0 0.0
  %3290 = vmatpush1.msra.mxu0 0.0
  %3291 = vmatprep.subr.mxu0 0.0
  %3292 = vmatpush1.msra.mxu0 0.0
  %3293 = vmatprep.subr.mxu0 0.0
  %3294 = vmatpush1.msra.mxu0 0.0
  %3295 = vmatprep.subr.mxu0 0.0
  %3296 = vmatpush1.msra.mxu0 0.0
  %3297 = vmatprep.subr.mxu0 0.0
  %3298 = vmatpush1.msra.mxu0 0.0
  %3299 = vmatprep.subr.mxu0 0.0
  %3300 = vmatpush1.msra.mxu0 0.0
  %3301 = vmatprep.subr.mxu0 0.0
  %3302 = vmatpush1.msra.mxu0 0.0
  %3303 = vmatprep.subr.mxu0 0.0
  %3304 = vmatpush1.msra.mxu0 0.0
  %3305 = vmatprep.subr.mxu0 0.0
  %3306 = vmatpush1.msra.mxu0 0.0
  %3307 = vmatprep.subr.mxu0 0.0
  %3308 = vmatpush1.msra.mxu0 0.0
  %3309 = vmatprep.subr.mxu0 0.0
  %3310 = vmatpush1.msra.mxu0 0.0
  %3311 = vmatprep.subr.mxu0 0.0
  %3312 = vmatpush1.msra.mxu0 0.0
  %3313 = vmatprep.mubr.f32.mxu0 0.0
  %3314 = vmatmul.mubr.f32.gmra.mrb[0].mxu0 %v3244
  %v3315 = vpop.f32.mrb[0].mxu0
  %v3316 = vadd.f32 0.0, %v3315
  %v3317 = vpop.f32.mrb[0].mxu0
  %3318 = vmatprep.mubr.f32.mxu0 0.0
  %3319 = vmatmul.mubr.f32.gmra.mrb[0].mxu0 %v3247
  %v3320 = vpop.f32.mrb[0].mxu0
  %v3321 = vadd.f32 0.0, %v3320
  %v3322 = vpop.f32.mrb[0].mxu0
  %3323 = vdwg.mxu0
  %s3324 = scalar_lea.vmem %s7, 192
  %v3325 = vld [vmem:[%s3324] sm:$0xff]
  %v3326 = vld [vmem:[%s3324 + $0x8] sm:$0xff]
  %v3327 = vld [vmem:[%s3324 + $0x10] sm:$0xff]
  %v3328 = vld [vmem:[%s3324 + $0x18] sm:$0xff]
  %v3329 = vld [vmem:[%s3324 + $0x20] sm:$0xff]
  %v3330 = vld [vmem:[%s3324 + $0x28] sm:$0xff]
  %v3331 = vld [vmem:[%s3324 + $0x30] sm:$0xff]
  %v3332 = vld [vmem:[%s3324 + $0x38] sm:$0xff]
  %v3334 = vsel %vm689, %v3316, 0
  %v3337 = vsel %vm689, %v3321, 0
  %3339 = vmatprep.subr.mxu0 0.0
  %3340 = vmatpush1.msra.mxu0 %v3325
  %3341 = vmatprep.subr.mxu0 0.0
  %3342 = vmatpush1.msra.mxu0 %v3326
  %3343 = vmatprep.subr.mxu0 0.0
  %3344 = vmatpush1.msra.mxu0 %v3327
  %3345 = vmatprep.subr.mxu0 0.0
  %3346 = vmatpush1.msra.mxu0 %v3328
  %3347 = vmatprep.subr.mxu0 0.0
  %3348 = vmatpush1.msra.mxu0 %v3329
  %3349 = vmatprep.subr.mxu0 0.0
  %3350 = vmatpush1.msra.mxu0 %v3330
  %3351 = vmatprep.subr.mxu0 0.0
  %3352 = vmatpush1.msra.mxu0 %v3331
  %3353 = vmatprep.subr.mxu0 0.0
  %3354 = vmatpush1.msra.mxu0 %v3332
  %3355 = vmatprep.subr.mxu0 0.0
  %3356 = vmatpush1.msra.mxu0 0.0
  %3357 = vmatprep.subr.mxu0 0.0
  %3358 = vmatpush1.msra.mxu0 0.0
  %3359 = vmatprep.subr.mxu0 0.0
  %3360 = vmatpush1.msra.mxu0 0.0
  %3361 = vmatprep.subr.mxu0 0.0
  %3362 = vmatpush1.msra.mxu0 0.0
  %3363 = vmatprep.subr.mxu0 0.0
  %3364 = vmatpush1.msra.mxu0 0.0
  %3365 = vmatprep.subr.mxu0 0.0
  %3366 = vmatpush1.msra.mxu0 0.0
  %3367 = vmatprep.subr.mxu0 0.0
  %3368 = vmatpush1.msra.mxu0 0.0
  %3369 = vmatprep.subr.mxu0 0.0
  %3370 = vmatpush1.msra.mxu0 0.0
  %3371 = vmatprep.subr.mxu0 0.0
  %3372 = vmatpush1.msra.mxu0 0.0
  %3373 = vmatprep.subr.mxu0 0.0
  %3374 = vmatpush1.msra.mxu0 0.0
  %3375 = vmatprep.subr.mxu0 0.0
  %3376 = vmatpush1.msra.mxu0 0.0
  %3377 = vmatprep.subr.mxu0 0.0
  %3378 = vmatpush1.msra.mxu0 0.0
  %3379 = vmatprep.subr.mxu0 0.0
  %3380 = vmatpush1.msra.mxu0 0.0
  %3381 = vmatprep.subr.mxu0 0.0
  %3382 = vmatpush1.msra.mxu0 0.0
  %3383 = vmatprep.subr.mxu0 0.0
  %3384 = vmatpush1.msra.mxu0 0.0
  %3385 = vmatprep.subr.mxu0 0.0
  %3386 = vmatpush1.msra.mxu0 0.0
  %3387 = vmatprep.subr.mxu0 0.0
  %3388 = vmatpush1.msra.mxu0 0.0
  %3389 = vmatprep.subr.mxu0 0.0
  %3390 = vmatpush1.msra.mxu0 0.0
  %3391 = vmatprep.subr.mxu0 0.0
  %3392 = vmatpush1.msra.mxu0 0.0
  %3393 = vmatprep.subr.mxu0 0.0
  %3394 = vmatpush1.msra.mxu0 0.0
  %3395 = vmatprep.subr.mxu0 0.0
  %3396 = vmatpush1.msra.mxu0 0.0
  %3397 = vmatprep.subr.mxu0 0.0
  %3398 = vmatpush1.msra.mxu0 0.0
  %3399 = vmatprep.subr.mxu0 0.0
  %3400 = vmatpush1.msra.mxu0 0.0
  %3401 = vmatprep.subr.mxu0 0.0
  %3402 = vmatpush1.msra.mxu0 0.0
  %3403 = vmatprep.mubr.f32.mxu0 0.0
  %3404 = vmatmul.mubr.f32.gmra.mrb[0].mxu0 %v3334
  %v3405 = vpop.f32.mrb[0].mxu0
  %v3406 = vadd.f32 0.0, %v3405
  %v3407 = vpop.f32.mrb[0].mxu0
  %3408 = vmatprep.mubr.f32.mxu0 0.0
  %3409 = vmatmul.mubr.f32.gmra.mrb[0].mxu0 %v3337
  %v3410 = vpop.f32.mrb[0].mxu0
  %v3411 = vadd.f32 0.0, %v3410
  %v3412 = vpop.f32.mrb[0].mxu0
  %3413 = vdwg.mxu0
  %v3414 = vadd.f32 %v3238, %v3406
  %v3415 = vadd.f32 %v3239, %v3411
  %s3416 = scalar_lea.vmem %s6, 64
  %v3417 = vld [vmem:[%s3416] sm:$0xff]
  %v3418 = vld [vmem:[%s3416 + $0x8] sm:$0xff]
  %v3420 = vsel %vm2719, %v3417, 0
  %v3423 = vsel %vm2719, %v3418, 0
  %3425 = vmatprep.subr.mxu0 0.0
  %3426 = vmatpush1.msra.mxu0 %v2710
  %3427 = vmatprep.subr.mxu0 0.0
  %3428 = vmatpush1.msra.mxu0 %v2711
  %3429 = vmatprep.subr.mxu0 0.0
  %3430 = vmatpush1.msra.mxu0 %v2712
  %3431 = vmatprep.subr.mxu0 0.0
  %3432 = vmatpush1.msra.mxu0 %v2713
  %3433 = vmatprep.subr.mxu0 0.0
  %3434 = vmatpush1.msra.mxu0 %v2714
  %3435 = vmatprep.subr.mxu0 0.0
  %3436 = vmatpush1.msra.mxu0 %v2715
  %3437 = vmatprep.subr.mxu0 0.0
  %3438 = vmatpush1.msra.mxu0 %v2716
  %3439 = vmatprep.subr.mxu0 0.0
  %3440 = vmatpush1.msra.mxu0 0.0
  %3441 = vmatprep.subr.mxu0 0.0
  %3442 = vmatpush1.msra.mxu0 0.0
  %3443 = vmatprep.subr.mxu0 0.0
  %3444 = vmatpush1.msra.mxu0 0.0
  %3445 = vmatprep.subr.mxu0 0.0
  %3446 = vmatpush1.msra.mxu0 0.0
  %3447 = vmatprep.subr.mxu0 0.0
  %3448 = vmatpush1.msra.mxu0 0.0
  %3449 = vmatprep.subr.mxu0 0.0
  %3450 = vmatpush1.msra.mxu0 0.0
  %3451 = vmatprep.subr.mxu0 0.0
  %3452 = vmatpush1.msra.mxu0 0.0
  %3453 = vmatprep.subr.mxu0 0.0
  %3454 = vmatpush1.msra.mxu0 0.0
  %3455 = vmatprep.subr.mxu0 0.0
  %3456 = vmatpush1.msra.mxu0 0.0
  %3457 = vmatprep.subr.mxu0 0.0
  %3458 = vmatpush1.msra.mxu0 0.0
  %3459 = vmatprep.subr.mxu0 0.0
  %3460 = vmatpush1.msra.mxu0 0.0
  %3461 = vmatprep.subr.mxu0 0.0
  %3462 = vmatpush1.msra.mxu0 0.0
  %3463 = vmatprep.subr.mxu0 0.0
  %3464 = vmatpush1.msra.mxu0 0.0
  %3465 = vmatprep.subr.mxu0 0.0
  %3466 = vmatpush1.msra.mxu0 0.0
  %3467 = vmatprep.subr.mxu0 0.0
  %3468 = vmatpush1.msra.mxu0 0.0
  %3469 = vmatprep.subr.mxu0 0.0
  %3470 = vmatpush1.msra.mxu0 0.0
  %3471 = vmatprep.subr.mxu0 0.0
  %3472 = vmatpush1.msra.mxu0 0.0
  %3473 = vmatprep.subr.mxu0 0.0
  %3474 = vmatpush1.msra.mxu0 0.0
  %3475 = vmatprep.subr.mxu0 0.0
  %3476 = vmatpush1.msra.mxu0 0.0
  %3477 = vmatprep.subr.mxu0 0.0
  %3478 = vmatpush1.msra.mxu0 0.0
  %3479 = vmatprep.subr.mxu0 0.0
  %3480 = vmatpush1.msra.mxu0 0.0
  %3481 = vmatprep.subr.mxu0 0.0
  %3482 = vmatpush1.msra.mxu0 0.0
  %3483 = vmatprep.subr.mxu0 0.0
  %3484 = vmatpush1.msra.mxu0 0.0
  %3485 = vmatprep.subr.mxu0 0.0
  %3486 = vmatpush1.msra.mxu0 0.0
  %3487 = vmatprep.subr.mxu0 0.0
  %3488 = vmatpush1.msra.mxu0 0.0
  %3489 = vmatprep.mubr.f32.mxu0 0.0
  %3490 = vmatmul.mubr.f32.gmra.mrb[0].mxu0 %v3420
  %v3491 = vpop.f32.mrb[0].mxu0
  %v3492 = vadd.f32 0.0, %v3491
  %v3493 = vpop.f32.mrb[0].mxu0
  %3494 = vmatprep.mubr.f32.mxu0 0.0
  %3495 = vmatmul.mubr.f32.gmra.mrb[0].mxu0 %v3423
  %v3496 = vpop.f32.mrb[0].mxu0
  %v3497 = vadd.f32 0.0, %v3496
  %v3498 = vpop.f32.mrb[0].mxu0
  %3499 = vdwg.mxu0
  %s3500 = scalar_lea.vmem %s7, 256
  %v3501 = vld [vmem:[%s3500] sm:$0xff]
  %v3502 = vld [vmem:[%s3500 + $0x8] sm:$0xff]
  %v3503 = vld [vmem:[%s3500 + $0x10] sm:$0xff]
  %v3504 = vld [vmem:[%s3500 + $0x18] sm:$0xff]
  %v3505 = vld [vmem:[%s3500 + $0x20] sm:$0xff]
  %v3506 = vld [vmem:[%s3500 + $0x28] sm:$0xff]
  %v3507 = vld [vmem:[%s3500 + $0x30] sm:$0xff]
  %v3508 = vld [vmem:[%s3500 + $0x38] sm:$0xff]
  %v3510 = vsel %vm689, %v3492, 0
  %v3513 = vsel %vm689, %v3497, 0
  %3515 = vmatprep.subr.mxu0 0.0
  %3516 = vmatpush1.msra.mxu0 %v3501
  %3517 = vmatprep.subr.mxu0 0.0
  %3518 = vmatpush1.msra.mxu0 %v3502
  %3519 = vmatprep.subr.mxu0 0.0
  %3520 = vmatpush1.msra.mxu0 %v3503
  %3521 = vmatprep.subr.mxu0 0.0
  %3522 = vmatpush1.msra.mxu0 %v3504
  %3523 = vmatprep.subr.mxu0 0.0
  %3524 = vmatpush1.msra.mxu0 %v3505
  %3525 = vmatprep.subr.mxu0 0.0
  %3526 = vmatpush1.msra.mxu0 %v3506
  %3527 = vmatprep.subr.mxu0 0.0
  %3528 = vmatpush1.msra.mxu0 %v3507
  %3529 = vmatprep.subr.mxu0 0.0
  %3530 = vmatpush1.msra.mxu0 %v3508
  %3531 = vmatprep.subr.mxu0 0.0
  %3532 = vmatpush1.msra.mxu0 0.0
  %3533 = vmatprep.subr.mxu0 0.0
  %3534 = vmatpush1.msra.mxu0 0.0
  %3535 = vmatprep.subr.mxu0 0.0
  %3536 = vmatpush1.msra.mxu0 0.0
  %3537 = vmatprep.subr.mxu0 0.0
  %3538 = vmatpush1.msra.mxu0 0.0
  %3539 = vmatprep.subr.mxu0 0.0
  %3540 = vmatpush1.msra.mxu0 0.0
  %3541 = vmatprep.subr.mxu0 0.0
  %3542 = vmatpush1.msra.mxu0 0.0
  %3543 = vmatprep.subr.mxu0 0.0
  %3544 = vmatpush1.msra.mxu0 0.0
  %3545 = vmatprep.subr.mxu0 0.0
  %3546 = vmatpush1.msra.mxu0 0.0
  %3547 = vmatprep.subr.mxu0 0.0
  %3548 = vmatpush1.msra.mxu0 0.0
  %3549 = vmatprep.subr.mxu0 0.0
  %3550 = vmatpush1.msra.mxu0 0.0
  %3551 = vmatprep.subr.mxu0 0.0
  %3552 = vmatpush1.msra.mxu0 0.0
  %3553 = vmatprep.subr.mxu0 0.0
  %3554 = vmatpush1.msra.mxu0 0.0
  %3555 = vmatprep.subr.mxu0 0.0
  %3556 = vmatpush1.msra.mxu0 0.0
  %3557 = vmatprep.subr.mxu0 0.0
  %3558 = vmatpush1.msra.mxu0 0.0
  %3559 = vmatprep.subr.mxu0 0.0
  %3560 = vmatpush1.msra.mxu0 0.0
  %3561 = vmatprep.subr.mxu0 0.0
  %3562 = vmatpush1.msra.mxu0 0.0
  %3563 = vmatprep.subr.mxu0 0.0
  %3564 = vmatpush1.msra.mxu0 0.0
  %3565 = vmatprep.subr.mxu0 0.0
  %3566 = vmatpush1.msra.mxu0 0.0
  %3567 = vmatprep.subr.mxu0 0.0
  %3568 = vmatpush1.msra.mxu0 0.0
  %3569 = vmatprep.subr.mxu0 0.0
  %3570 = vmatpush1.msra.mxu0 0.0
  %3571 = vmatprep.subr.mxu0 0.0
  %3572 = vmatpush1.msra.mxu0 0.0
  %3573 = vmatprep.subr.mxu0 0.0
  %3574 = vmatpush1.msra.mxu0 0.0
  %3575 = vmatprep.subr.mxu0 0.0
  %3576 = vmatpush1.msra.mxu0 0.0
  %3577 = vmatprep.subr.mxu0 0.0
  %3578 = vmatpush1.msra.mxu0 0.0
  %3579 = vmatprep.mubr.f32.mxu0 0.0
  %3580 = vmatmul.mubr.f32.gmra.mrb[0].mxu0 %v3510
  %v3581 = vpop.f32.mrb[0].mxu0
  %v3582 = vadd.f32 0.0, %v3581
  %v3583 = vpop.f32.mrb[0].mxu0
  %3584 = vmatprep.mubr.f32.mxu0 0.0
  %3585 = vmatmul.mubr.f32.gmra.mrb[0].mxu0 %v3513
  %v3586 = vpop.f32.mrb[0].mxu0
  %v3587 = vadd.f32 0.0, %v3586
  %v3588 = vpop.f32.mrb[0].mxu0
  %3589 = vdwg.mxu0
  %v3590 = vadd.f32 %v3414, %v3582
  %v3591 = vadd.f32 %v3415, %v3587
  %s3592 = scalar_lea.vmem %s6, 80
  %v3593 = vld [vmem:[%s3592] sm:$0xff]
  %v3594 = vld [vmem:[%s3592 + $0x8] sm:$0xff]
  %v3596 = vsel %vm2719, %v3593, 0
  %v3599 = vsel %vm2719, %v3594, 0
  %3601 = vmatprep.subr.mxu0 0.0
  %3602 = vmatpush1.msra.mxu0 %v2710
  %3603 = vmatprep.subr.mxu0 0.0
  %3604 = vmatpush1.msra.mxu0 %v2711
  %3605 = vmatprep.subr.mxu0 0.0
  %3606 = vmatpush1.msra.mxu0 %v2712
  %3607 = vmatprep.subr.mxu0 0.0
  %3608 = vmatpush1.msra.mxu0 %v2713
  %3609 = vmatprep.subr.mxu0 0.0
  %3610 = vmatpush1.msra.mxu0 %v2714
  %3611 = vmatprep.subr.mxu0 0.0
  %3612 = vmatpush1.msra.mxu0 %v2715
  %3613 = vmatprep.subr.mxu0 0.0
  %3614 = vmatpush1.msra.mxu0 %v2716
  %3615 = vmatprep.subr.mxu0 0.0
  %3616 = vmatpush1.msra.mxu0 0.0
  %3617 = vmatprep.subr.mxu0 0.0
  %3618 = vmatpush1.msra.mxu0 0.0
  %3619 = vmatprep.subr.mxu0 0.0
  %3620 = vmatpush1.msra.mxu0 0.0
  %3621 = vmatprep.subr.mxu0 0.0
  %3622 = vmatpush1.msra.mxu0 0.0
  %3623 = vmatprep.subr.mxu0 0.0
  %3624 = vmatpush1.msra.mxu0 0.0
  %3625 = vmatprep.subr.mxu0 0.0
  %3626 = vmatpush1.msra.mxu0 0.0
  %3627 = vmatprep.subr.mxu0 0.0
  %3628 = vmatpush1.msra.mxu0 0.0
  %3629 = vmatprep.subr.mxu0 0.0
  %3630 = vmatpush1.msra.mxu0 0.0
  %3631 = vmatprep.subr.mxu0 0.0
  %3632 = vmatpush1.msra.mxu0 0.0
  %3633 = vmatprep.subr.mxu0 0.0
  %3634 = vmatpush1.msra.mxu0 0.0
  %3635 = vmatprep.subr.mxu0 0.0
  %3636 = vmatpush1.msra.mxu0 0.0
  %3637 = vmatprep.subr.mxu0 0.0
  %3638 = vmatpush1.msra.mxu0 0.0
  %3639 = vmatprep.subr.mxu0 0.0
  %3640 = vmatpush1.msra.mxu0 0.0
  %3641 = vmatprep.subr.mxu0 0.0
  %3642 = vmatpush1.msra.mxu0 0.0
  %3643 = vmatprep.subr.mxu0 0.0
  %3644 = vmatpush1.msra.mxu0 0.0
  %3645 = vmatprep.subr.mxu0 0.0
  %3646 = vmatpush1.msra.mxu0 0.0
  %3647 = vmatprep.subr.mxu0 0.0
  %3648 = vmatpush1.msra.mxu0 0.0
  %3649 = vmatprep.subr.mxu0 0.0
  %3650 = vmatpush1.msra.mxu0 0.0
  %3651 = vmatprep.subr.mxu0 0.0
  %3652 = vmatpush1.msra.mxu0 0.0
  %3653 = vmatprep.subr.mxu0 0.0
  %3654 = vmatpush1.msra.mxu0 0.0
  %3655 = vmatprep.subr.mxu0 0.0
  %3656 = vmatpush1.msra.mxu0 0.0
  %3657 = vmatprep.subr.mxu0 0.0
  %3658 = vmatpush1.msra.mxu0 0.0
  %3659 = vmatprep.subr.mxu0 0.0
  %3660 = vmatpush1.msra.mxu0 0.0
  %3661 = vmatprep.subr.mxu0 0.0
  %3662 = vmatpush1.msra.mxu0 0.0
  %3663 = vmatprep.subr.mxu0 0.0
  %3664 = vmatpush1.msra.mxu0 0.0
  %3665 = vmatprep.mubr.f32.mxu0 0.0
  %3666 = vmatmul.mubr.f32.gmra.mrb[0].mxu0 %v3596
  %v3667 = vpop.f32.mrb[0].mxu0
  %v3668 = vadd.f32 0.0, %v3667
  %v3669 = vpop.f32.mrb[0].mxu0
  %3670 = vmatprep.mubr.f32.mxu0 0.0
  %3671 = vmatmul.mubr.f32.gmra.mrb[0].mxu0 %v3599
  %v3672 = vpop.f32.mrb[0].mxu0
  %v3673 = vadd.f32 0.0, %v3672
  %v3674 = vpop.f32.mrb[0].mxu0
  %3675 = vdwg.mxu0
  %s3676 = scalar_lea.vmem %s7, 320
  %v3677 = vld [vmem:[%s3676] sm:$0xff]
  %v3678 = vld [vmem:[%s3676 + $0x8] sm:$0xff]
  %v3679 = vld [vmem:[%s3676 + $0x10] sm:$0xff]
  %v3680 = vld [vmem:[%s3676 + $0x18] sm:$0xff]
  %v3681 = vld [vmem:[%s3676 + $0x20] sm:$0xff]
  %v3682 = vld [vmem:[%s3676 + $0x28] sm:$0xff]
  %v3683 = vld [vmem:[%s3676 + $0x30] sm:$0xff]
  %v3684 = vld [vmem:[%s3676 + $0x38] sm:$0xff]
  %v3686 = vsel %vm689, %v3668, 0
  %v3689 = vsel %vm689, %v3673, 0
  %3691 = vmatprep.subr.mxu0 0.0
  %3692 = vmatpush1.msra.mxu0 %v3677
  %3693 = vmatprep.subr.mxu0 0.0
  %3694 = vmatpush1.msra.mxu0 %v3678
  %3695 = vmatprep.subr.mxu0 0.0
  %3696 = vmatpush1.msra.mxu0 %v3679
  %3697 = vmatprep.subr.mxu0 0.0
  %3698 = vmatpush1.msra.mxu0 %v3680
  %3699 = vmatprep.subr.mxu0 0.0
  %3700 = vmatpush1.msra.mxu0 %v3681
  %3701 = vmatprep.subr.mxu0 0.0
  %3702 = vmatpush1.msra.mxu0 %v3682
  %3703 = vmatprep.subr.mxu0 0.0
  %3704 = vmatpush1.msra.mxu0 %v3683
  %3705 = vmatprep.subr.mxu0 0.0
  %3706 = vmatpush1.msra.mxu0 %v3684
  %3707 = vmatprep.subr.mxu0 0.0
  %3708 = vmatpush1.msra.mxu0 0.0
  %3709 = vmatprep.subr.mxu0 0.0
  %3710 = vmatpush1.msra.mxu0 0.0
  %3711 = vmatprep.subr.mxu0 0.0
  %3712 = vmatpush1.msra.mxu0 0.0
  %3713 = vmatprep.subr.mxu0 0.0
  %3714 = vmatpush1.msra.mxu0 0.0
  %3715 = vmatprep.subr.mxu0 0.0
  %3716 = vmatpush1.msra.mxu0 0.0
  %3717 = vmatprep.subr.mxu0 0.0
  %3718 = vmatpush1.msra.mxu0 0.0
  %3719 = vmatprep.subr.mxu0 0.0
  %3720 = vmatpush1.msra.mxu0 0.0
  %3721 = vmatprep.subr.mxu0 0.0
  %3722 = vmatpush1.msra.mxu0 0.0
  %3723 = vmatprep.subr.mxu0 0.0
  %3724 = vmatpush1.msra.mxu0 0.0
  %3725 = vmatprep.subr.mxu0 0.0
  %3726 = vmatpush1.msra.mxu0 0.0
  %3727 = vmatprep.subr.mxu0 0.0
  %3728 = vmatpush1.msra.mxu0 0.0
  %3729 = vmatprep.subr.mxu0 0.0
  %3730 = vmatpush1.msra.mxu0 0.0
  %3731 = vmatprep.subr.mxu0 0.0
  %3732 = vmatpush1.msra.mxu0 0.0
  %3733 = vmatprep.subr.mxu0 0.0
  %3734 = vmatpush1.msra.mxu0 0.0
  %3735 = vmatprep.subr.mxu0 0.0
  %3736 = vmatpush1.msra.mxu0 0.0
  %3737 = vmatprep.subr.mxu0 0.0
  %3738 = vmatpush1.msra.mxu0 0.0
  %3739 = vmatprep.subr.mxu0 0.0
  %3740 = vmatpush1.msra.mxu0 0.0
  %3741 = vmatprep.subr.mxu0 0.0
  %3742 = vmatpush1.msra.mxu0 0.0
  %3743 = vmatprep.subr.mxu0 0.0
  %3744 = vmatpush1.msra.mxu0 0.0
  %3745 = vmatprep.subr.mxu0 0.0
  %3746 = vmatpush1.msra.mxu0 0.0
  %3747 = vmatprep.subr.mxu0 0.0
  %3748 = vmatpush1.msra.mxu0 0.0
  %3749 = vmatprep.subr.mxu0 0.0
  %3750 = vmatpush1.msra.mxu0 0.0
  %3751 = vmatprep.subr.mxu0 0.0
  %3752 = vmatpush1.msra.mxu0 0.0
  %3753 = vmatprep.subr.mxu0 0.0
  %3754 = vmatpush1.msra.mxu0 0.0
  %3755 = vmatprep.mubr.f32.mxu0 0.0
  %3756 = vmatmul.mubr.f32.gmra.mrb[0].mxu0 %v3686
  %v3757 = vpop.f32.mrb[0].mxu0
  %v3758 = vadd.f32 0.0, %v3757
  %v3759 = vpop.f32.mrb[0].mxu0
  %3760 = vmatprep.mubr.f32.mxu0 0.0
  %3761 = vmatmul.mubr.f32.gmra.mrb[0].mxu0 %v3689
  %v3762 = vpop.f32.mrb[0].mxu0
  %v3763 = vadd.f32 0.0, %v3762
  %v3764 = vpop.f32.mrb[0].mxu0
  %3765 = vdwg.mxu0
  %v3766 = vadd.f32 %v3590, %v3758
  %v3767 = vadd.f32 %v3591, %v3763
  %s3768 = scalar_lea.vmem %s6, 96
  %v3769 = vld [vmem:[%s3768] sm:$0xff]
  %v3770 = vld [vmem:[%s3768 + $0x8] sm:$0xff]
  %v3772 = vsel %vm2719, %v3769, 0
  %v3775 = vsel %vm2719, %v3770, 0
  %3777 = vmatprep.subr.mxu0 0.0
  %3778 = vmatpush1.msra.mxu0 %v2710
  %3779 = vmatprep.subr.mxu0 0.0
  %3780 = vmatpush1.msra.mxu0 %v2711
  %3781 = vmatprep.subr.mxu0 0.0
  %3782 = vmatpush1.msra.mxu0 %v2712
  %3783 = vmatprep.subr.mxu0 0.0
  %3784 = vmatpush1.msra.mxu0 %v2713
  %3785 = vmatprep.subr.mxu0 0.0
  %3786 = vmatpush1.msra.mxu0 %v2714
  %3787 = vmatprep.subr.mxu0 0.0
  %3788 = vmatpush1.msra.mxu0 %v2715
  %3789 = vmatprep.subr.mxu0 0.0
  %3790 = vmatpush1.msra.mxu0 %v2716
  %3791 = vmatprep.subr.mxu0 0.0
  %3792 = vmatpush1.msra.mxu0 0.0
  %3793 = vmatprep.subr.mxu0 0.0
  %3794 = vmatpush1.msra.mxu0 0.0
  %3795 = vmatprep.subr.mxu0 0.0
  %3796 = vmatpush1.msra.mxu0 0.0
  %3797 = vmatprep.subr.mxu0 0.0
  %3798 = vmatpush1.msra.mxu0 0.0
  %3799 = vmatprep.subr.mxu0 0.0
  %3800 = vmatpush1.msra.mxu0 0.0
  %3801 = vmatprep.subr.mxu0 0.0
  %3802 = vmatpush1.msra.mxu0 0.0
  %3803 = vmatprep.subr.mxu0 0.0
  %3804 = vmatpush1.msra.mxu0 0.0
  %3805 = vmatprep.subr.mxu0 0.0
  %3806 = vmatpush1.msra.mxu0 0.0
  %3807 = vmatprep.subr.mxu0 0.0
  %3808 = vmatpush1.msra.mxu0 0.0
  %3809 = vmatprep.subr.mxu0 0.0
  %3810 = vmatpush1.msra.mxu0 0.0
  %3811 = vmatprep.subr.mxu0 0.0
  %3812 = vmatpush1.msra.mxu0 0.0
  %3813 = vmatprep.subr.mxu0 0.0
  %3814 = vmatpush1.msra.mxu0 0.0
  %3815 = vmatprep.subr.mxu0 0.0
  %3816 = vmatpush1.msra.mxu0 0.0
  %3817 = vmatprep.subr.mxu0 0.0
  %3818 = vmatpush1.msra.mxu0 0.0
  %3819 = vmatprep.subr.mxu0 0.0
  %3820 = vmatpush1.msra.mxu0 0.0
  %3821 = vmatprep.subr.mxu0 0.0
  %3822 = vmatpush1.msra.mxu0 0.0
  %3823 = vmatprep.subr.mxu0 0.0
  %3824 = vmatpush1.msra.mxu0 0.0
  %3825 = vmatprep.subr.mxu0 0.0
  %3826 = vmatpush1.msra.mxu0 0.0
  %3827 = vmatprep.subr.mxu0 0.0
  %3828 = vmatpush1.msra.mxu0 0.0
  %3829 = vmatprep.subr.mxu0 0.0
  %3830 = vmatpush1.msra.mxu0 0.0
  %3831 = vmatprep.subr.mxu0 0.0
  %3832 = vmatpush1.msra.mxu0 0.0
  %3833 = vmatprep.subr.mxu0 0.0
  %3834 = vmatpush1.msra.mxu0 0.0
  %3835 = vmatprep.subr.mxu0 0.0
  %3836 = vmatpush1.msra.mxu0 0.0
  %3837 = vmatprep.subr.mxu0 0.0
  %3838 = vmatpush1.msra.mxu0 0.0
  %3839 = vmatprep.subr.mxu0 0.0
  %3840 = vmatpush1.msra.mxu0 0.0
  %3841 = vmatprep.mubr.f32.mxu0 0.0
  %3842 = vmatmul.mubr.f32.gmra.mrb[0].mxu0 %v3772
  %v3843 = vpop.f32.mrb[0].mxu0
  %v3844 = vadd.f32 0.0, %v3843
  %v3845 = vpop.f32.mrb[0].mxu0
  %3846 = vmatprep.mubr.f32.mxu0 0.0
  %3847 = vmatmul.mubr.f32.gmra.mrb[0].mxu0 %v3775
  %v3848 = vpop.f32.mrb[0].mxu0
  %v3849 = vadd.f32 0.0, %v3848
  %v3850 = vpop.f32.mrb[0].mxu0
  %3851 = vdwg.mxu0
  %s3852 = scalar_lea.vmem %s7, 384
  %v3853 = vld [vmem:[%s3852] sm:$0xff]
  %v3854 = vld [vmem:[%s3852 + $0x8] sm:$0xff]
  %v3855 = vld [vmem:[%s3852 + $0x10] sm:$0xff]
  %v3856 = vld [vmem:[%s3852 + $0x18] sm:$0xff]
  %v3857 = vld [vmem:[%s3852 + $0x20] sm:$0xff]
  %v3858 = vld [vmem:[%s3852 + $0x28] sm:$0xff]
  %v3859 = vld [vmem:[%s3852 + $0x30] sm:$0xff]
  %v3860 = vld [vmem:[%s3852 + $0x38] sm:$0xff]
  %v3862 = vsel %vm689, %v3844, 0
  %v3865 = vsel %vm689, %v3849, 0
  %3867 = vmatprep.subr.mxu0 0.0
  %3868 = vmatpush1.msra.mxu0 %v3853
  %3869 = vmatprep.subr.mxu0 0.0
  %3870 = vmatpush1.msra.mxu0 %v3854
  %3871 = vmatprep.subr.mxu0 0.0
  %3872 = vmatpush1.msra.mxu0 %v3855
  %3873 = vmatprep.subr.mxu0 0.0
  %3874 = vmatpush1.msra.mxu0 %v3856
  %3875 = vmatprep.subr.mxu0 0.0
  %3876 = vmatpush1.msra.mxu0 %v3857
  %3877 = vmatprep.subr.mxu0 0.0
  %3878 = vmatpush1.msra.mxu0 %v3858
  %3879 = vmatprep.subr.mxu0 0.0
  %3880 = vmatpush1.msra.mxu0 %v3859
  %3881 = vmatprep.subr.mxu0 0.0
  %3882 = vmatpush1.msra.mxu0 %v3860
  %3883 = vmatprep.subr.mxu0 0.0
  %3884 = vmatpush1.msra.mxu0 0.0
  %3885 = vmatprep.subr.mxu0 0.0
  %3886 = vmatpush1.msra.mxu0 0.0
  %3887 = vmatprep.subr.mxu0 0.0
  %3888 = vmatpush1.msra.mxu0 0.0
  %3889 = vmatprep.subr.mxu0 0.0
  %3890 = vmatpush1.msra.mxu0 0.0
  %3891 = vmatprep.subr.mxu0 0.0
  %3892 = vmatpush1.msra.mxu0 0.0
  %3893 = vmatprep.subr.mxu0 0.0
  %3894 = vmatpush1.msra.mxu0 0.0
  %3895 = vmatprep.subr.mxu0 0.0
  %3896 = vmatpush1.msra.mxu0 0.0
  %3897 = vmatprep.subr.mxu0 0.0
  %3898 = vmatpush1.msra.mxu0 0.0
  %3899 = vmatprep.subr.mxu0 0.0
  %3900 = vmatpush1.msra.mxu0 0.0
  %3901 = vmatprep.subr.mxu0 0.0
  %3902 = vmatpush1.msra.mxu0 0.0
  %3903 = vmatprep.subr.mxu0 0.0
  %3904 = vmatpush1.msra.mxu0 0.0
  %3905 = vmatprep.subr.mxu0 0.0
  %3906 = vmatpush1.msra.mxu0 0.0
  %3907 = vmatprep.subr.mxu0 0.0
  %3908 = vmatpush1.msra.mxu0 0.0
  %3909 = vmatprep.subr.mxu0 0.0
  %3910 = vmatpush1.msra.mxu0 0.0
  %3911 = vmatprep.subr.mxu0 0.0
  %3912 = vmatpush1.msra.mxu0 0.0
  %3913 = vmatprep.subr.mxu0 0.0
  %3914 = vmatpush1.msra.mxu0 0.0
  %3915 = vmatprep.subr.mxu0 0.0
  %3916 = vmatpush1.msra.mxu0 0.0
  %3917 = vmatprep.subr.mxu0 0.0
  %3918 = vmatpush1.msra.mxu0 0.0
  %3919 = vmatprep.subr.mxu0 0.0
  %3920 = vmatpush1.msra.mxu0 0.0
  %3921 = vmatprep.subr.mxu0 0.0
  %3922 = vmatpush1.msra.mxu0 0.0
  %3923 = vmatprep.subr.mxu0 0.0
  %3924 = vmatpush1.msra.mxu0 0.0
  %3925 = vmatprep.subr.mxu0 0.0
  %3926 = vmatpush1.msra.mxu0 0.0
  %3927 = vmatprep.subr.mxu0 0.0
  %3928 = vmatpush1.msra.mxu0 0.0
  %3929 = vmatprep.subr.mxu0 0.0
  %3930 = vmatpush1.msra.mxu0 0.0
  %3931 = vmatprep.mubr.f32.mxu0 0.0
  %3932 = vmatmul.mubr.f32.gmra.mrb[0].mxu0 %v3862
  %v3933 = vpop.f32.mrb[0].mxu0
  %v3934 = vadd.f32 0.0, %v3933
  %v3935 = vpop.f32.mrb[0].mxu0
  %3936 = vmatprep.mubr.f32.mxu0 0.0
  %3937 = vmatmul.mubr.f32.gmra.mrb[0].mxu0 %v3865
  %v3938 = vpop.f32.mrb[0].mxu0
  %v3939 = vadd.f32 0.0, %v3938
  %v3940 = vpop.f32.mrb[0].mxu0
  %3941 = vdwg.mxu0
  %v3942 = vadd.f32 %v3766, %v3934
  %v3943 = vadd.f32 %v3767, %v3939
  %s3944 = scalar_lea.vmem %s6, 112
  %v3945 = vld [vmem:[%s3944] sm:$0xff]
  %v3946 = vld [vmem:[%s3944 + $0x8] sm:$0xff]
  %v3948 = vsel %vm2719, %v3945, 0
  %v3951 = vsel %vm2719, %v3946, 0
  %3953 = vmatprep.subr.mxu0 0.0
  %3954 = vmatpush1.msra.mxu0 %v2710
  %3955 = vmatprep.subr.mxu0 0.0
  %3956 = vmatpush1.msra.mxu0 %v2711
  %3957 = vmatprep.subr.mxu0 0.0
  %3958 = vmatpush1.msra.mxu0 %v2712
  %3959 = vmatprep.subr.mxu0 0.0
  %3960 = vmatpush1.msra.mxu0 %v2713
  %3961 = vmatprep.subr.mxu0 0.0
  %3962 = vmatpush1.msra.mxu0 %v2714
  %3963 = vmatprep.subr.mxu0 0.0
  %3964 = vmatpush1.msra.mxu0 %v2715
  %3965 = vmatprep.subr.mxu0 0.0
  %3966 = vmatpush1.msra.mxu0 %v2716
  %3967 = vmatprep.subr.mxu0 0.0
  %3968 = vmatpush1.msra.mxu0 0.0
  %3969 = vmatprep.subr.mxu0 0.0
  %3970 = vmatpush1.msra.mxu0 0.0
  %3971 = vmatprep.subr.mxu0 0.0
  %3972 = vmatpush1.msra.mxu0 0.0
  %3973 = vmatprep.subr.mxu0 0.0
  %3974 = vmatpush1.msra.mxu0 0.0
  %3975 = vmatprep.subr.mxu0 0.0
  %3976 = vmatpush1.msra.mxu0 0.0
  %3977 = vmatprep.subr.mxu0 0.0
  %3978 = vmatpush1.msra.mxu0 0.0
  %3979 = vmatprep.subr.mxu0 0.0
  %3980 = vmatpush1.msra.mxu0 0.0
  %3981 = vmatprep.subr.mxu0 0.0
  %3982 = vmatpush1.msra.mxu0 0.0
  %3983 = vmatprep.subr.mxu0 0.0
  %3984 = vmatpush1.msra.mxu0 0.0
  %3985 = vmatprep.subr.mxu0 0.0
  %3986 = vmatpush1.msra.mxu0 0.0
  %3987 = vmatprep.subr.mxu0 0.0
  %3988 = vmatpush1.msra.mxu0 0.0
  %3989 = vmatprep.subr.mxu0 0.0
  %3990 = vmatpush1.msra.mxu0 0.0
  %3991 = vmatprep.subr.mxu0 0.0
  %3992 = vmatpush1.msra.mxu0 0.0
  %3993 = vmatprep.subr.mxu0 0.0
  %3994 = vmatpush1.msra.mxu0 0.0
  %3995 = vmatprep.subr.mxu0 0.0
  %3996 = vmatpush1.msra.mxu0 0.0
  %3997 = vmatprep.subr.mxu0 0.0
  %3998 = vmatpush1.msra.mxu0 0.0
  %3999 = vmatprep.subr.mxu0 0.0
  %4000 = vmatpush1.msra.mxu0 0.0
  %4001 = vmatprep.subr.mxu0 0.0
  %4002 = vmatpush1.msra.mxu0 0.0
  %4003 = vmatprep.subr.mxu0 0.0
  %4004 = vmatpush1.msra.mxu0 0.0
  %4005 = vmatprep.subr.mxu0 0.0
  %4006 = vmatpush1.msra.mxu0 0.0
  %4007 = vmatprep.subr.mxu0 0.0
  %4008 = vmatpush1.msra.mxu0 0.0
  %4009 = vmatprep.subr.mxu0 0.0
  %4010 = vmatpush1.msra.mxu0 0.0
  %4011 = vmatprep.subr.mxu0 0.0
  %4012 = vmatpush1.msra.mxu0 0.0
  %4013 = vmatprep.subr.mxu0 0.0
  %4014 = vmatpush1.msra.mxu0 0.0
  %4015 = vmatprep.subr.mxu0 0.0
  %4016 = vmatpush1.msra.mxu0 0.0
  %4017 = vmatprep.mubr.f32.mxu0 0.0
  %4018 = vmatmul.mubr.f32.gmra.mrb[0].mxu0 %v3948
  %v4019 = vpop.f32.mrb[0].mxu0
  %v4020 = vadd.f32 0.0, %v4019
  %v4021 = vpop.f32.mrb[0].mxu0
  %4022 = vmatprep.mubr.f32.mxu0 0.0
  %4023 = vmatmul.mubr.f32.gmra.mrb[0].mxu0 %v3951
  %v4024 = vpop.f32.mrb[0].mxu0
  %v4025 = vadd.f32 0.0, %v4024
  %v4026 = vpop.f32.mrb[0].mxu0
  %4027 = vdwg.mxu0
  %s4028 = scalar_lea.vmem %s7, 448
  %v4029 = vld [vmem:[%s4028] sm:$0xff]
  %v4030 = vld [vmem:[%s4028 + $0x8] sm:$0xff]
  %v4031 = vld [vmem:[%s4028 + $0x10] sm:$0xff]
  %v4032 = vld [vmem:[%s4028 + $0x18] sm:$0xff]
  %v4033 = vld [vmem:[%s4028 + $0x20] sm:$0xff]
  %v4034 = vld [vmem:[%s4028 + $0x28] sm:$0xff]
  %v4035 = vld [vmem:[%s4028 + $0x30] sm:$0xff]
  %v4036 = vld [vmem:[%s4028 + $0x38] sm:$0xff]
  %v4038 = vsel %vm689, %v4020, 0
  %v4041 = vsel %vm689, %v4025, 0
  %4043 = vmatprep.subr.mxu0 0.0
  %4044 = vmatpush1.msra.mxu0 %v4029
  %4045 = vmatprep.subr.mxu0 0.0
  %4046 = vmatpush1.msra.mxu0 %v4030
  %4047 = vmatprep.subr.mxu0 0.0
  %4048 = vmatpush1.msra.mxu0 %v4031
  %4049 = vmatprep.subr.mxu0 0.0
  %4050 = vmatpush1.msra.mxu0 %v4032
  %4051 = vmatprep.subr.mxu0 0.0
  %4052 = vmatpush1.msra.mxu0 %v4033
  %4053 = vmatprep.subr.mxu0 0.0
  %4054 = vmatpush1.msra.mxu0 %v4034
  %4055 = vmatprep.subr.mxu0 0.0
  %4056 = vmatpush1.msra.mxu0 %v4035
  %4057 = vmatprep.subr.mxu0 0.0
  %4058 = vmatpush1.msra.mxu0 %v4036
  %4059 = vmatprep.subr.mxu0 0.0
  %4060 = vmatpush1.msra.mxu0 0.0
  %4061 = vmatprep.subr.mxu0 0.0
  %4062 = vmatpush1.msra.mxu0 0.0
  %4063 = vmatprep.subr.mxu0 0.0
  %4064 = vmatpush1.msra.mxu0 0.0
  %4065 = vmatprep.subr.mxu0 0.0
  %4066 = vmatpush1.msra.mxu0 0.0
  %4067 = vmatprep.subr.mxu0 0.0
  %4068 = vmatpush1.msra.mxu0 0.0
  %4069 = vmatprep.subr.mxu0 0.0
  %4070 = vmatpush1.msra.mxu0 0.0
  %4071 = vmatprep.subr.mxu0 0.0
  %4072 = vmatpush1.msra.mxu0 0.0
  %4073 = vmatprep.subr.mxu0 0.0
  %4074 = vmatpush1.msra.mxu0 0.0
  %4075 = vmatprep.subr.mxu0 0.0
  %4076 = vmatpush1.msra.mxu0 0.0
  %4077 = vmatprep.subr.mxu0 0.0
  %4078 = vmatpush1.msra.mxu0 0.0
  %4079 = vmatprep.subr.mxu0 0.0
  %4080 = vmatpush1.msra.mxu0 0.0
  %4081 = vmatprep.subr.mxu0 0.0
  %4082 = vmatpush1.msra.mxu0 0.0
  %4083 = vmatprep.subr.mxu0 0.0
  %4084 = vmatpush1.msra.mxu0 0.0
  %4085 = vmatprep.subr.mxu0 0.0
  %4086 = vmatpush1.msra.mxu0 0.0
  %4087 = vmatprep.subr.mxu0 0.0
  %4088 = vmatpush1.msra.mxu0 0.0
  %4089 = vmatprep.subr.mxu0 0.0
  %4090 = vmatpush1.msra.mxu0 0.0
  %4091 = vmatprep.subr.mxu0 0.0
  %4092 = vmatpush1.msra.mxu0 0.0
  %4093 = vmatprep.subr.mxu0 0.0
  %4094 = vmatpush1.msra.mxu0 0.0
  %4095 = vmatprep.subr.mxu0 0.0
  %4096 = vmatpush1.msra.mxu0 0.0
  %4097 = vmatprep.subr.mxu0 0.0
  %4098 = vmatpush1.msra.mxu0 0.0
  %4099 = vmatprep.subr.mxu0 0.0
  %4100 = vmatpush1.msra.mxu0 0.0
  %4101 = vmatprep.subr.mxu0 0.0
  %4102 = vmatpush1.msra.mxu0 0.0
  %4103 = vmatprep.subr.mxu0 0.0
  %4104 = vmatpush1.msra.mxu0 0.0
  %4105 = vmatprep.subr.mxu0 0.0
  %4106 = vmatpush1.msra.mxu0 0.0
  %4107 = vmatprep.mubr.f32.mxu0 0.0
  %4108 = vmatmul.mubr.f32.gmra.mrb[0].mxu0 %v4038
  %v4109 = vpop.f32.mrb[0].mxu0
  %v4110 = vadd.f32 0.0, %v4109
  %v4111 = vpop.f32.mrb[0].mxu0
  %4112 = vmatprep.mubr.f32.mxu0 0.0
  %4113 = vmatmul.mubr.f32.gmra.mrb[0].mxu0 %v4041
  %v4114 = vpop.f32.mrb[0].mxu0
  %v4115 = vadd.f32 0.0, %v4114
  %v4116 = vpop.f32.mrb[0].mxu0
  %4117 = vdwg.mxu0
  %v4118 = vadd.f32 %v3942, %v4110
  %v4119 = vadd.f32 %v3943, %v4115
  %s4120 = scalar_lea.vmem %s6, 128
  %v4121 = vld [vmem:[%s4120] sm:$0xff]
  %v4122 = vld [vmem:[%s4120 + $0x8] sm:$0xff]
  %v4124 = vsel %vm2719, %v4121, 0
  %v4127 = vsel %vm2719, %v4122, 0
  %4129 = vmatprep.subr.mxu0 0.0
  %4130 = vmatpush1.msra.mxu0 %v2710
  %4131 = vmatprep.subr.mxu0 0.0
  %4132 = vmatpush1.msra.mxu0 %v2711
  %4133 = vmatprep.subr.mxu0 0.0
  %4134 = vmatpush1.msra.mxu0 %v2712
  %4135 = vmatprep.subr.mxu0 0.0
  %4136 = vmatpush1.msra.mxu0 %v2713
  %4137 = vmatprep.subr.mxu0 0.0
  %4138 = vmatpush1.msra.mxu0 %v2714
  %4139 = vmatprep.subr.mxu0 0.0
  %4140 = vmatpush1.msra.mxu0 %v2715
  %4141 = vmatprep.subr.mxu0 0.0
  %4142 = vmatpush1.msra.mxu0 %v2716
  %4143 = vmatprep.subr.mxu0 0.0
  %4144 = vmatpush1.msra.mxu0 0.0
  %4145 = vmatprep.subr.mxu0 0.0
  %4146 = vmatpush1.msra.mxu0 0.0
  %4147 = vmatprep.subr.mxu0 0.0
  %4148 = vmatpush1.msra.mxu0 0.0
  %4149 = vmatprep.subr.mxu0 0.0
  %4150 = vmatpush1.msra.mxu0 0.0
  %4151 = vmatprep.subr.mxu0 0.0
  %4152 = vmatpush1.msra.mxu0 0.0
  %4153 = vmatprep.subr.mxu0 0.0
  %4154 = vmatpush1.msra.mxu0 0.0
  %4155 = vmatprep.subr.mxu0 0.0
  %4156 = vmatpush1.msra.mxu0 0.0
  %4157 = vmatprep.subr.mxu0 0.0
  %4158 = vmatpush1.msra.mxu0 0.0
  %4159 = vmatprep.subr.mxu0 0.0
  %4160 = vmatpush1.msra.mxu0 0.0
  %4161 = vmatprep.subr.mxu0 0.0
  %4162 = vmatpush1.msra.mxu0 0.0
  %4163 = vmatprep.subr.mxu0 0.0
  %4164 = vmatpush1.msra.mxu0 0.0
  %4165 = vmatprep.subr.mxu0 0.0
  %4166 = vmatpush1.msra.mxu0 0.0
  %4167 = vmatprep.subr.mxu0 0.0
  %4168 = vmatpush1.msra.mxu0 0.0
  %4169 = vmatprep.subr.mxu0 0.0
  %4170 = vmatpush1.msra.mxu0 0.0
  %4171 = vmatprep.subr.mxu0 0.0
  %4172 = vmatpush1.msra.mxu0 0.0
  %4173 = vmatprep.subr.mxu0 0.0
  %4174 = vmatpush1.msra.mxu0 0.0
  %4175 = vmatprep.subr.mxu0 0.0
  %4176 = vmatpush1.msra.mxu0 0.0
  %4177 = vmatprep.subr.mxu0 0.0
  %4178 = vmatpush1.msra.mxu0 0.0
  %4179 = vmatprep.subr.mxu0 0.0
  %4180 = vmatpush1.msra.mxu0 0.0
  %4181 = vmatprep.subr.mxu0 0.0
  %4182 = vmatpush1.msra.mxu0 0.0
  %4183 = vmatprep.subr.mxu0 0.0
  %4184 = vmatpush1.msra.mxu0 0.0
  %4185 = vmatprep.subr.mxu0 0.0
  %4186 = vmatpush1.msra.mxu0 0.0
  %4187 = vmatprep.subr.mxu0 0.0
  %4188 = vmatpush1.msra.mxu0 0.0
  %4189 = vmatprep.subr.mxu0 0.0
  %4190 = vmatpush1.msra.mxu0 0.0
  %4191 = vmatprep.subr.mxu0 0.0
  %4192 = vmatpush1.msra.mxu0 0.0
  %4193 = vmatprep.mubr.f32.mxu0 0.0
  %4194 = vmatmul.mubr.f32.gmra.mrb[0].mxu0 %v4124
  %v4195 = vpop.f32.mrb[0].mxu0
  %v4196 = vadd.f32 0.0, %v4195
  %v4197 = vpop.f32.mrb[0].mxu0
  %4198 = vmatprep.mubr.f32.mxu0 0.0
  %4199 = vmatmul.mubr.f32.gmra.mrb[0].mxu0 %v4127
  %v4200 = vpop.f32.mrb[0].mxu0
  %v4201 = vadd.f32 0.0, %v4200
  %v4202 = vpop.f32.mrb[0].mxu0
  %4203 = vdwg.mxu0
  %s4204 = scalar_lea.vmem %s7, 512
  %v4205 = vld [vmem:[%s4204] sm:$0xff]
  %v4206 = vld [vmem:[%s4204 + $0x8] sm:$0xff]
  %v4207 = vld [vmem:[%s4204 + $0x10] sm:$0xff]
  %v4208 = vld [vmem:[%s4204 + $0x18] sm:$0xff]
  %v4209 = vld [vmem:[%s4204 + $0x20] sm:$0xff]
  %v4210 = vld [vmem:[%s4204 + $0x28] sm:$0xff]
  %v4211 = vld [vmem:[%s4204 + $0x30] sm:$0xff]
  %v4212 = vld [vmem:[%s4204 + $0x38] sm:$0xff]
  %v4214 = vsel %vm689, %v4196, 0
  %v4217 = vsel %vm689, %v4201, 0
  %4219 = vmatprep.subr.mxu0 0.0
  %4220 = vmatpush1.msra.mxu0 %v4205
  %4221 = vmatprep.subr.mxu0 0.0
  %4222 = vmatpush1.msra.mxu0 %v4206
  %4223 = vmatprep.subr.mxu0 0.0
  %4224 = vmatpush1.msra.mxu0 %v4207
  %4225 = vmatprep.subr.mxu0 0.0
  %4226 = vmatpush1.msra.mxu0 %v4208
  %4227 = vmatprep.subr.mxu0 0.0
  %4228 = vmatpush1.msra.mxu0 %v4209
  %4229 = vmatprep.subr.mxu0 0.0
  %4230 = vmatpush1.msra.mxu0 %v4210
  %4231 = vmatprep.subr.mxu0 0.0
  %4232 = vmatpush1.msra.mxu0 %v4211
  %4233 = vmatprep.subr.mxu0 0.0
  %4234 = vmatpush1.msra.mxu0 %v4212
  %4235 = vmatprep.subr.mxu0 0.0
  %4236 = vmatpush1.msra.mxu0 0.0
  %4237 = vmatprep.subr.mxu0 0.0
  %4238 = vmatpush1.msra.mxu0 0.0
  %4239 = vmatprep.subr.mxu0 0.0
  %4240 = vmatpush1.msra.mxu0 0.0
  %4241 = vmatprep.subr.mxu0 0.0
  %4242 = vmatpush1.msra.mxu0 0.0
  %4243 = vmatprep.subr.mxu0 0.0
  %4244 = vmatpush1.msra.mxu0 0.0
  %4245 = vmatprep.subr.mxu0 0.0
  %4246 = vmatpush1.msra.mxu0 0.0
  %4247 = vmatprep.subr.mxu0 0.0
  %4248 = vmatpush1.msra.mxu0 0.0
  %4249 = vmatprep.subr.mxu0 0.0
  %4250 = vmatpush1.msra.mxu0 0.0
  %4251 = vmatprep.subr.mxu0 0.0
  %4252 = vmatpush1.msra.mxu0 0.0
  %4253 = vmatprep.subr.mxu0 0.0
  %4254 = vmatpush1.msra.mxu0 0.0
  %4255 = vmatprep.subr.mxu0 0.0
  %4256 = vmatpush1.msra.mxu0 0.0
  %4257 = vmatprep.subr.mxu0 0.0
  %4258 = vmatpush1.msra.mxu0 0.0
  %4259 = vmatprep.subr.mxu0 0.0
  %4260 = vmatpush1.msra.mxu0 0.0
  %4261 = vmatprep.subr.mxu0 0.0
  %4262 = vmatpush1.msra.mxu0 0.0
  %4263 = vmatprep.subr.mxu0 0.0
  %4264 = vmatpush1.msra.mxu0 0.0
  %4265 = vmatprep.subr.mxu0 0.0
  %4266 = vmatpush1.msra.mxu0 0.0
  %4267 = vmatprep.subr.mxu0 0.0
  %4268 = vmatpush1.msra.mxu0 0.0
  %4269 = vmatprep.subr.mxu0 0.0
  %4270 = vmatpush1.msra.mxu0 0.0
  %4271 = vmatprep.subr.mxu0 0.0
  %4272 = vmatpush1.msra.mxu0 0.0
  %4273 = vmatprep.subr.mxu0 0.0
  %4274 = vmatpush1.msra.mxu0 0.0
  %4275 = vmatprep.subr.mxu0 0.0
  %4276 = vmatpush1.msra.mxu0 0.0
  %4277 = vmatprep.subr.mxu0 0.0
  %4278 = vmatpush1.msra.mxu0 0.0
  %4279 = vmatprep.subr.mxu0 0.0
  %4280 = vmatpush1.msra.mxu0 0.0
  %4281 = vmatprep.subr.mxu0 0.0
  %4282 = vmatpush1.msra.mxu0 0.0
  %4283 = vmatprep.mubr.f32.mxu0 0.0
  %4284 = vmatmul.mubr.f32.gmra.mrb[0].mxu0 %v4214
  %v4285 = vpop.f32.mrb[0].mxu0
  %v4286 = vadd.f32 0.0, %v4285
  %v4287 = vpop.f32.mrb[0].mxu0
  %4288 = vmatprep.mubr.f32.mxu0 0.0
  %4289 = vmatmul.mubr.f32.gmra.mrb[0].mxu0 %v4217
  %v4290 = vpop.f32.mrb[0].mxu0
  %v4291 = vadd.f32 0.0, %v4290
  %v4292 = vpop.f32.mrb[0].mxu0
  %4293 = vdwg.mxu0
  %v4294 = vadd.f32 %v4118, %v4286
  %v4295 = vadd.f32 %v4119, %v4291
  %v4296 = vld [vmem:[%s8] sm:$0x1]
  %v4298 = vlaneseq
  %v4299 = vshrl.u32 %v4298, 7
  %v4300 = vsub.s32 0, %v4299
  %v4301 = vrot.slane %v4296, %v4300
  %v4303 = vadd.f32 %v4294, %v4301
  %v4304 = vadd.f32 %v4295, %v4301
  %v4305 = vmax.f32 %v4303, 0.0
  %v4306 = vmax.f32 %v4304, 0.0
  %v4307 = vld [vmem:[%s9] sm:$0x3]
  %vm4308 = vcmask 130048
  %v4310 = vsel %vm4308, %v4307, 0
  %4312 = vmatprep.subr.mxu0 0.0
  %4313 = vmatpush1.msra.mxu0 %v4305
  %4314 = vmatprep.subr.mxu0 0.0
  %4315 = vmatpush1.msra.mxu0 %v4306
  %4316 = vmatprep.subr.mxu0 0.0
  %4317 = vmatpush1.msra.mxu0 0.0
  %4318 = vmatprep.subr.mxu0 0.0
  %4319 = vmatpush1.msra.mxu0 0.0
  %4320 = vmatprep.subr.mxu0 0.0
  %4321 = vmatpush1.msra.mxu0 0.0
  %4322 = vmatprep.subr.mxu0 0.0
  %4323 = vmatpush1.msra.mxu0 0.0
  %4324 = vmatprep.subr.mxu0 0.0
  %4325 = vmatpush1.msra.mxu0 0.0
  %4326 = vmatprep.subr.mxu0 0.0
  %4327 = vmatpush1.msra.mxu0 0.0
  %4328 = vmatprep.subr.mxu0 0.0
  %4329 = vmatpush1.msra.mxu0 0.0
  %4330 = vmatprep.subr.mxu0 0.0
  %4331 = vmatpush1.msra.mxu0 0.0
  %4332 = vmatprep.subr.mxu0 0.0
  %4333 = vmatpush1.msra.mxu0 0.0
  %4334 = vmatprep.subr.mxu0 0.0
  %4335 = vmatpush1.msra.mxu0 0.0
  %4336 = vmatprep.subr.mxu0 0.0
  %4337 = vmatpush1.msra.mxu0 0.0
  %4338 = vmatprep.subr.mxu0 0.0
  %4339 = vmatpush1.msra.mxu0 0.0
  %4340 = vmatprep.subr.mxu0 0.0
  %4341 = vmatpush1.msra.mxu0 0.0
  %4342 = vmatprep.subr.mxu0 0.0
  %4343 = vmatpush1.msra.mxu0 0.0
  %4344 = vmatprep.subr.mxu0 0.0
  %4345 = vmatpush1.msra.mxu0 0.0
  %4346 = vmatprep.subr.mxu0 0.0
  %4347 = vmatpush1.msra.mxu0 0.0
  %4348 = vmatprep.subr.mxu0 0.0
  %4349 = vmatpush1.msra.mxu0 0.0
  %4350 = vmatprep.subr.mxu0 0.0
  %4351 = vmatpush1.msra.mxu0 0.0
  %4352 = vmatprep.subr.mxu0 0.0
  %4353 = vmatpush1.msra.mxu0 0.0
  %4354 = vmatprep.subr.mxu0 0.0
  %4355 = vmatpush1.msra.mxu0 0.0
  %4356 = vmatprep.subr.mxu0 0.0
  %4357 = vmatpush1.msra.mxu0 0.0
  %4358 = vmatprep.subr.mxu0 0.0
  %4359 = vmatpush1.msra.mxu0 0.0
  %4360 = vmatprep.subr.mxu0 0.0
  %4361 = vmatpush1.msra.mxu0 0.0
  %4362 = vmatprep.subr.mxu0 0.0
  %4363 = vmatpush1.msra.mxu0 0.0
  %4364 = vmatprep.subr.mxu0 0.0
  %4365 = vmatpush1.msra.mxu0 0.0
  %4366 = vmatprep.subr.mxu0 0.0
  %4367 = vmatpush1.msra.mxu0 0.0
  %4368 = vmatprep.subr.mxu0 0.0
  %4369 = vmatpush1.msra.mxu0 0.0
  %4370 = vmatprep.subr.mxu0 0.0
  %4371 = vmatpush1.msra.mxu0 0.0
  %4372 = vmatprep.subr.mxu0 0.0
  %4373 = vmatpush1.msra.mxu0 0.0
  %4374 = vmatprep.subr.mxu0 0.0
  %4375 = vmatpush1.msra.mxu0 0.0
  %4376 = vmatprep.mubr.f32.mxu0 0.0
  %4377 = vmatmul.mubr.f32.gmra.mrb[0].mxu0 %v4310
  %v4378 = vpop.f32.mrb[0].mxu0
  %v4379 = vadd.f32 0.0, %v4378
  %v4380 = vpop.f32.mrb[0].mxu0
  %4381 = vdwg.mxu0
  %v4382 = vld [vmem:[%s10] sm:$0xff]
  %v4383 = vld [vmem:[%s10 + $0x8] sm:$0xff]
  %v4384 = vld [vmem:[%s10 + $0x10] sm:$0xff]
  %v4385 = vld [vmem:[%s10 + $0x18] sm:$0xff]
  %v4386 = vld [vmem:[%s10 + $0x20] sm:$0xff]
  %v4387 = vld [vmem:[%s10 + $0x28] sm:$0xff]
  %v4388 = vld [vmem:[%s10 + $0x30] sm:$0xff]
  %v4389 = vld [vmem:[%s10 + $0x38] sm:$0xff]
  %s4390 = scalar_lea.vmem %s9, 2
  %v4391 = vld [vmem:[%s4390] sm:$0x3]
  %v4393 = vsel %vm4308, %v4391, 0
  %4395 = vmatprep.subr.mxu0 0.0
  %4396 = vmatpush1.msra.mxu0 %v4305
  %4397 = vmatprep.subr.mxu0 0.0
  %4398 = vmatpush1.msra.mxu0 %v4306
  %4399 = vmatprep.subr.mxu0 0.0
  %4400 = vmatpush1.msra.mxu0 0.0
  %4401 = vmatprep.subr.mxu0 0.0
  %4402 = vmatpush1.msra.mxu0 0.0
  %4403 = vmatprep.subr.mxu0 0.0
  %4404 = vmatpush1.msra.mxu0 0.0
  %4405 = vmatprep.subr.mxu0 0.0
  %4406 = vmatpush1.msra.mxu0 0.0
  %4407 = vmatprep.subr.mxu0 0.0
  %4408 = vmatpush1.msra.mxu0 0.0
  %4409 = vmatprep.subr.mxu0 0.0
  %4410 = vmatpush1.msra.mxu0 0.0
  %4411 = vmatprep.subr.mxu0 0.0
  %4412 = vmatpush1.msra.mxu0 0.0
  %4413 = vmatprep.subr.mxu0 0.0
  %4414 = vmatpush1.msra.mxu0 0.0
  %4415 = vmatprep.subr.mxu0 0.0
  %4416 = vmatpush1.msra.mxu0 0.0
  %4417 = vmatprep.subr.mxu0 0.0
  %4418 = vmatpush1.msra.mxu0 0.0
  %4419 = vmatprep.subr.mxu0 0.0
  %4420 = vmatpush1.msra.mxu0 0.0
  %4421 = vmatprep.subr.mxu0 0.0
  %4422 = vmatpush1.msra.mxu0 0.0
  %4423 = vmatprep.subr.mxu0 0.0
  %4424 = vmatpush1.msra.mxu0 0.0
  %4425 = vmatprep.subr.mxu0 0.0
  %4426 = vmatpush1.msra.mxu0 0.0
  %4427 = vmatprep.subr.mxu0 0.0
  %4428 = vmatpush1.msra.mxu0 0.0
  %4429 = vmatprep.subr.mxu0 0.0
  %4430 = vmatpush1.msra.mxu0 0.0
  %4431 = vmatprep.subr.mxu0 0.0
  %4432 = vmatpush1.msra.mxu0 0.0
  %4433 = vmatprep.subr.mxu0 0.0
  %4434 = vmatpush1.msra.mxu0 0.0
  %4435 = vmatprep.subr.mxu0 0.0
  %4436 = vmatpush1.msra.mxu0 0.0
  %4437 = vmatprep.subr.mxu0 0.0
  %4438 = vmatpush1.msra.mxu0 0.0
  %4439 = vmatprep.subr.mxu0 0.0
  %4440 = vmatpush1.msra.mxu0 0.0
  %4441 = vmatprep.subr.mxu0 0.0
  %4442 = vmatpush1.msra.mxu0 0.0
  %4443 = vmatprep.subr.mxu0 0.0
  %4444 = vmatpush1.msra.mxu0 0.0
  %4445 = vmatprep.subr.mxu0 0.0
  %4446 = vmatpush1.msra.mxu0 0.0
  %4447 = vmatprep.subr.mxu0 0.0
  %4448 = vmatpush1.msra.mxu0 0.0
  %4449 = vmatprep.subr.mxu0 0.0
  %4450 = vmatpush1.msra.mxu0 0.0
  %4451 = vmatprep.subr.mxu0 0.0
  %4452 = vmatpush1.msra.mxu0 0.0
  %4453 = vmatprep.subr.mxu0 0.0
  %4454 = vmatpush1.msra.mxu0 0.0
  %4455 = vmatprep.subr.mxu0 0.0
  %4456 = vmatpush1.msra.mxu0 0.0
  %4457 = vmatprep.subr.mxu0 0.0
  %4458 = vmatpush1.msra.mxu0 0.0
  %4459 = vmatprep.mubr.f32.mxu0 0.0
  %4460 = vmatmul.mubr.f32.gmra.mrb[0].mxu0 %v4393
  %v4461 = vpop.f32.mrb[0].mxu0
  %v4462 = vadd.f32 0.0, %v4461
  %v4463 = vpop.f32.mrb[0].mxu0
  %4464 = vdwg.mxu0
  %s4465 = scalar_lea.vmem %s10, 64
  %v4466 = vld [vmem:[%s4465] sm:$0xff]
  %v4467 = vld [vmem:[%s4465 + $0x8] sm:$0xff]
  %v4468 = vld [vmem:[%s4465 + $0x10] sm:$0xff]
  %v4469 = vld [vmem:[%s4465 + $0x18] sm:$0xff]
  %v4470 = vld [vmem:[%s4465 + $0x20] sm:$0xff]
  %v4471 = vld [vmem:[%s4465 + $0x28] sm:$0xff]
  %v4472 = vld [vmem:[%s4465 + $0x30] sm:$0xff]
  %v4473 = vld [vmem:[%s4465 + $0x38] sm:$0xff]
  %v4475 = vsel %vm689, %v4462, 0
  %4477 = vmatprep.subr.mxu0 0.0
  %4478 = vmatpush1.msra.mxu0 %v4466
  %4479 = vmatprep.subr.mxu0 0.0
  %4480 = vmatpush1.msra.mxu0 %v4467
  %4481 = vmatprep.subr.mxu0 0.0
  %4482 = vmatpush1.msra.mxu0 %v4468
  %4483 = vmatprep.subr.mxu0 0.0
  %4484 = vmatpush1.msra.mxu0 %v4469
  %4485 = vmatprep.subr.mxu0 0.0
  %4486 = vmatpush1.msra.mxu0 %v4470
  %4487 = vmatprep.subr.mxu0 0.0
  %4488 = vmatpush1.msra.mxu0 %v4471
  %4489 = vmatprep.subr.mxu0 0.0
  %4490 = vmatpush1.msra.mxu0 %v4472
  %4491 = vmatprep.subr.mxu0 0.0
  %4492 = vmatpush1.msra.mxu0 %v4473
  %4493 = vmatprep.subr.mxu0 0.0
  %4494 = vmatpush1.msra.mxu0 0.0
  %4495 = vmatprep.subr.mxu0 0.0
  %4496 = vmatpush1.msra.mxu0 0.0
  %4497 = vmatprep.subr.mxu0 0.0
  %4498 = vmatpush1.msra.mxu0 0.0
  %4499 = vmatprep.subr.mxu0 0.0
  %4500 = vmatpush1.msra.mxu0 0.0
  %4501 = vmatprep.subr.mxu0 0.0
  %4502 = vmatpush1.msra.mxu0 0.0
  %4503 = vmatprep.subr.mxu0 0.0
  %4504 = vmatpush1.msra.mxu0 0.0
  %4505 = vmatprep.subr.mxu0 0.0
  %4506 = vmatpush1.msra.mxu0 0.0
  %4507 = vmatprep.subr.mxu0 0.0
  %4508 = vmatpush1.msra.mxu0 0.0
  %4509 = vmatprep.subr.mxu0 0.0
  %4510 = vmatpush1.msra.mxu0 0.0
  %4511 = vmatprep.subr.mxu0 0.0
  %4512 = vmatpush1.msra.mxu0 0.0
  %4513 = vmatprep.subr.mxu0 0.0
  %4514 = vmatpush1.msra.mxu0 0.0
  %4515 = vmatprep.subr.mxu0 0.0
  %4516 = vmatpush1.msra.mxu0 0.0
  %4517 = vmatprep.subr.mxu0 0.0
  %4518 = vmatpush1.msra.mxu0 0.0
  %4519 = vmatprep.subr.mxu0 0.0
  %4520 = vmatpush1.msra.mxu0 0.0
  %4521 = vmatprep.subr.mxu0 0.0
  %4522 = vmatpush1.msra.mxu0 0.0
  %4523 = vmatprep.subr.mxu0 0.0
  %4524 = vmatpush1.msra.mxu0 0.0
  %4525 = vmatprep.subr.mxu0 0.0
  %4526 = vmatpush1.msra.mxu0 0.0
  %4527 = vmatprep.subr.mxu0 0.0
  %4528 = vmatpush1.msra.mxu0 0.0
  %4529 = vmatprep.subr.mxu0 0.0
  %4530 = vmatpush1.msra.mxu0 0.0
  %4531 = vmatprep.subr.mxu0 0.0
  %4532 = vmatpush1.msra.mxu0 0.0
  %4533 = vmatprep.subr.mxu0 0.0
  %4534 = vmatpush1.msra.mxu0 0.0
  %4535 = vmatprep.subr.mxu0 0.0
  %4536 = vmatpush1.msra.mxu0 0.0
  %4537 = vmatprep.subr.mxu0 0.0
  %4538 = vmatpush1.msra.mxu0 0.0
  %4539 = vmatprep.subr.mxu0 0.0
  %4540 = vmatpush1.msra.mxu0 0.0
  %4541 = vmatprep.mubr.f32.mxu0 0.0
  %4542 = vmatmul.mubr.f32.gmra.mrb[0].mxu0 %v4475
  %v4543 = vpop.f32.mrb[0].mxu0
  %v4544 = vadd.f32 0.0, %v4543
  %v4545 = vpop.f32.mrb[0].mxu0
  %4546 = vdwg.mxu0
  %v4548 = vsel %vm689, %v4379, 0
  %4550 = vmatprep.subr.mxu0 0.0
  %4551 = vmatpush1.msra.mxu0 %v4382
  %4552 = vmatprep.subr.mxu0 0.0
  %4553 = vmatpush1.msra.mxu0 %v4383
  %4554 = vmatprep.subr.mxu0 0.0
  %4555 = vmatpush1.msra.mxu0 %v4384
  %4556 = vmatprep.subr.mxu0 0.0
  %4557 = vmatpush1.msra.mxu0 %v4385
  %4558 = vmatprep.subr.mxu0 0.0
  %4559 = vmatpush1.msra.mxu0 %v4386
  %4560 = vmatprep.subr.mxu0 0.0
  %4561 = vmatpush1.msra.mxu0 %v4387
  %4562 = vmatprep.subr.mxu0 0.0
  %4563 = vmatpush1.msra.mxu0 %v4388
  %4564 = vmatprep.subr.mxu0 0.0
  %4565 = vmatpush1.msra.mxu0 %v4389
  %4566 = vmatprep.subr.mxu0 0.0
  %4567 = vmatpush1.msra.mxu0 0.0
  %4568 = vmatprep.subr.mxu0 0.0
  %4569 = vmatpush1.msra.mxu0 0.0
  %4570 = vmatprep.subr.mxu0 0.0
  %4571 = vmatpush1.msra.mxu0 0.0
  %4572 = vmatprep.subr.mxu0 0.0
  %4573 = vmatpush1.msra.mxu0 0.0
  %4574 = vmatprep.subr.mxu0 0.0
  %4575 = vmatpush1.msra.mxu0 0.0
  %4576 = vmatprep.subr.mxu0 0.0
  %4577 = vmatpush1.msra.mxu0 0.0
  %4578 = vmatprep.subr.mxu0 0.0
  %4579 = vmatpush1.msra.mxu0 0.0
  %4580 = vmatprep.subr.mxu0 0.0
  %4581 = vmatpush1.msra.mxu0 0.0
  %4582 = vmatprep.subr.mxu0 0.0
  %4583 = vmatpush1.msra.mxu0 0.0
  %4584 = vmatprep.subr.mxu0 0.0
  %4585 = vmatpush1.msra.mxu0 0.0
  %4586 = vmatprep.subr.mxu0 0.0
  %4587 = vmatpush1.msra.mxu0 0.0
  %4588 = vmatprep.subr.mxu0 0.0
  %4589 = vmatpush1.msra.mxu0 0.0
  %4590 = vmatprep.subr.mxu0 0.0
  %4591 = vmatpush1.msra.mxu0 0.0
  %4592 = vmatprep.subr.mxu0 0.0
  %4593 = vmatpush1.msra.mxu0 0.0
  %4594 = vmatprep.subr.mxu0 0.0
  %4595 = vmatpush1.msra.mxu0 0.0
  %4596 = vmatprep.subr.mxu0 0.0
  %4597 = vmatpush1.msra.mxu0 0.0
  %4598 = vmatprep.subr.mxu0 0.0
  %4599 = vmatpush1.msra.mxu0 0.0
  %4600 = vmatprep.subr.mxu0 0.0
  %4601 = vmatpush1.msra.mxu0 0.0
  %4602 = vmatprep.subr.mxu0 0.0
  %4603 = vmatpush1.msra.mxu0 0.0
  %4604 = vmatprep.subr.mxu0 0.0
  %4605 = vmatpush1.msra.mxu0 0.0
  %4606 = vmatprep.subr.mxu0 0.0
  %4607 = vmatpush1.msra.mxu0 0.0
  %4608 = vmatprep.subr.mxu0 0.0
  %4609 = vmatpush1.msra.mxu0 0.0
  %4610 = vmatprep.subr.mxu0 0.0
  %4611 = vmatpush1.msra.mxu0 0.0
  %4612 = vmatprep.subr.mxu0 0.0
  %4613 = vmatpush1.msra.mxu0 0.0
  %4614 = vmatprep.mubr.f32.mxu0 0.0
  %4615 = vmatmul.mubr.f32.gmra.mrb[0].mxu0 %v4548
  %v4616 = vpop.f32.mrb[0].mxu0
  %v4617 = vadd.f32 %v4544, %v4616
  %v4618 = vpop.f32.mrb[0].mxu0
  %4619 = vdwg.mxu0
  %s4620 = scalar_lea.vmem %s9, 4
  %v4621 = vld [vmem:[%s4620] sm:$0x3]
  %v4623 = vsel %vm4308, %v4621, 0
  %4625 = vmatprep.subr.mxu0 0.0
  %4626 = vmatpush1.msra.mxu0 %v4305
  %4627 = vmatprep.subr.mxu0 0.0
  %4628 = vmatpush1.msra.mxu0 %v4306
  %4629 = vmatprep.subr.mxu0 0.0
  %4630 = vmatpush1.msra.mxu0 0.0
  %4631 = vmatprep.subr.mxu0 0.0
  %4632 = vmatpush1.msra.mxu0 0.0
  %4633 = vmatprep.subr.mxu0 0.0
  %4634 = vmatpush1.msra.mxu0 0.0
  %4635 = vmatprep.subr.mxu0 0.0
  %4636 = vmatpush1.msra.mxu0 0.0
  %4637 = vmatprep.subr.mxu0 0.0
  %4638 = vmatpush1.msra.mxu0 0.0
  %4639 = vmatprep.subr.mxu0 0.0
  %4640 = vmatpush1.msra.mxu0 0.0
  %4641 = vmatprep.subr.mxu0 0.0
  %4642 = vmatpush1.msra.mxu0 0.0
  %4643 = vmatprep.subr.mxu0 0.0
  %4644 = vmatpush1.msra.mxu0 0.0
  %4645 = vmatprep.subr.mxu0 0.0
  %4646 = vmatpush1.msra.mxu0 0.0
  %4647 = vmatprep.subr.mxu0 0.0
  %4648 = vmatpush1.msra.mxu0 0.0
  %4649 = vmatprep.subr.mxu0 0.0
  %4650 = vmatpush1.msra.mxu0 0.0
  %4651 = vmatprep.subr.mxu0 0.0
  %4652 = vmatpush1.msra.mxu0 0.0
  %4653 = vmatprep.subr.mxu0 0.0
  %4654 = vmatpush1.msra.mxu0 0.0
  %4655 = vmatprep.subr.mxu0 0.0
  %4656 = vmatpush1.msra.mxu0 0.0
  %4657 = vmatprep.subr.mxu0 0.0
  %4658 = vmatpush1.msra.mxu0 0.0
  %4659 = vmatprep.subr.mxu0 0.0
  %4660 = vmatpush1.msra.mxu0 0.0
  %4661 = vmatprep.subr.mxu0 0.0
  %4662 = vmatpush1.msra.mxu0 0.0
  %4663 = vmatprep.subr.mxu0 0.0
  %4664 = vmatpush1.msra.mxu0 0.0
  %4665 = vmatprep.subr.mxu0 0.0
  %4666 = vmatpush1.msra.mxu0 0.0
  %4667 = vmatprep.subr.mxu0 0.0
  %4668 = vmatpush1.msra.mxu0 0.0
  %4669 = vmatprep.subr.mxu0 0.0
  %4670 = vmatpush1.msra.mxu0 0.0
  %4671 = vmatprep.subr.mxu0 0.0
  %4672 = vmatpush1.msra.mxu0 0.0
  %4673 = vmatprep.subr.mxu0 0.0
  %4674 = vmatpush1.msra.mxu0 0.0
  %4675 = vmatprep.subr.mxu0 0.0
  %4676 = vmatpush1.msra.mxu0 0.0
  %4677 = vmatprep.subr.mxu0 0.0
  %4678 = vmatpush1.msra.mxu0 0.0
  %4679 = vmatprep.subr.mxu0 0.0
  %4680 = vmatpush1.msra.mxu0 0.0
  %4681 = vmatprep.subr.mxu0 0.0
  %4682 = vmatpush1.msra.mxu0 0.0
  %4683 = vmatprep.subr.mxu0 0.0
  %4684 = vmatpush1.msra.mxu0 0.0
  %4685 = vmatprep.subr.mxu0 0.0
  %4686 = vmatpush1.msra.mxu0 0.0
  %4687 = vmatprep.subr.mxu0 0.0
  %4688 = vmatpush1.msra.mxu0 0.0
  %4689 = vmatprep.mubr.f32.mxu0 0.0
  %4690 = vmatmul.mubr.f32.gmra.mrb[0].mxu0 %v4623
  %v4691 = vpop.f32.mrb[0].mxu0
  %v4692 = vadd.f32 0.0, %v4691
  %v4693 = vpop.f32.mrb[0].mxu0
  %4694 = vdwg.mxu0
  %s4695 = scalar_lea.vmem %s10, 128
  %v4696 = vld [vmem:[%s4695] sm:$0xff]
  %v4697 = vld [vmem:[%s4695 + $0x8] sm:$0xff]
  %v4698 = vld [vmem:[%s4695 + $0x10] sm:$0xff]
  %v4699 = vld [vmem:[%s4695 + $0x18] sm:$0xff]
  %v4700 = vld [vmem:[%s4695 + $0x20] sm:$0xff]
  %v4701 = vld [vmem:[%s4695 + $0x28] sm:$0xff]
  %v4702 = vld [vmem:[%s4695 + $0x30] sm:$0xff]
  %v4703 = vld [vmem:[%s4695 + $0x38] sm:$0xff]
  %v4705 = vsel %vm689, %v4692, 0
  %4707 = vmatprep.subr.mxu0 0.0
  %4708 = vmatpush1.msra.mxu0 %v4696
  %4709 = vmatprep.subr.mxu0 0.0
  %4710 = vmatpush1.msra.mxu0 %v4697
  %4711 = vmatprep.subr.mxu0 0.0
  %4712 = vmatpush1.msra.mxu0 %v4698
  %4713 = vmatprep.subr.mxu0 0.0
  %4714 = vmatpush1.msra.mxu0 %v4699
  %4715 = vmatprep.subr.mxu0 0.0
  %4716 = vmatpush1.msra.mxu0 %v4700
  %4717 = vmatprep.subr.mxu0 0.0
  %4718 = vmatpush1.msra.mxu0 %v4701
  %4719 = vmatprep.subr.mxu0 0.0
  %4720 = vmatpush1.msra.mxu0 %v4702
  %4721 = vmatprep.subr.mxu0 0.0
  %4722 = vmatpush1.msra.mxu0 %v4703
  %4723 = vmatprep.subr.mxu0 0.0
  %4724 = vmatpush1.msra.mxu0 0.0
  %4725 = vmatprep.subr.mxu0 0.0
  %4726 = vmatpush1.msra.mxu0 0.0
  %4727 = vmatprep.subr.mxu0 0.0
  %4728 = vmatpush1.msra.mxu0 0.0
  %4729 = vmatprep.subr.mxu0 0.0
  %4730 = vmatpush1.msra.mxu0 0.0
  %4731 = vmatprep.subr.mxu0 0.0
  %4732 = vmatpush1.msra.mxu0 0.0
  %4733 = vmatprep.subr.mxu0 0.0
  %4734 = vmatpush1.msra.mxu0 0.0
  %4735 = vmatprep.subr.mxu0 0.0
  %4736 = vmatpush1.msra.mxu0 0.0
  %4737 = vmatprep.subr.mxu0 0.0
  %4738 = vmatpush1.msra.mxu0 0.0
  %4739 = vmatprep.subr.mxu0 0.0
  %4740 = vmatpush1.msra.mxu0 0.0
  %4741 = vmatprep.subr.mxu0 0.0
  %4742 = vmatpush1.msra.mxu0 0.0
  %4743 = vmatprep.subr.mxu0 0.0
  %4744 = vmatpush1.msra.mxu0 0.0
  %4745 = vmatprep.subr.mxu0 0.0
  %4746 = vmatpush1.msra.mxu0 0.0
  %4747 = vmatprep.subr.mxu0 0.0
  %4748 = vmatpush1.msra.mxu0 0.0
  %4749 = vmatprep.subr.mxu0 0.0
  %4750 = vmatpush1.msra.mxu0 0.0
  %4751 = vmatprep.subr.mxu0 0.0
  %4752 = vmatpush1.msra.mxu0 0.0
  %4753 = vmatprep.subr.mxu0 0.0
  %4754 = vmatpush1.msra.mxu0 0.0
  %4755 = vmatprep.subr.mxu0 0.0
  %4756 = vmatpush1.msra.mxu0 0.0
  %4757 = vmatprep.subr.mxu0 0.0
  %4758 = vmatpush1.msra.mxu0 0.0
  %4759 = vmatprep.subr.mxu0 0.0
  %4760 = vmatpush1.msra.mxu0 0.0
  %4761 = vmatprep.subr.mxu0 0.0
  %4762 = vmatpush1.msra.mxu0 0.0
  %4763 = vmatprep.subr.mxu0 0.0
  %4764 = vmatpush1.msra.mxu0 0.0
  %4765 = vmatprep.subr.mxu0 0.0
  %4766 = vmatpush1.msra.mxu0 0.0
  %4767 = vmatprep.subr.mxu0 0.0
  %4768 = vmatpush1.msra.mxu0 0.0
  %4769 = vmatprep.subr.mxu0 0.0
  %4770 = vmatpush1.msra.mxu0 0.0
  %4771 = vmatprep.mubr.f32.mxu0 0.0
  %4772 = vmatmul.mubr.f32.gmra.mrb[0].mxu0 %v4705
  %v4773 = vpop.f32.mrb[0].mxu0
  %v4774 = vadd.f32 0.0, %v4773
  %v4775 = vpop.f32.mrb[0].mxu0
  %4776 = vdwg.mxu0
  %v4777 = vadd.f32 %v4617, %v4774
  %s4778 = scalar_lea.vmem %s9, 6
  %v4779 = vld [vmem:[%s4778] sm:$0x3]
  %v4781 = vsel %vm4308, %v4779, 0
  %4783 = vmatprep.subr.mxu0 0.0
  %4784 = vmatpush1.msra.mxu0 %v4305
  %4785 = vmatprep.subr.mxu0 0.0
  %4786 = vmatpush1.msra.mxu0 %v4306
  %4787 = vmatprep.subr.mxu0 0.0
  %4788 = vmatpush1.msra.mxu0 0.0
  %4789 = vmatprep.subr.mxu0 0.0
  %4790 = vmatpush1.msra.mxu0 0.0
  %4791 = vmatprep.subr.mxu0 0.0
  %4792 = vmatpush1.msra.mxu0 0.0
  %4793 = vmatprep.subr.mxu0 0.0
  %4794 = vmatpush1.msra.mxu0 0.0
  %4795 = vmatprep.subr.mxu0 0.0
  %4796 = vmatpush1.msra.mxu0 0.0
  %4797 = vmatprep.subr.mxu0 0.0
  %4798 = vmatpush1.msra.mxu0 0.0
  %4799 = vmatprep.subr.mxu0 0.0
  %4800 = vmatpush1.msra.mxu0 0.0
  %4801 = vmatprep.subr.mxu0 0.0
  %4802 = vmatpush1.msra.mxu0 0.0
  %4803 = vmatprep.subr.mxu0 0.0
  %4804 = vmatpush1.msra.mxu0 0.0
  %4805 = vmatprep.subr.mxu0 0.0
  %4806 = vmatpush1.msra.mxu0 0.0
  %4807 = vmatprep.subr.mxu0 0.0
  %4808 = vmatpush1.msra.mxu0 0.0
  %4809 = vmatprep.subr.mxu0 0.0
  %4810 = vmatpush1.msra.mxu0 0.0
  %4811 = vmatprep.subr.mxu0 0.0
  %4812 = vmatpush1.msra.mxu0 0.0
  %4813 = vmatprep.subr.mxu0 0.0
  %4814 = vmatpush1.msra.mxu0 0.0
  %4815 = vmatprep.subr.mxu0 0.0
  %4816 = vmatpush1.msra.mxu0 0.0
  %4817 = vmatprep.subr.mxu0 0.0
  %4818 = vmatpush1.msra.mxu0 0.0
  %4819 = vmatprep.subr.mxu0 0.0
  %4820 = vmatpush1.msra.mxu0 0.0
  %4821 = vmatprep.subr.mxu0 0.0
  %4822 = vmatpush1.msra.mxu0 0.0
  %4823 = vmatprep.subr.mxu0 0.0
  %4824 = vmatpush1.msra.mxu0 0.0
  %4825 = vmatprep.subr.mxu0 0.0
  %4826 = vmatpush1.msra.mxu0 0.0
  %4827 = vmatprep.subr.mxu0 0.0
  %4828 = vmatpush1.msra.mxu0 0.0
  %4829 = vmatprep.subr.mxu0 0.0
  %4830 = vmatpush1.msra.mxu0 0.0
  %4831 = vmatprep.subr.mxu0 0.0
  %4832 = vmatpush1.msra.mxu0 0.0
  %4833 = vmatprep.subr.mxu0 0.0
  %4834 = vmatpush1.msra.mxu0 0.0
  %4835 = vmatprep.subr.mxu0 0.0
  %4836 = vmatpush1.msra.mxu0 0.0
  %4837 = vmatprep.subr.mxu0 0.0
  %4838 = vmatpush1.msra.mxu0 0.0
  %4839 = vmatprep.subr.mxu0 0.0
  %4840 = vmatpush1.msra.mxu0 0.0
  %4841 = vmatprep.subr.mxu0 0.0
  %4842 = vmatpush1.msra.mxu0 0.0
  %4843 = vmatprep.subr.mxu0 0.0
  %4844 = vmatpush1.msra.mxu0 0.0
  %4845 = vmatprep.subr.mxu0 0.0
  %4846 = vmatpush1.msra.mxu0 0.0
  %4847 = vmatprep.mubr.f32.mxu0 0.0
  %4848 = vmatmul.mubr.f32.gmra.mrb[0].mxu0 %v4781
  %v4849 = vpop.f32.mrb[0].mxu0
  %v4850 = vadd.f32 0.0, %v4849
  %v4851 = vpop.f32.mrb[0].mxu0
  %4852 = vdwg.mxu0
  %s4853 = scalar_lea.vmem %s10, 192
  %v4854 = vld [vmem:[%s4853] sm:$0xff]
  %v4855 = vld [vmem:[%s4853 + $0x8] sm:$0xff]
  %v4856 = vld [vmem:[%s4853 + $0x10] sm:$0xff]
  %v4857 = vld [vmem:[%s4853 + $0x18] sm:$0xff]
  %v4858 = vld [vmem:[%s4853 + $0x20] sm:$0xff]
  %v4859 = vld [vmem:[%s4853 + $0x28] sm:$0xff]
  %v4860 = vld [vmem:[%s4853 + $0x30] sm:$0xff]
  %v4861 = vld [vmem:[%s4853 + $0x38] sm:$0xff]
  %v4863 = vsel %vm689, %v4850, 0
  %4865 = vmatprep.subr.mxu0 0.0
  %4866 = vmatpush1.msra.mxu0 %v4854
  %4867 = vmatprep.subr.mxu0 0.0
  %4868 = vmatpush1.msra.mxu0 %v4855
  %4869 = vmatprep.subr.mxu0 0.0
  %4870 = vmatpush1.msra.mxu0 %v4856
  %4871 = vmatprep.subr.mxu0 0.0
  %4872 = vmatpush1.msra.mxu0 %v4857
  %4873 = vmatprep.subr.mxu0 0.0
  %4874 = vmatpush1.msra.mxu0 %v4858
  %4875 = vmatprep.subr.mxu0 0.0
  %4876 = vmatpush1.msra.mxu0 %v4859
  %4877 = vmatprep.subr.mxu0 0.0
  %4878 = vmatpush1.msra.mxu0 %v4860
  %4879 = vmatprep.subr.mxu0 0.0
  %4880 = vmatpush1.msra.mxu0 %v4861
  %4881 = vmatprep.subr.mxu0 0.0
  %4882 = vmatpush1.msra.mxu0 0.0
  %4883 = vmatprep.subr.mxu0 0.0
  %4884 = vmatpush1.msra.mxu0 0.0
  %4885 = vmatprep.subr.mxu0 0.0
  %4886 = vmatpush1.msra.mxu0 0.0
  %4887 = vmatprep.subr.mxu0 0.0
  %4888 = vmatpush1.msra.mxu0 0.0
  %4889 = vmatprep.subr.mxu0 0.0
  %4890 = vmatpush1.msra.mxu0 0.0
  %4891 = vmatprep.subr.mxu0 0.0
  %4892 = vmatpush1.msra.mxu0 0.0
  %4893 = vmatprep.subr.mxu0 0.0
  %4894 = vmatpush1.msra.mxu0 0.0
  %4895 = vmatprep.subr.mxu0 0.0
  %4896 = vmatpush1.msra.mxu0 0.0
  %4897 = vmatprep.subr.mxu0 0.0
  %4898 = vmatpush1.msra.mxu0 0.0
  %4899 = vmatprep.subr.mxu0 0.0
  %4900 = vmatpush1.msra.mxu0 0.0
  %4901 = vmatprep.subr.mxu0 0.0
  %4902 = vmatpush1.msra.mxu0 0.0
  %4903 = vmatprep.subr.mxu0 0.0
  %4904 = vmatpush1.msra.mxu0 0.0
  %4905 = vmatprep.subr.mxu0 0.0
  %4906 = vmatpush1.msra.mxu0 0.0
  %4907 = vmatprep.subr.mxu0 0.0
  %4908 = vmatpush1.msra.mxu0 0.0
  %4909 = vmatprep.subr.mxu0 0.0
  %4910 = vmatpush1.msra.mxu0 0.0
  %4911 = vmatprep.subr.mxu0 0.0
  %4912 = vmatpush1.msra.mxu0 0.0
  %4913 = vmatprep.subr.mxu0 0.0
  %4914 = vmatpush1.msra.mxu0 0.0
  %4915 = vmatprep.subr.mxu0 0.0
  %4916 = vmatpush1.msra.mxu0 0.0
  %4917 = vmatprep.subr.mxu0 0.0
  %4918 = vmatpush1.msra.mxu0 0.0
  %4919 = vmatprep.subr.mxu0 0.0
  %4920 = vmatpush1.msra.mxu0 0.0
  %4921 = vmatprep.subr.mxu0 0.0
  %4922 = vmatpush1.msra.mxu0 0.0
  %4923 = vmatprep.subr.mxu0 0.0
  %4924 = vmatpush1.msra.mxu0 0.0
  %4925 = vmatprep.subr.mxu0 0.0
  %4926 = vmatpush1.msra.mxu0 0.0
  %4927 = vmatprep.subr.mxu0 0.0
  %4928 = vmatpush1.msra.mxu0 0.0
  %4929 = vmatprep.mubr.f32.mxu0 0.0
  %4930 = vmatmul.mubr.f32.gmra.mrb[0].mxu0 %v4863
  %v4931 = vpop.f32.mrb[0].mxu0
  %v4932 = vadd.f32 0.0, %v4931
  %v4933 = vpop.f32.mrb[0].mxu0
  %4934 = vdwg.mxu0
  %v4935 = vadd.f32 %v4777, %v4932
  %s4936 = scalar_lea.vmem %s9, 8
  %v4937 = vld [vmem:[%s4936] sm:$0x3]
  %v4939 = vsel %vm4308, %v4937, 0
  %4941 = vmatprep.subr.mxu0 0.0
  %4942 = vmatpush1.msra.mxu0 %v4305
  %4943 = vmatprep.subr.mxu0 0.0
  %4944 = vmatpush1.msra.mxu0 %v4306
  %4945 = vmatprep.subr.mxu0 0.0
  %4946 = vmatpush1.msra.mxu0 0.0
  %4947 = vmatprep.subr.mxu0 0.0
  %4948 = vmatpush1.msra.mxu0 0.0
  %4949 = vmatprep.subr.mxu0 0.0
  %4950 = vmatpush1.msra.mxu0 0.0
  %4951 = vmatprep.subr.mxu0 0.0
  %4952 = vmatpush1.msra.mxu0 0.0
  %4953 = vmatprep.subr.mxu0 0.0
  %4954 = vmatpush1.msra.mxu0 0.0
  %4955 = vmatprep.subr.mxu0 0.0
  %4956 = vmatpush1.msra.mxu0 0.0
  %4957 = vmatprep.subr.mxu0 0.0
  %4958 = vmatpush1.msra.mxu0 0.0
  %4959 = vmatprep.subr.mxu0 0.0
  %4960 = vmatpush1.msra.mxu0 0.0
  %4961 = vmatprep.subr.mxu0 0.0
  %4962 = vmatpush1.msra.mxu0 0.0
  %4963 = vmatprep.subr.mxu0 0.0
  %4964 = vmatpush1.msra.mxu0 0.0
  %4965 = vmatprep.subr.mxu0 0.0
  %4966 = vmatpush1.msra.mxu0 0.0
  %4967 = vmatprep.subr.mxu0 0.0
  %4968 = vmatpush1.msra.mxu0 0.0
  %4969 = vmatprep.subr.mxu0 0.0
  %4970 = vmatpush1.msra.mxu0 0.0
  %4971 = vmatprep.subr.mxu0 0.0
  %4972 = vmatpush1.msra.mxu0 0.0
  %4973 = vmatprep.subr.mxu0 0.0
  %4974 = vmatpush1.msra.mxu0 0.0
  %4975 = vmatprep.subr.mxu0 0.0
  %4976 = vmatpush1.msra.mxu0 0.0
  %4977 = vmatprep.subr.mxu0 0.0
  %4978 = vmatpush1.msra.mxu0 0.0
  %4979 = vmatprep.subr.mxu0 0.0
  %4980 = vmatpush1.msra.mxu0 0.0
  %4981 = vmatprep.subr.mxu0 0.0
  %4982 = vmatpush1.msra.mxu0 0.0
  %4983 = vmatprep.subr.mxu0 0.0
  %4984 = vmatpush1.msra.mxu0 0.0
  %4985 = vmatprep.subr.mxu0 0.0
  %4986 = vmatpush1.msra.mxu0 0.0
  %4987 = vmatprep.subr.mxu0 0.0
  %4988 = vmatpush1.msra.mxu0 0.0
  %4989 = vmatprep.subr.mxu0 0.0
  %4990 = vmatpush1.msra.mxu0 0.0
  %4991 = vmatprep.subr.mxu0 0.0
  %4992 = vmatpush1.msra.mxu0 0.0
  %4993 = vmatprep.subr.mxu0 0.0
  %4994 = vmatpush1.msra.mxu0 0.0
  %4995 = vmatprep.subr.mxu0 0.0
  %4996 = vmatpush1.msra.mxu0 0.0
  %4997 = vmatprep.subr.mxu0 0.0
  %4998 = vmatpush1.msra.mxu0 0.0
  %4999 = vmatprep.subr.mxu0 0.0
  %5000 = vmatpush1.msra.mxu0 0.0
  %5001 = vmatprep.subr.mxu0 0.0
  %5002 = vmatpush1.msra.mxu0 0.0
  %5003 = vmatprep.subr.mxu0 0.0
  %5004 = vmatpush1.msra.mxu0 0.0
  %5005 = vmatprep.mubr.f32.mxu0 0.0
  %5006 = vmatmul.mubr.f32.gmra.mrb[0].mxu0 %v4939
  %v5007 = vpop.f32.mrb[0].mxu0
  %v5008 = vadd.f32 0.0, %v5007
  %v5009 = vpop.f32.mrb[0].mxu0
  %5010 = vdwg.mxu0
  %s5011 = scalar_lea.vmem %s10, 256
  %v5012 = vld [vmem:[%s5011] sm:$0xff]
  %v5013 = vld [vmem:[%s5011 + $0x8] sm:$0xff]
  %v5014 = vld [vmem:[%s5011 + $0x10] sm:$0xff]
  %v5015 = vld [vmem:[%s5011 + $0x18] sm:$0xff]
  %v5016 = vld [vmem:[%s5011 + $0x20] sm:$0xff]
  %v5017 = vld [vmem:[%s5011 + $0x28] sm:$0xff]
  %v5018 = vld [vmem:[%s5011 + $0x30] sm:$0xff]
  %v5019 = vld [vmem:[%s5011 + $0x38] sm:$0xff]
  %v5021 = vsel %vm689, %v5008, 0
  %5023 = vmatprep.subr.mxu0 0.0
  %5024 = vmatpush1.msra.mxu0 %v5012
  %5025 = vmatprep.subr.mxu0 0.0
  %5026 = vmatpush1.msra.mxu0 %v5013
  %5027 = vmatprep.subr.mxu0 0.0
  %5028 = vmatpush1.msra.mxu0 %v5014
  %5029 = vmatprep.subr.mxu0 0.0
  %5030 = vmatpush1.msra.mxu0 %v5015
  %5031 = vmatprep.subr.mxu0 0.0
  %5032 = vmatpush1.msra.mxu0 %v5016
  %5033 = vmatprep.subr.mxu0 0.0
  %5034 = vmatpush1.msra.mxu0 %v5017
  %5035 = vmatprep.subr.mxu0 0.0
  %5036 = vmatpush1.msra.mxu0 %v5018
  %5037 = vmatprep.subr.mxu0 0.0
  %5038 = vmatpush1.msra.mxu0 %v5019
  %5039 = vmatprep.subr.mxu0 0.0
  %5040 = vmatpush1.msra.mxu0 0.0
  %5041 = vmatprep.subr.mxu0 0.0
  %5042 = vmatpush1.msra.mxu0 0.0
  %5043 = vmatprep.subr.mxu0 0.0
  %5044 = vmatpush1.msra.mxu0 0.0
  %5045 = vmatprep.subr.mxu0 0.0
  %5046 = vmatpush1.msra.mxu0 0.0
  %5047 = vmatprep.subr.mxu0 0.0
  %5048 = vmatpush1.msra.mxu0 0.0
  %5049 = vmatprep.subr.mxu0 0.0
  %5050 = vmatpush1.msra.mxu0 0.0
  %5051 = vmatprep.subr.mxu0 0.0
  %5052 = vmatpush1.msra.mxu0 0.0
  %5053 = vmatprep.subr.mxu0 0.0
  %5054 = vmatpush1.msra.mxu0 0.0
  %5055 = vmatprep.subr.mxu0 0.0
  %5056 = vmatpush1.msra.mxu0 0.0
  %5057 = vmatprep.subr.mxu0 0.0
  %5058 = vmatpush1.msra.mxu0 0.0
  %5059 = vmatprep.subr.mxu0 0.0
  %5060 = vmatpush1.msra.mxu0 0.0
  %5061 = vmatprep.subr.mxu0 0.0
  %5062 = vmatpush1.msra.mxu0 0.0
  %5063 = vmatprep.subr.mxu0 0.0
  %5064 = vmatpush1.msra.mxu0 0.0
  %5065 = vmatprep.subr.mxu0 0.0
  %5066 = vmatpush1.msra.mxu0 0.0
  %5067 = vmatprep.subr.mxu0 0.0
  %5068 = vmatpush1.msra.mxu0 0.0
  %5069 = vmatprep.subr.mxu0 0.0
  %5070 = vmatpush1.msra.mxu0 0.0
  %5071 = vmatprep.subr.mxu0 0.0
  %5072 = vmatpush1.msra.mxu0 0.0
  %5073 = vmatprep.subr.mxu0 0.0
  %5074 = vmatpush1.msra.mxu0 0.0
  %5075 = vmatprep.subr.mxu0 0.0
  %5076 = vmatpush1.msra.mxu0 0.0
  %5077 = vmatprep.subr.mxu0 0.0
  %5078 = vmatpush1.msra.mxu0 0.0
  %5079 = vmatprep.subr.mxu0 0.0
  %5080 = vmatpush1.msra.mxu0 0.0
  %5081 = vmatprep.subr.mxu0 0.0
  %5082 = vmatpush1.msra.mxu0 0.0
  %5083 = vmatprep.subr.mxu0 0.0
  %5084 = vmatpush1.msra.mxu0 0.0
  %5085 = vmatprep.subr.mxu0 0.0
  %5086 = vmatpush1.msra.mxu0 0.0
  %5087 = vmatprep.mubr.f32.mxu0 0.0
  %5088 = vmatmul.mubr.f32.gmra.mrb[0].mxu0 %v5021
  %v5089 = vpop.f32.mrb[0].mxu0
  %v5090 = vadd.f32 0.0, %v5089
  %v5091 = vpop.f32.mrb[0].mxu0
  %5092 = vdwg.mxu0
  %v5093 = vadd.f32 %v4935, %v5090
  %s5094 = scalar_lea.vmem %s9, 10
  %v5095 = vld [vmem:[%s5094] sm:$0x3]
  %v5097 = vsel %vm4308, %v5095, 0
  %5099 = vmatprep.subr.mxu0 0.0
  %5100 = vmatpush1.msra.mxu0 %v4305
  %5101 = vmatprep.subr.mxu0 0.0
  %5102 = vmatpush1.msra.mxu0 %v4306
  %5103 = vmatprep.subr.mxu0 0.0
  %5104 = vmatpush1.msra.mxu0 0.0
  %5105 = vmatprep.subr.mxu0 0.0
  %5106 = vmatpush1.msra.mxu0 0.0
  %5107 = vmatprep.subr.mxu0 0.0
  %5108 = vmatpush1.msra.mxu0 0.0
  %5109 = vmatprep.subr.mxu0 0.0
  %5110 = vmatpush1.msra.mxu0 0.0
  %5111 = vmatprep.subr.mxu0 0.0
  %5112 = vmatpush1.msra.mxu0 0.0
  %5113 = vmatprep.subr.mxu0 0.0
  %5114 = vmatpush1.msra.mxu0 0.0
  %5115 = vmatprep.subr.mxu0 0.0
  %5116 = vmatpush1.msra.mxu0 0.0
  %5117 = vmatprep.subr.mxu0 0.0
  %5118 = vmatpush1.msra.mxu0 0.0
  %5119 = vmatprep.subr.mxu0 0.0
  %5120 = vmatpush1.msra.mxu0 0.0
  %5121 = vmatprep.subr.mxu0 0.0
  %5122 = vmatpush1.msra.mxu0 0.0
  %5123 = vmatprep.subr.mxu0 0.0
  %5124 = vmatpush1.msra.mxu0 0.0
  %5125 = vmatprep.subr.mxu0 0.0
  %5126 = vmatpush1.msra.mxu0 0.0
  %5127 = vmatprep.subr.mxu0 0.0
  %5128 = vmatpush1.msra.mxu0 0.0
  %5129 = vmatprep.subr.mxu0 0.0
  %5130 = vmatpush1.msra.mxu0 0.0
  %5131 = vmatprep.subr.mxu0 0.0
  %5132 = vmatpush1.msra.mxu0 0.0
  %5133 = vmatprep.subr.mxu0 0.0
  %5134 = vmatpush1.msra.mxu0 0.0
  %5135 = vmatprep.subr.mxu0 0.0
  %5136 = vmatpush1.msra.mxu0 0.0
  %5137 = vmatprep.subr.mxu0 0.0
  %5138 = vmatpush1.msra.mxu0 0.0
  %5139 = vmatprep.subr.mxu0 0.0
  %5140 = vmatpush1.msra.mxu0 0.0
  %5141 = vmatprep.subr.mxu0 0.0
  %5142 = vmatpush1.msra.mxu0 0.0
  %5143 = vmatprep.subr.mxu0 0.0
  %5144 = vmatpush1.msra.mxu0 0.0
  %5145 = vmatprep.subr.mxu0 0.0
  %5146 = vmatpush1.msra.mxu0 0.0
  %5147 = vmatprep.subr.mxu0 0.0
  %5148 = vmatpush1.msra.mxu0 0.0
  %5149 = vmatprep.subr.mxu0 0.0
  %5150 = vmatpush1.msra.mxu0 0.0
  %5151 = vmatprep.subr.mxu0 0.0
  %5152 = vmatpush1.msra.mxu0 0.0
  %5153 = vmatprep.subr.mxu0 0.0
  %5154 = vmatpush1.msra.mxu0 0.0
  %5155 = vmatprep.subr.mxu0 0.0
  %5156 = vmatpush1.msra.mxu0 0.0
  %5157 = vmatprep.subr.mxu0 0.0
  %5158 = vmatpush1.msra.mxu0 0.0
  %5159 = vmatprep.subr.mxu0 0.0
  %5160 = vmatpush1.msra.mxu0 0.0
  %5161 = vmatprep.subr.mxu0 0.0
  %5162 = vmatpush1.msra.mxu0 0.0
  %5163 = vmatprep.mubr.f32.mxu0 0.0
  %5164 = vmatmul.mubr.f32.gmra.mrb[0].mxu0 %v5097
  %v5165 = vpop.f32.mrb[0].mxu0
  %v5166 = vadd.f32 0.0, %v5165
  %v5167 = vpop.f32.mrb[0].mxu0
  %5168 = vdwg.mxu0
  %s5169 = scalar_lea.vmem %s10, 320
  %v5170 = vld [vmem:[%s5169] sm:$0xff]
  %v5171 = vld [vmem:[%s5169 + $0x8] sm:$0xff]
  %v5172 = vld [vmem:[%s5169 + $0x10] sm:$0xff]
  %v5173 = vld [vmem:[%s5169 + $0x18] sm:$0xff]
  %v5174 = vld [vmem:[%s5169 + $0x20] sm:$0xff]
  %v5175 = vld [vmem:[%s5169 + $0x28] sm:$0xff]
  %v5176 = vld [vmem:[%s5169 + $0x30] sm:$0xff]
  %v5177 = vld [vmem:[%s5169 + $0x38] sm:$0xff]
  %v5179 = vsel %vm689, %v5166, 0
  %5181 = vmatprep.subr.mxu0 0.0
  %5182 = vmatpush1.msra.mxu0 %v5170
  %5183 = vmatprep.subr.mxu0 0.0
  %5184 = vmatpush1.msra.mxu0 %v5171
  %5185 = vmatprep.subr.mxu0 0.0
  %5186 = vmatpush1.msra.mxu0 %v5172
  %5187 = vmatprep.subr.mxu0 0.0
  %5188 = vmatpush1.msra.mxu0 %v5173
  %5189 = vmatprep.subr.mxu0 0.0
  %5190 = vmatpush1.msra.mxu0 %v5174
  %5191 = vmatprep.subr.mxu0 0.0
  %5192 = vmatpush1.msra.mxu0 %v5175
  %5193 = vmatprep.subr.mxu0 0.0
  %5194 = vmatpush1.msra.mxu0 %v5176
  %5195 = vmatprep.subr.mxu0 0.0
  %5196 = vmatpush1.msra.mxu0 %v5177
  %5197 = vmatprep.subr.mxu0 0.0
  %5198 = vmatpush1.msra.mxu0 0.0
  %5199 = vmatprep.subr.mxu0 0.0
  %5200 = vmatpush1.msra.mxu0 0.0
  %5201 = vmatprep.subr.mxu0 0.0
  %5202 = vmatpush1.msra.mxu0 0.0
  %5203 = vmatprep.subr.mxu0 0.0
  %5204 = vmatpush1.msra.mxu0 0.0
  %5205 = vmatprep.subr.mxu0 0.0
  %5206 = vmatpush1.msra.mxu0 0.0
  %5207 = vmatprep.subr.mxu0 0.0
  %5208 = vmatpush1.msra.mxu0 0.0
  %5209 = vmatprep.subr.mxu0 0.0
  %5210 = vmatpush1.msra.mxu0 0.0
  %5211 = vmatprep.subr.mxu0 0.0
  %5212 = vmatpush1.msra.mxu0 0.0
  %5213 = vmatprep.subr.mxu0 0.0
  %5214 = vmatpush1.msra.mxu0 0.0
  %5215 = vmatprep.subr.mxu0 0.0
  %5216 = vmatpush1.msra.mxu0 0.0
  %5217 = vmatprep.subr.mxu0 0.0
  %5218 = vmatpush1.msra.mxu0 0.0
  %5219 = vmatprep.subr.mxu0 0.0
  %5220 = vmatpush1.msra.mxu0 0.0
  %5221 = vmatprep.subr.mxu0 0.0
  %5222 = vmatpush1.msra.mxu0 0.0
  %5223 = vmatprep.subr.mxu0 0.0
  %5224 = vmatpush1.msra.mxu0 0.0
  %5225 = vmatprep.subr.mxu0 0.0
  %5226 = vmatpush1.msra.mxu0 0.0
  %5227 = vmatprep.subr.mxu0 0.0
  %5228 = vmatpush1.msra.mxu0 0.0
  %5229 = vmatprep.subr.mxu0 0.0
  %5230 = vmatpush1.msra.mxu0 0.0
  %5231 = vmatprep.subr.mxu0 0.0
  %5232 = vmatpush1.msra.mxu0 0.0
  %5233 = vmatprep.subr.mxu0 0.0
  %5234 = vmatpush1.msra.mxu0 0.0
  %5235 = vmatprep.subr.mxu0 0.0
  %5236 = vmatpush1.msra.mxu0 0.0
  %5237 = vmatprep.subr.mxu0 0.0
  %5238 = vmatpush1.msra.mxu0 0.0
  %5239 = vmatprep.subr.mxu0 0.0
  %5240 = vmatpush1.msra.mxu0 0.0
  %5241 = vmatprep.subr.mxu0 0.0
  %5242 = vmatpush1.msra.mxu0 0.0
  %5243 = vmatprep.subr.mxu0 0.0
  %5244 = vmatpush1.msra.mxu0 0.0
  %5245 = vmatprep.mubr.f32.mxu0 0.0
  %5246 = vmatmul.mubr.f32.gmra.mrb[0].mxu0 %v5179
  %v5247 = vpop.f32.mrb[0].mxu0
  %v5248 = vadd.f32 0.0, %v5247
  %v5249 = vpop.f32.mrb[0].mxu0
  %5250 = vdwg.mxu0
  %v5251 = vadd.f32 %v5093, %v5248
  %s5252 = scalar_lea.vmem %s9, 12
  %v5253 = vld [vmem:[%s5252] sm:$0x3]
  %v5255 = vsel %vm4308, %v5253, 0
  %5257 = vmatprep.subr.mxu0 0.0
  %5258 = vmatpush1.msra.mxu0 %v4305
  %5259 = vmatprep.subr.mxu0 0.0
  %5260 = vmatpush1.msra.mxu0 %v4306
  %5261 = vmatprep.subr.mxu0 0.0
  %5262 = vmatpush1.msra.mxu0 0.0
  %5263 = vmatprep.subr.mxu0 0.0
  %5264 = vmatpush1.msra.mxu0 0.0
  %5265 = vmatprep.subr.mxu0 0.0
  %5266 = vmatpush1.msra.mxu0 0.0
  %5267 = vmatprep.subr.mxu0 0.0
  %5268 = vmatpush1.msra.mxu0 0.0
  %5269 = vmatprep.subr.mxu0 0.0
  %5270 = vmatpush1.msra.mxu0 0.0
  %5271 = vmatprep.subr.mxu0 0.0
  %5272 = vmatpush1.msra.mxu0 0.0
  %5273 = vmatprep.subr.mxu0 0.0
  %5274 = vmatpush1.msra.mxu0 0.0
  %5275 = vmatprep.subr.mxu0 0.0
  %5276 = vmatpush1.msra.mxu0 0.0
  %5277 = vmatprep.subr.mxu0 0.0
  %5278 = vmatpush1.msra.mxu0 0.0
  %5279 = vmatprep.subr.mxu0 0.0
  %5280 = vmatpush1.msra.mxu0 0.0
  %5281 = vmatprep.subr.mxu0 0.0
  %5282 = vmatpush1.msra.mxu0 0.0
  %5283 = vmatprep.subr.mxu0 0.0
  %5284 = vmatpush1.msra.mxu0 0.0
  %5285 = vmatprep.subr.mxu0 0.0
  %5286 = vmatpush1.msra.mxu0 0.0
  %5287 = vmatprep.subr.mxu0 0.0
  %5288 = vmatpush1.msra.mxu0 0.0
  %5289 = vmatprep.subr.mxu0 0.0
  %5290 = vmatpush1.msra.mxu0 0.0
  %5291 = vmatprep.subr.mxu0 0.0
  %5292 = vmatpush1.msra.mxu0 0.0
  %5293 = vmatprep.subr.mxu0 0.0
  %5294 = vmatpush1.msra.mxu0 0.0
  %5295 = vmatprep.subr.mxu0 0.0
  %5296 = vmatpush1.msra.mxu0 0.0
  %5297 = vmatprep.subr.mxu0 0.0
  %5298 = vmatpush1.msra.mxu0 0.0
  %5299 = vmatprep.subr.mxu0 0.0
  %5300 = vmatpush1.msra.mxu0 0.0
  %5301 = vmatprep.subr.mxu0 0.0
  %5302 = vmatpush1.msra.mxu0 0.0
  %5303 = vmatprep.subr.mxu0 0.0
  %5304 = vmatpush1.msra.mxu0 0.0
  %5305 = vmatprep.subr.mxu0 0.0
  %5306 = vmatpush1.msra.mxu0 0.0
  %5307 = vmatprep.subr.mxu0 0.0
  %5308 = vmatpush1.msra.mxu0 0.0
  %5309 = vmatprep.subr.mxu0 0.0
  %5310 = vmatpush1.msra.mxu0 0.0
  %5311 = vmatprep.subr.mxu0 0.0
  %5312 = vmatpush1.msra.mxu0 0.0
  %5313 = vmatprep.subr.mxu0 0.0
  %5314 = vmatpush1.msra.mxu0 0.0
  %5315 = vmatprep.subr.mxu0 0.0
  %5316 = vmatpush1.msra.mxu0 0.0
  %5317 = vmatprep.subr.mxu0 0.0
  %5318 = vmatpush1.msra.mxu0 0.0
  %5319 = vmatprep.subr.mxu0 0.0
  %5320 = vmatpush1.msra.mxu0 0.0
  %5321 = vmatprep.mubr.f32.mxu0 0.0
  %5322 = vmatmul.mubr.f32.gmra.mrb[0].mxu0 %v5255
  %v5323 = vpop.f32.mrb[0].mxu0
  %v5324 = vadd.f32 0.0, %v5323
  %v5325 = vpop.f32.mrb[0].mxu0
  %5326 = vdwg.mxu0
  %s5327 = scalar_lea.vmem %s10, 384
  %v5328 = vld [vmem:[%s5327] sm:$0xff]
  %v5329 = vld [vmem:[%s5327 + $0x8] sm:$0xff]
  %v5330 = vld [vmem:[%s5327 + $0x10] sm:$0xff]
  %v5331 = vld [vmem:[%s5327 + $0x18] sm:$0xff]
  %v5332 = vld [vmem:[%s5327 + $0x20] sm:$0xff]
  %v5333 = vld [vmem:[%s5327 + $0x28] sm:$0xff]
  %v5334 = vld [vmem:[%s5327 + $0x30] sm:$0xff]
  %v5335 = vld [vmem:[%s5327 + $0x38] sm:$0xff]
  %v5337 = vsel %vm689, %v5324, 0
  %5339 = vmatprep.subr.mxu0 0.0
  %5340 = vmatpush1.msra.mxu0 %v5328
  %5341 = vmatprep.subr.mxu0 0.0
  %5342 = vmatpush1.msra.mxu0 %v5329
  %5343 = vmatprep.subr.mxu0 0.0
  %5344 = vmatpush1.msra.mxu0 %v5330
  %5345 = vmatprep.subr.mxu0 0.0
  %5346 = vmatpush1.msra.mxu0 %v5331
  %5347 = vmatprep.subr.mxu0 0.0
  %5348 = vmatpush1.msra.mxu0 %v5332
  %5349 = vmatprep.subr.mxu0 0.0
  %5350 = vmatpush1.msra.mxu0 %v5333
  %5351 = vmatprep.subr.mxu0 0.0
  %5352 = vmatpush1.msra.mxu0 %v5334
  %5353 = vmatprep.subr.mxu0 0.0
  %5354 = vmatpush1.msra.mxu0 %v5335
  %5355 = vmatprep.subr.mxu0 0.0
  %5356 = vmatpush1.msra.mxu0 0.0
  %5357 = vmatprep.subr.mxu0 0.0
  %5358 = vmatpush1.msra.mxu0 0.0
  %5359 = vmatprep.subr.mxu0 0.0
  %5360 = vmatpush1.msra.mxu0 0.0
  %5361 = vmatprep.subr.mxu0 0.0
  %5362 = vmatpush1.msra.mxu0 0.0
  %5363 = vmatprep.subr.mxu0 0.0
  %5364 = vmatpush1.msra.mxu0 0.0
  %5365 = vmatprep.subr.mxu0 0.0
  %5366 = vmatpush1.msra.mxu0 0.0
  %5367 = vmatprep.subr.mxu0 0.0
  %5368 = vmatpush1.msra.mxu0 0.0
  %5369 = vmatprep.subr.mxu0 0.0
  %5370 = vmatpush1.msra.mxu0 0.0
  %5371 = vmatprep.subr.mxu0 0.0
  %5372 = vmatpush1.msra.mxu0 0.0
  %5373 = vmatprep.subr.mxu0 0.0
  %5374 = vmatpush1.msra.mxu0 0.0
  %5375 = vmatprep.subr.mxu0 0.0
  %5376 = vmatpush1.msra.mxu0 0.0
  %5377 = vmatprep.subr.mxu0 0.0
  %5378 = vmatpush1.msra.mxu0 0.0
  %5379 = vmatprep.subr.mxu0 0.0
  %5380 = vmatpush1.msra.mxu0 0.0
  %5381 = vmatprep.subr.mxu0 0.0
  %5382 = vmatpush1.msra.mxu0 0.0
  %5383 = vmatprep.subr.mxu0 0.0
  %5384 = vmatpush1.msra.mxu0 0.0
  %5385 = vmatprep.subr.mxu0 0.0
  %5386 = vmatpush1.msra.mxu0 0.0
  %5387 = vmatprep.subr.mxu0 0.0
  %5388 = vmatpush1.msra.mxu0 0.0
  %5389 = vmatprep.subr.mxu0 0.0
  %5390 = vmatpush1.msra.mxu0 0.0
  %5391 = vmatprep.subr.mxu0 0.0
  %5392 = vmatpush1.msra.mxu0 0.0
  %5393 = vmatprep.subr.mxu0 0.0
  %5394 = vmatpush1.msra.mxu0 0.0
  %5395 = vmatprep.subr.mxu0 0.0
  %5396 = vmatpush1.msra.mxu0 0.0
  %5397 = vmatprep.subr.mxu0 0.0
  %5398 = vmatpush1.msra.mxu0 0.0
  %5399 = vmatprep.subr.mxu0 0.0
  %5400 = vmatpush1.msra.mxu0 0.0
  %5401 = vmatprep.subr.mxu0 0.0
  %5402 = vmatpush1.msra.mxu0 0.0
  %5403 = vmatprep.mubr.f32.mxu0 0.0
  %5404 = vmatmul.mubr.f32.gmra.mrb[0].mxu0 %v5337
  %v5405 = vpop.f32.mrb[0].mxu0
  %v5406 = vadd.f32 0.0, %v5405
  %v5407 = vpop.f32.mrb[0].mxu0
  %5408 = vdwg.mxu0
  %v5409 = vadd.f32 %v5251, %v5406
  %s5410 = scalar_lea.vmem %s9, 14
  %v5411 = vld [vmem:[%s5410] sm:$0x3]
  %v5413 = vsel %vm4308, %v5411, 0
  %5415 = vmatprep.subr.mxu0 0.0
  %5416 = vmatpush1.msra.mxu0 %v4305
  %5417 = vmatprep.subr.mxu0 0.0
  %5418 = vmatpush1.msra.mxu0 %v4306
  %5419 = vmatprep.subr.mxu0 0.0
  %5420 = vmatpush1.msra.mxu0 0.0
  %5421 = vmatprep.subr.mxu0 0.0
  %5422 = vmatpush1.msra.mxu0 0.0
  %5423 = vmatprep.subr.mxu0 0.0
  %5424 = vmatpush1.msra.mxu0 0.0
  %5425 = vmatprep.subr.mxu0 0.0
  %5426 = vmatpush1.msra.mxu0 0.0
  %5427 = vmatprep.subr.mxu0 0.0
  %5428 = vmatpush1.msra.mxu0 0.0
  %5429 = vmatprep.subr.mxu0 0.0
  %5430 = vmatpush1.msra.mxu0 0.0
  %5431 = vmatprep.subr.mxu0 0.0
  %5432 = vmatpush1.msra.mxu0 0.0
  %5433 = vmatprep.subr.mxu0 0.0
  %5434 = vmatpush1.msra.mxu0 0.0
  %5435 = vmatprep.subr.mxu0 0.0
  %5436 = vmatpush1.msra.mxu0 0.0
  %5437 = vmatprep.subr.mxu0 0.0
  %5438 = vmatpush1.msra.mxu0 0.0
  %5439 = vmatprep.subr.mxu0 0.0
  %5440 = vmatpush1.msra.mxu0 0.0
  %5441 = vmatprep.subr.mxu0 0.0
  %5442 = vmatpush1.msra.mxu0 0.0
  %5443 = vmatprep.subr.mxu0 0.0
  %5444 = vmatpush1.msra.mxu0 0.0
  %5445 = vmatprep.subr.mxu0 0.0
  %5446 = vmatpush1.msra.mxu0 0.0
  %5447 = vmatprep.subr.mxu0 0.0
  %5448 = vmatpush1.msra.mxu0 0.0
  %5449 = vmatprep.subr.mxu0 0.0
  %5450 = vmatpush1.msra.mxu0 0.0
  %5451 = vmatprep.subr.mxu0 0.0
  %5452 = vmatpush1.msra.mxu0 0.0
  %5453 = vmatprep.subr.mxu0 0.0
  %5454 = vmatpush1.msra.mxu0 0.0
  %5455 = vmatprep.subr.mxu0 0.0
  %5456 = vmatpush1.msra.mxu0 0.0
  %5457 = vmatprep.subr.mxu0 0.0
  %5458 = vmatpush1.msra.mxu0 0.0
  %5459 = vmatprep.subr.mxu0 0.0
  %5460 = vmatpush1.msra.mxu0 0.0
  %5461 = vmatprep.subr.mxu0 0.0
  %5462 = vmatpush1.msra.mxu0 0.0
  %5463 = vmatprep.subr.mxu0 0.0
  %5464 = vmatpush1.msra.mxu0 0.0
  %5465 = vmatprep.subr.mxu0 0.0
  %5466 = vmatpush1.msra.mxu0 0.0
  %5467 = vmatprep.subr.mxu0 0.0
  %5468 = vmatpush1.msra.mxu0 0.0
  %5469 = vmatprep.subr.mxu0 0.0
  %5470 = vmatpush1.msra.mxu0 0.0
  %5471 = vmatprep.subr.mxu0 0.0
  %5472 = vmatpush1.msra.mxu0 0.0
  %5473 = vmatprep.subr.mxu0 0.0
  %5474 = vmatpush1.msra.mxu0 0.0
  %5475 = vmatprep.subr.mxu0 0.0
  %5476 = vmatpush1.msra.mxu0 0.0
  %5477 = vmatprep.subr.mxu0 0.0
  %5478 = vmatpush1.msra.mxu0 0.0
  %5479 = vmatprep.mubr.f32.mxu0 0.0
  %5480 = vmatmul.mubr.f32.gmra.mrb[0].mxu0 %v5413
  %v5481 = vpop.f32.mrb[0].mxu0
  %v5482 = vadd.f32 0.0, %v5481
  %v5483 = vpop.f32.mrb[0].mxu0
  %5484 = vdwg.mxu0
  %s5485 = scalar_lea.vmem %s10, 448
  %v5486 = vld [vmem:[%s5485] sm:$0xff]
  %v5487 = vld [vmem:[%s5485 + $0x8] sm:$0xff]
  %v5488 = vld [vmem:[%s5485 + $0x10] sm:$0xff]
  %v5489 = vld [vmem:[%s5485 + $0x18] sm:$0xff]
  %v5490 = vld [vmem:[%s5485 + $0x20] sm:$0xff]
  %v5491 = vld [vmem:[%s5485 + $0x28] sm:$0xff]
  %v5492 = vld [vmem:[%s5485 + $0x30] sm:$0xff]
  %v5493 = vld [vmem:[%s5485 + $0x38] sm:$0xff]
  %v5495 = vsel %vm689, %v5482, 0
  %5497 = vmatprep.subr.mxu0 0.0
  %5498 = vmatpush1.msra.mxu0 %v5486
  %5499 = vmatprep.subr.mxu0 0.0
  %5500 = vmatpush1.msra.mxu0 %v5487
  %5501 = vmatprep.subr.mxu0 0.0
  %5502 = vmatpush1.msra.mxu0 %v5488
  %5503 = vmatprep.subr.mxu0 0.0
  %5504 = vmatpush1.msra.mxu0 %v5489
  %5505 = vmatprep.subr.mxu0 0.0
  %5506 = vmatpush1.msra.mxu0 %v5490
  %5507 = vmatprep.subr.mxu0 0.0
  %5508 = vmatpush1.msra.mxu0 %v5491
  %5509 = vmatprep.subr.mxu0 0.0
  %5510 = vmatpush1.msra.mxu0 %v5492
  %5511 = vmatprep.subr.mxu0 0.0
  %5512 = vmatpush1.msra.mxu0 %v5493
  %5513 = vmatprep.subr.mxu0 0.0
  %5514 = vmatpush1.msra.mxu0 0.0
  %5515 = vmatprep.subr.mxu0 0.0
  %5516 = vmatpush1.msra.mxu0 0.0
  %5517 = vmatprep.subr.mxu0 0.0
  %5518 = vmatpush1.msra.mxu0 0.0
  %5519 = vmatprep.subr.mxu0 0.0
  %5520 = vmatpush1.msra.mxu0 0.0
  %5521 = vmatprep.subr.mxu0 0.0
  %5522 = vmatpush1.msra.mxu0 0.0
  %5523 = vmatprep.subr.mxu0 0.0
  %5524 = vmatpush1.msra.mxu0 0.0
  %5525 = vmatprep.subr.mxu0 0.0
  %5526 = vmatpush1.msra.mxu0 0.0
  %5527 = vmatprep.subr.mxu0 0.0
  %5528 = vmatpush1.msra.mxu0 0.0
  %5529 = vmatprep.subr.mxu0 0.0
  %5530 = vmatpush1.msra.mxu0 0.0
  %5531 = vmatprep.subr.mxu0 0.0
  %5532 = vmatpush1.msra.mxu0 0.0
  %5533 = vmatprep.subr.mxu0 0.0
  %5534 = vmatpush1.msra.mxu0 0.0
  %5535 = vmatprep.subr.mxu0 0.0
  %5536 = vmatpush1.msra.mxu0 0.0
  %5537 = vmatprep.subr.mxu0 0.0
  %5538 = vmatpush1.msra.mxu0 0.0
  %5539 = vmatprep.subr.mxu0 0.0
  %5540 = vmatpush1.msra.mxu0 0.0
  %5541 = vmatprep.subr.mxu0 0.0
  %5542 = vmatpush1.msra.mxu0 0.0
  %5543 = vmatprep.subr.mxu0 0.0
  %5544 = vmatpush1.msra.mxu0 0.0
  %5545 = vmatprep.subr.mxu0 0.0
  %5546 = vmatpush1.msra.mxu0 0.0
  %5547 = vmatprep.subr.mxu0 0.0
  %5548 = vmatpush1.msra.mxu0 0.0
  %5549 = vmatprep.subr.mxu0 0.0
  %5550 = vmatpush1.msra.mxu0 0.0
  %5551 = vmatprep.subr.mxu0 0.0
  %5552 = vmatpush1.msra.mxu0 0.0
  %5553 = vmatprep.subr.mxu0 0.0
  %5554 = vmatpush1.msra.mxu0 0.0
  %5555 = vmatprep.subr.mxu0 0.0
  %5556 = vmatpush1.msra.mxu0 0.0
  %5557 = vmatprep.subr.mxu0 0.0
  %5558 = vmatpush1.msra.mxu0 0.0
  %5559 = vmatprep.subr.mxu0 0.0
  %5560 = vmatpush1.msra.mxu0 0.0
  %5561 = vmatprep.mubr.f32.mxu0 0.0
  %5562 = vmatmul.mubr.f32.gmra.mrb[0].mxu0 %v5495
  %v5563 = vpop.f32.mrb[0].mxu0
  %v5564 = vadd.f32 0.0, %v5563
  %v5565 = vpop.f32.mrb[0].mxu0
  %5566 = vdwg.mxu0
  %v5567 = vadd.f32 %v5409, %v5564
  %s5568 = scalar_lea.vmem %s9, 16
  %v5569 = vld [vmem:[%s5568] sm:$0x3]
  %v5571 = vsel %vm4308, %v5569, 0
  %5573 = vmatprep.subr.mxu0 0.0
  %5574 = vmatpush1.msra.mxu0 %v4305
  %5575 = vmatprep.subr.mxu0 0.0
  %5576 = vmatpush1.msra.mxu0 %v4306
  %5577 = vmatprep.subr.mxu0 0.0
  %5578 = vmatpush1.msra.mxu0 0.0
  %5579 = vmatprep.subr.mxu0 0.0
  %5580 = vmatpush1.msra.mxu0 0.0
  %5581 = vmatprep.subr.mxu0 0.0
  %5582 = vmatpush1.msra.mxu0 0.0
  %5583 = vmatprep.subr.mxu0 0.0
  %5584 = vmatpush1.msra.mxu0 0.0
  %5585 = vmatprep.subr.mxu0 0.0
  %5586 = vmatpush1.msra.mxu0 0.0
  %5587 = vmatprep.subr.mxu0 0.0
  %5588 = vmatpush1.msra.mxu0 0.0
  %5589 = vmatprep.subr.mxu0 0.0
  %5590 = vmatpush1.msra.mxu0 0.0
  %5591 = vmatprep.subr.mxu0 0.0
  %5592 = vmatpush1.msra.mxu0 0.0
  %5593 = vmatprep.subr.mxu0 0.0
  %5594 = vmatpush1.msra.mxu0 0.0
  %5595 = vmatprep.subr.mxu0 0.0
  %5596 = vmatpush1.msra.mxu0 0.0
  %5597 = vmatprep.subr.mxu0 0.0
  %5598 = vmatpush1.msra.mxu0 0.0
  %5599 = vmatprep.subr.mxu0 0.0
  %5600 = vmatpush1.msra.mxu0 0.0
  %5601 = vmatprep.subr.mxu0 0.0
  %5602 = vmatpush1.msra.mxu0 0.0
  %5603 = vmatprep.subr.mxu0 0.0
  %5604 = vmatpush1.msra.mxu0 0.0
  %5605 = vmatprep.subr.mxu0 0.0
  %5606 = vmatpush1.msra.mxu0 0.0
  %5607 = vmatprep.subr.mxu0 0.0
  %5608 = vmatpush1.msra.mxu0 0.0
  %5609 = vmatprep.subr.mxu0 0.0
  %5610 = vmatpush1.msra.mxu0 0.0
  %5611 = vmatprep.subr.mxu0 0.0
  %5612 = vmatpush1.msra.mxu0 0.0
  %5613 = vmatprep.subr.mxu0 0.0
  %5614 = vmatpush1.msra.mxu0 0.0
  %5615 = vmatprep.subr.mxu0 0.0
  %5616 = vmatpush1.msra.mxu0 0.0
  %5617 = vmatprep.subr.mxu0 0.0
  %5618 = vmatpush1.msra.mxu0 0.0
  %5619 = vmatprep.subr.mxu0 0.0
  %5620 = vmatpush1.msra.mxu0 0.0
  %5621 = vmatprep.subr.mxu0 0.0
  %5622 = vmatpush1.msra.mxu0 0.0
  %5623 = vmatprep.subr.mxu0 0.0
  %5624 = vmatpush1.msra.mxu0 0.0
  %5625 = vmatprep.subr.mxu0 0.0
  %5626 = vmatpush1.msra.mxu0 0.0
  %5627 = vmatprep.subr.mxu0 0.0
  %5628 = vmatpush1.msra.mxu0 0.0
  %5629 = vmatprep.subr.mxu0 0.0
  %5630 = vmatpush1.msra.mxu0 0.0
  %5631 = vmatprep.subr.mxu0 0.0
  %5632 = vmatpush1.msra.mxu0 0.0
  %5633 = vmatprep.subr.mxu0 0.0
  %5634 = vmatpush1.msra.mxu0 0.0
  %5635 = vmatprep.subr.mxu0 0.0
  %5636 = vmatpush1.msra.mxu0 0.0
  %5637 = vmatprep.mubr.f32.mxu0 0.0
  %5638 = vmatmul.mubr.f32.gmra.mrb[0].mxu0 %v5571
  %v5639 = vpop.f32.mrb[0].mxu0
  %v5640 = vadd.f32 0.0, %v5639
  %v5641 = vpop.f32.mrb[0].mxu0
  %5642 = vdwg.mxu0
  %s5643 = scalar_lea.vmem %s10, 512
  %v5644 = vld [vmem:[%s5643] sm:$0xff]
  %v5645 = vld [vmem:[%s5643 + $0x8] sm:$0xff]
  %v5646 = vld [vmem:[%s5643 + $0x10] sm:$0xff]
  %v5647 = vld [vmem:[%s5643 + $0x18] sm:$0xff]
  %v5648 = vld [vmem:[%s5643 + $0x20] sm:$0xff]
  %v5649 = vld [vmem:[%s5643 + $0x28] sm:$0xff]
  %v5650 = vld [vmem:[%s5643 + $0x30] sm:$0xff]
  %v5651 = vld [vmem:[%s5643 + $0x38] sm:$0xff]
  %v5653 = vsel %vm689, %v5640, 0
  %5655 = vmatprep.subr.mxu0 0.0
  %5656 = vmatpush1.msra.mxu0 %v5644
  %5657 = vmatprep.subr.mxu0 0.0
  %5658 = vmatpush1.msra.mxu0 %v5645
  %5659 = vmatprep.subr.mxu0 0.0
  %5660 = vmatpush1.msra.mxu0 %v5646
  %5661 = vmatprep.subr.mxu0 0.0
  %5662 = vmatpush1.msra.mxu0 %v5647
  %5663 = vmatprep.subr.mxu0 0.0
  %5664 = vmatpush1.msra.mxu0 %v5648
  %5665 = vmatprep.subr.mxu0 0.0
  %5666 = vmatpush1.msra.mxu0 %v5649
  %5667 = vmatprep.subr.mxu0 0.0
  %5668 = vmatpush1.msra.mxu0 %v5650
  %5669 = vmatprep.subr.mxu0 0.0
  %5670 = vmatpush1.msra.mxu0 %v5651
  %5671 = vmatprep.subr.mxu0 0.0
  %5672 = vmatpush1.msra.mxu0 0.0
  %5673 = vmatprep.subr.mxu0 0.0
  %5674 = vmatpush1.msra.mxu0 0.0
  %5675 = vmatprep.subr.mxu0 0.0
  %5676 = vmatpush1.msra.mxu0 0.0
  %5677 = vmatprep.subr.mxu0 0.0
  %5678 = vmatpush1.msra.mxu0 0.0
  %5679 = vmatprep.subr.mxu0 0.0
  %5680 = vmatpush1.msra.mxu0 0.0
  %5681 = vmatprep.subr.mxu0 0.0
  %5682 = vmatpush1.msra.mxu0 0.0
  %5683 = vmatprep.subr.mxu0 0.0
  %5684 = vmatpush1.msra.mxu0 0.0
  %5685 = vmatprep.subr.mxu0 0.0
  %5686 = vmatpush1.msra.mxu0 0.0
  %5687 = vmatprep.subr.mxu0 0.0
  %5688 = vmatpush1.msra.mxu0 0.0
  %5689 = vmatprep.subr.mxu0 0.0
  %5690 = vmatpush1.msra.mxu0 0.0
  %5691 = vmatprep.subr.mxu0 0.0
  %5692 = vmatpush1.msra.mxu0 0.0
  %5693 = vmatprep.subr.mxu0 0.0
  %5694 = vmatpush1.msra.mxu0 0.0
  %5695 = vmatprep.subr.mxu0 0.0
  %5696 = vmatpush1.msra.mxu0 0.0
  %5697 = vmatprep.subr.mxu0 0.0
  %5698 = vmatpush1.msra.mxu0 0.0
  %5699 = vmatprep.subr.mxu0 0.0
  %5700 = vmatpush1.msra.mxu0 0.0
  %5701 = vmatprep.subr.mxu0 0.0
  %5702 = vmatpush1.msra.mxu0 0.0
  %5703 = vmatprep.subr.mxu0 0.0
  %5704 = vmatpush1.msra.mxu0 0.0
  %5705 = vmatprep.subr.mxu0 0.0
  %5706 = vmatpush1.msra.mxu0 0.0
  %5707 = vmatprep.subr.mxu0 0.0
  %5708 = vmatpush1.msra.mxu0 0.0
  %5709 = vmatprep.subr.mxu0 0.0
  %5710 = vmatpush1.msra.mxu0 0.0
  %5711 = vmatprep.subr.mxu0 0.0
  %5712 = vmatpush1.msra.mxu0 0.0
  %5713 = vmatprep.subr.mxu0 0.0
  %5714 = vmatpush1.msra.mxu0 0.0
  %5715 = vmatprep.subr.mxu0 0.0
  %5716 = vmatpush1.msra.mxu0 0.0
  %5717 = vmatprep.subr.mxu0 0.0
  %5718 = vmatpush1.msra.mxu0 0.0
  %5719 = vmatprep.mubr.f32.mxu0 0.0
  %5720 = vmatmul.mubr.f32.gmra.mrb[0].mxu0 %v5653
  %v5721 = vpop.f32.mrb[0].mxu0
  %v5722 = vadd.f32 0.0, %v5721
  %v5723 = vpop.f32.mrb[0].mxu0
  %5724 = vdwg.mxu0
  %v5725 = vadd.f32 %v5567, %v5722
  %v5726 = vld [vmem:[%s11] sm:$0x1]
  %v5728 = vlaneseq
  %v5729 = vshrl.u32 %v5728, 7
  %v5730 = vsub.s32 0, %v5729
  %v5731 = vrot.slane %v5726, %v5730
  %v5733 = vadd.f32 %v5725, %v5731
  %v5734 = vmax.f32 %v5733, 0.0
  %vm5735 = vcmask 9216
  %5736 = vst.msk [vmem:[%s12] sm:$0x3] %vm5735, %v5734
  // Predicated region
  $region50: #{encoder_forward.1} parent=0 // pred_check
    _
  $region51: #{encoder_forward.1} parent=0 // pred_check_branch
    %5738 = sbr.rel (0) target = $region53
  $region52: #{encoder_forward.1} parent=0 // pred_region
    _
  $region53: #{encoder_forward.1} parent=0 // pred_fallthru
    _
  // Predicated region
  $region54: #{encoder_forward.1} parent=0 // pred_check
    _
  $region55: #{encoder_forward.1} parent=0 // pred_check_branch
    %5740 = sbr.rel (0) target = $region57
  $region56: #{encoder_forward.1} parent=0 // pred_region
    _
  $region57: #{encoder_forward.1} parent=0 // pred_fallthru
    _

</llo_original>
